<compile_context>
chip_gen: v7x
topology: tpu7x:2x2x1
jax: 0.10.0
libtpu: 0.0.40
codegen_flags: <defaults>
</compile_context>

<pallas_src>
import functools

import jax
import jax.numpy as jnp
from jax.experimental import pallas as pl
from jax.experimental.pallas import tpu as pltpu


# ----------------------------------------------------------------------------
# Fused forward kernel.
#
# refs layout (inputs, then output, then scratch):
#   x (N, Fpad) bf16, adj_aug (N, (R+1)*N) bf16, pool_mat (G, N) bf16,
#   alpha (1,1) f32 [SMEM],
#   enc_w (Fpad, D) bf16, enc_b (1, D) f32,
#   [w_aug (D, (R+1)*D) bf16, b (1, D) f32] * n_conv,     # w_aug block R == W_root
#   pool_w1 (D,D) bf16, pool_b1 (1,D) f32, pool_w2 (D,D) bf16, pool_b2 (1,D) f32,
#   [fc_w bf16, fc_b f32] * n_fc,
#   out_w (H,1) bf16, out_b (1,1) f32,
#   o_ref (G,1) f32,
#   msg_buf ((R+1)*N, D) bf16 VMEM scratch
# ----------------------------------------------------------------------------
def _fused_forward_kernel(n_conv, n_fc, *refs):
    it = iter(refs)
    x_ref = next(it)
    adj_ref = next(it)
    pool_ref = next(it)
    alpha_ref = next(it)
    enc_w = next(it)
    enc_b = next(it)
    conv = [(next(it), next(it)) for _ in range(n_conv)]
    pw1, pb1, pw2, pb2 = next(it), next(it), next(it), next(it)
    fc = [(next(it), next(it)) for _ in range(n_fc)]
    out_w, out_b = next(it), next(it)
    o_ref = next(it)
    msg_buf = next(it)

    f32, bf16 = jnp.float32, jnp.bfloat16
    n = x_ref.shape[0]
    d = enc_w.shape[1]                    # hidden width (== node_embedding_dim)
    num_rel_aug = adj_ref.shape[1] // n   # R + 1 (root block appended)
    alpha = alpha_ref[0, 0]               # single shared PReLU slope

    # ---- node encoder: h = x @ W_enc + b ------------------------------------
    h = jnp.dot(x_ref[...], enc_w[...], preferred_element_type=f32) + enc_b[...]

    # ---- RGCN layers (aggr='add') + skip + PReLU + L2 normalize --------------
    for w_aug_ref, b_ref in conv:
        h_bf = h.astype(bf16)
        # Per-relation matmul straight into the VMEM scratch (no fat f32
        # intermediate, no copy-rearrange):
        #   msg_buf[r*N + src, :] = h[src] @ W_r     (block r == R is W_root)
        for r in range(num_rel_aug):
            msg_buf[r * n:(r + 1) * n, :] = jnp.dot(
                h_bf, w_aug_ref[:, r * d:(r + 1) * d],
                preferred_element_type=f32).astype(bf16)
        # Single fat aggregation matmul; adj has an identity block appended so
        # the root/self term is already folded in.
        agg = jnp.dot(adj_ref[...], msg_buf[...], preferred_element_type=f32)
        y = agg + b_ref[...] + h                 # conv(h) + skip (skip added in f32)
        y = jnp.where(y >= 0.0, y, alpha * y)    # PReLU (after skip add)
        ss = jnp.sum(y * y, axis=1, keepdims=True)
        h = y * jax.lax.rsqrt(jnp.maximum(ss, 1e-24))   # F.normalize(x, 2, 1)

    # ---- graph pooling MLP ----------------------------------------------------
    p = jnp.dot(h.astype(bf16), pw1[...], preferred_element_type=f32) + pb1[...]
    p = jnp.maximum(p, 0.0)
    p = jnp.dot(p.astype(bf16), pw2[...], preferred_element_type=f32) + pb2[...]

    # ---- global_add_pool (one-hot pooling matmul) -----------------------------
    g = jnp.dot(pool_ref[...], p.astype(bf16), preferred_element_type=f32)  # (G, D)

    # ---- fc stack (dropout = identity in eval) + output head ------------------
    for w_ref, b_ref in fc:
        g = jnp.dot(g.astype(bf16), w_ref[...], preferred_element_type=f32) + b_ref[...]
        g = jnp.maximum(g, 0.0)
    out = jnp.dot(g.astype(bf16), out_w[...], preferred_element_type=f32) + out_b[...]
    o_ref[...] = jnp.maximum(out, 0.0).astype(o_ref.dtype)


# ----------------------------------------------------------------------------
# One-time layout work (call at init / data-prep time, NOT per forward call).
# ----------------------------------------------------------------------------
def prepare_graph(x, adj, pool_mat):
    """Pad/cast node features, flatten adjacency (+ identity block for the root
    term), cast pooling matrix. bf16 is exact for edge counts / one-hot masks."""
    bf16 = jnp.bfloat16
    n = x.shape[0]
    num_rel = adj.shape[0]
    f_in = x.shape[1]
    f_pad = ((f_in + 127) // 128) * 128
    # NOTE: N should be a multiple of 16 so the per-relation msg_buf row blocks
    # are sublane-aligned for bf16 (true for these sizes).
    x_p = jnp.pad(x, ((0, 0), (0, f_pad - f_in))).astype(bf16)
    # adj_aug[dst, r*N + src] = #edges (src -> dst) of relation r; the last
    # N-column block is the identity (folds W_root into the aggregation matmul).
    adj_flat = jnp.transpose(adj, (1, 0, 2)).reshape(n, num_rel * n)
    adj_aug = jnp.concatenate(
        [adj_flat, jnp.eye(n, dtype=adj.dtype)], axis=1).astype(bf16)
    pool_bf = pool_mat.astype(bf16)
    return x_p, adj_aug, pool_bf


def prepare_params(params, num_node_features):
    """Flatten/transpose/cast weights once. Order must match the kernel."""
    bf16 = jnp.bfloat16
    d = params["enc_w"].shape[1]
    f_in = num_node_features
    f_pad = ((f_in + 127) // 128) * 128
    enc_w_p = jnp.pad(params["enc_w"], ((0, f_pad - f_in), (0, 0))).astype(bf16)

    flat = [params["prelu_alpha"], enc_w_p, params["enc_b"].reshape(1, -1)]
    for layer in params["conv"]:
        num_rel = layer["w_rel"].shape[0]
        # (R, D_in, D_out) -> (D_in, R*D_out), append W_root as block R.
        w_rel_flat = jnp.transpose(layer["w_rel"], (1, 0, 2)).reshape(d, num_rel * d)
        w_aug = jnp.concatenate([w_rel_flat, layer["w_root"]], axis=1).astype(bf16)
        flat += [w_aug, layer["b"].reshape(1, -1)]
    flat += [params["pool_w1"].astype(bf16), params["pool_b1"].reshape(1, -1),
             params["pool_w2"].astype(bf16), params["pool_b2"].reshape(1, -1)]
    for w, b in params["fc"]:
        flat += [w.astype(bf16), b.reshape(1, -1)]
    flat += [params["out_w"].astype(bf16), params["out_b"].reshape(1, -1)]
    return tuple(flat)


# ----------------------------------------------------------------------------
# Forward: just the single fused pallas_call (no layout ops in the hot path).
# ----------------------------------------------------------------------------
def rgcn_skip_forward(flat_params, x_p, adj_aug, pool_bf, *, n_conv, n_fc):
    bf16 = jnp.bfloat16
    n_nodes = x_p.shape[0]
    n_graphs = pool_bf.shape[0]
    f_pad, d = flat_params[1].shape            # padded encoder weight
    r_aug = adj_aug.shape[1] // n_nodes        # R + 1

    args = [x_p, adj_aug, pool_bf] + list(flat_params)
    # alpha (flat_params[0]) sits at position 3 -> SMEM scalar; all else VMEM.
    in_specs = [
        pl.BlockSpec(memory_space=pltpu.MemorySpace.SMEM) if i == 3
        else pl.BlockSpec(memory_space=pltpu.MemorySpace.VMEM)
        for i in range(len(args))
    ]

    # --- cost estimate (advisory) ---------------------------------------------
    flops = 2.0 * n_nodes * f_pad * d                                  # encoder
    flops += n_conv * (2.0 * n_nodes * d * (r_aug * d)                 # per-rel matmuls
                       + 2.0 * n_nodes * (r_aug * n_nodes) * d)        # aggregation
    flops += 2 * 2.0 * n_nodes * d * d                                 # pooling MLP
    flops += 2.0 * n_graphs * n_nodes * d                              # global_add_pool
    fc_base = 3 + 2 * n_conv + 4
    for i in range(n_fc):
        w = flat_params[fc_base + 2 * i]
        flops += 2.0 * n_graphs * w.shape[0] * w.shape[1]
    ow = flat_params[fc_base + 2 * n_fc]
    flops += 2.0 * n_graphs * ow.shape[0] * ow.shape[1]

    def _nbytes(a):
        return int(a.size) * a.dtype.itemsize

    scratch_bytes = (r_aug * n_nodes) * d * 2                          # bf16 msg_buf
    out_bytes = n_graphs * 1 * 4
    arg_bytes = sum(_nbytes(a) for a in args)
    cost = pl.CostEstimate(flops=int(flops),
                           transcendentals=int(n_conv * n_nodes),      # rsqrt
                           bytes_accessed=int(arg_bytes + out_bytes))
    vmem_limit = int(min(64 * 1024 * 1024,
                         max(16 * 1024 * 1024,
                             4 * (arg_bytes + scratch_bytes + out_bytes))))

    return pl.pallas_call(
        functools.partial(_fused_forward_kernel, n_conv, n_fc),
        out_shape=jax.ShapeDtypeStruct((n_graphs, 1), jnp.float32),
        in_specs=in_specs,
        out_specs=pl.BlockSpec(memory_space=pltpu.MemorySpace.VMEM),
        scratch_shapes=[pltpu.VMEM((r_aug * n_nodes, d), bf16)],
        compiler_params=pltpu.CompilerParams(vmem_limit_bytes=vmem_limit),
        cost_estimate=cost,
    )(*args)


# ----------------------------------------------------------------------------
# Parameter construction (deterministic, mirrors module __init__ shapes).
# Weights stored (in_features, out_features) so every linear is `x @ W + b`.
# ----------------------------------------------------------------------------
def init_params(key, num_node_features, node_embedding_dim, hidden_channels,
                hidden_dims, num_relations):
    # The skip connection x = prelu(conv(x) + skip) requires width preservation.
    assert all(h == node_embedding_dim for h in hidden_channels), (
        "skip connection requires node_embedding_dim == hidden_channels[i]")

    def dense(key, fan_in, fan_out):
        kw, kb = jax.random.split(key)
        scale = 1.0 / jnp.sqrt(fan_in)
        w = jax.random.uniform(kw, (fan_in, fan_out), jnp.float32, -scale, scale)
        b = jax.random.uniform(kb, (fan_out,), jnp.float32, -scale, scale)
        return w, b

    keys = jax.random.split(key, 8 + len(hidden_channels) + len(hidden_dims))
    ki = iter(keys)

    params = {}
    params["enc_w"], params["enc_b"] = dense(next(ki), num_node_features,
                                             node_embedding_dim)
    params["prelu_alpha"] = jnp.full((1, 1), 0.25, jnp.float32)  # nn.PReLU default

    convs = []
    in_dim = node_embedding_dim
    for out_dim in hidden_channels:
        k_rel, k_root, k_b = jax.random.split(next(ki), 3)
        scale = 1.0 / jnp.sqrt(in_dim)
        convs.append({
            "w_rel": jax.random.uniform(k_rel, (num_relations, in_dim, out_dim),
                                        jnp.float32, -scale, scale),
            "w_root": jax.random.uniform(k_root, (in_dim, out_dim),
                                         jnp.float32, -scale, scale),
            "b": jax.random.uniform(k_b, (out_dim,), jnp.float32, -scale, scale),
        })
        in_dim = out_dim
    params["conv"] = convs

    hc = hidden_channels[-1]
    params["pool_w1"], params["pool_b1"] = dense(next(ki), hc, hc)
    params["pool_w2"], params["pool_b2"] = dense(next(ki), hc, hc)

    fcs = []
    in_dim = hc
    for h in hidden_dims:
        fcs.append(dense(next(ki), in_dim, h))
        in_dim = h
    params["fc"] = fcs

    params["out_w"], params["out_b"] = dense(next(ki), hidden_dims[-1], 1)
    return params


if __name__ == "__main__":
    NUM_NODE_FEATURES = 13
    NODE_EMBEDDING_DIM = 128
    HIDDEN_CHANNELS = [128, 128]     # skip connection requires equal widths
    HIDDEN_DIMS = [64]
    NUM_RELATIONS = 6
    NUM_GRAPHS = 4
    NODES_PER_GRAPH = 16
    N = NUM_GRAPHS * NODES_PER_GRAPH
    E = 160

    key = jax.random.PRNGKey(0)
    k_x, k_src, k_dst, k_type, k_param = jax.random.split(key, 5)

    x = jax.random.normal(k_x, (N, NUM_NODE_FEATURES), jnp.float32)
    src = jax.random.randint(k_src, (E,), 0, N)
    dst = jax.random.randint(k_dst, (E,), 0, N)
    edge_index = jnp.stack([src, dst])                  # [2, E], source_to_target flow
    edge_type = jax.random.randint(k_type, (E,), 0, NUM_RELATIONS)
    batch = jnp.repeat(jnp.arange(NUM_GRAPHS), NODES_PER_GRAPH)

    # Densify graph structure (glue, one-time): A[r, dst, src] accumulates edge
    # multiplicity (RGCNConv aggr='add' -> raw counts, no degree normalization).
    adj = jnp.zeros((NUM_RELATIONS, N, N), jnp.float32).at[
        edge_type, edge_index[1], edge_index[0]
    ].add(1.0)
    # One-hot pooling matrix for global_add_pool.
    pool_mat = (batch[None, :] == jnp.arange(NUM_GRAPHS)[:, None]).astype(jnp.float32)

    params = init_params(k_param, NUM_NODE_FEATURES, NODE_EMBEDDING_DIM,
                         HIDDEN_CHANNELS, HIDDEN_DIMS, NUM_RELATIONS)

    # One-time layout / cast work (kept OUT of the per-call hot path).
    flat_params = prepare_params(params, NUM_NODE_FEATURES)
    x_p, adj_aug, pool_bf = prepare_graph(x, adj, pool_mat)

    fwd = jax.jit(functools.partial(rgcn_skip_forward,
                                    n_conv=len(HIDDEN_CHANNELS),
                                    n_fc=len(HIDDEN_DIMS)))
    out = fwd(flat_params, x_p, adj_aug, pool_bf)
    jax.block_until_ready(out)
    assert out.shape == (NUM_GRAPHS, 1)
    print("KERNEL_OK")
</pallas_src>

<mosaic_0001>
module attributes {stable_mosaic.version = 11 : i64} {
  func.func @_fused_forward_kernel(%arg0: memref<64x128xbf16, #tpu.memory_space<vmem>>, %arg1: memref<64x448xbf16, #tpu.memory_space<vmem>>, %arg2: memref<4x64xbf16, #tpu.memory_space<vmem>>, %arg3: memref<1x1xf32, #tpu.memory_space<smem>>, %arg4: memref<128x128xbf16, #tpu.memory_space<vmem>>, %arg5: memref<1x128xf32, #tpu.memory_space<vmem>>, %arg6: memref<128x896xbf16, #tpu.memory_space<vmem>>, %arg7: memref<1x128xf32, #tpu.memory_space<vmem>>, %arg8: memref<128x896xbf16, #tpu.memory_space<vmem>>, %arg9: memref<1x128xf32, #tpu.memory_space<vmem>>, %arg10: memref<128x128xbf16, #tpu.memory_space<vmem>>, %arg11: memref<1x128xf32, #tpu.memory_space<vmem>>, %arg12: memref<128x128xbf16, #tpu.memory_space<vmem>>, %arg13: memref<1x128xf32, #tpu.memory_space<vmem>>, %arg14: memref<128x64xbf16, #tpu.memory_space<vmem>>, %arg15: memref<1x64xf32, #tpu.memory_space<vmem>>, %arg16: memref<64x1xbf16, #tpu.memory_space<vmem>>, %arg17: memref<1x1xf32, #tpu.memory_space<vmem>>, %arg18: memref<4x1xf32, #tpu.memory_space<vmem>>, %arg19: memref<448x128xbf16, #tpu.memory_space<vmem>>) attributes {dimension_semantics = [], scalar_prefetch = 0 : i64, scratch_operands = 1 : i64, tpu.core_type = #tpu.core_type<tc>} {
    %c0 = arith.constant 0 : index
    %c0_0 = arith.constant 0 : index
    %0 = memref.load %arg3[%c0, %c0_0] : memref<1x1xf32, #tpu.memory_space<smem>>
    %c0_1 = arith.constant 0 : index
    %c0_2 = arith.constant 0 : index
    %1 = vector.load %arg0[%c0_1, %c0_2] : memref<64x128xbf16, #tpu.memory_space<vmem>>, vector<64x128xbf16>
    %c0_3 = arith.constant 0 : index
    %c0_4 = arith.constant 0 : index
    %2 = vector.load %arg4[%c0_3, %c0_4] : memref<128x128xbf16, #tpu.memory_space<vmem>>, vector<128x128xbf16>
    %cst = arith.constant dense<0.000000e+00> : vector<64x128xf32>
    %3 = tpu.matmul %1, %2, %cst {dimension_numbers = #tpu.dot_dimension_numbers<[1], [0], [0], [1], [0, 0, 1, 1], [], []>} : vector<64x128xbf16>, vector<128x128xbf16>, vector<64x128xf32> -> vector<64x128xf32>
    %c0_5 = arith.constant 0 : index
    %c0_6 = arith.constant 0 : index
    %4 = vector.load %arg5[%c0_5, %c0_6] : memref<1x128xf32, #tpu.memory_space<vmem>>, vector<1x128xf32>
    %5 = vector.broadcast %4 : vector<1x128xf32> to vector<64x128xf32>
    %6 = arith.addf %3, %5 : vector<64x128xf32>
    %7 = arith.truncf %6 : vector<64x128xf32> to vector<64x128xbf16>
    %c0_7 = arith.constant 0 : index
    %c0_8 = arith.constant 0 : index
    %8 = vector.load %arg6[%c0_7, %c0_8] : memref<128x896xbf16, #tpu.memory_space<vmem>>, vector<128x128xbf16>
    %cst_9 = arith.constant dense<0.000000e+00> : vector<64x128xf32>
    %9 = tpu.matmul %7, %8, %cst_9 {dimension_numbers = #tpu.dot_dimension_numbers<[1], [0], [0], [1], [0, 0, 1, 1], [], []>} : vector<64x128xbf16>, vector<128x128xbf16>, vector<64x128xf32> -> vector<64x128xf32>
    %10 = arith.truncf %9 : vector<64x128xf32> to vector<64x128xbf16>
    %c0_10 = arith.constant 0 : index
    %c0_11 = arith.constant 0 : index
    %11 = vector.load %arg19[%c0_10, %c0_11] : memref<448x128xbf16, #tpu.memory_space<vmem>>, vector<64x128xbf16>
    tpu.vector_store %arg19[%c0_10, %c0_11], %10 {strides = array<i32>} : memref<448x128xbf16, #tpu.memory_space<vmem>>, vector<64x128xbf16>,
    %c0_12 = arith.constant 0 : index
    %c128 = arith.constant 128 : index
    %12 = vector.load %arg6[%c0_12, %c128] : memref<128x896xbf16, #tpu.memory_space<vmem>>, vector<128x128xbf16>
    %cst_13 = arith.constant dense<0.000000e+00> : vector<64x128xf32>
    %13 = tpu.matmul %7, %12, %cst_13 {dimension_numbers = #tpu.dot_dimension_numbers<[1], [0], [0], [1], [0, 0, 1, 1], [], []>} : vector<64x128xbf16>, vector<128x128xbf16>, vector<64x128xf32> -> vector<64x128xf32>
    %14 = arith.truncf %13 : vector<64x128xf32> to vector<64x128xbf16>
    %c64 = arith.constant 64 : index
    %c0_14 = arith.constant 0 : index
    %15 = vector.load %arg19[%c64, %c0_14] : memref<448x128xbf16, #tpu.memory_space<vmem>>, vector<64x128xbf16>
    tpu.vector_store %arg19[%c64, %c0_14], %14 {strides = array<i32>} : memref<448x128xbf16, #tpu.memory_space<vmem>>, vector<64x128xbf16>,
    %c0_15 = arith.constant 0 : index
    %c256 = arith.constant 256 : index
    %16 = vector.load %arg6[%c0_15, %c256] : memref<128x896xbf16, #tpu.memory_space<vmem>>, vector<128x128xbf16>
    %cst_16 = arith.constant dense<0.000000e+00> : vector<64x128xf32>
    %17 = tpu.matmul %7, %16, %cst_16 {dimension_numbers = #tpu.dot_dimension_numbers<[1], [0], [0], [1], [0, 0, 1, 1], [], []>} : vector<64x128xbf16>, vector<128x128xbf16>, vector<64x128xf32> -> vector<64x128xf32>
    %18 = arith.truncf %17 : vector<64x128xf32> to vector<64x128xbf16>
    %c128_17 = arith.constant 128 : index
    %c0_18 = arith.constant 0 : index
    %19 = vector.load %arg19[%c128_17, %c0_18] : memref<448x128xbf16, #tpu.memory_space<vmem>>, vector<64x128xbf16>
    tpu.vector_store %arg19[%c128_17, %c0_18], %18 {strides = array<i32>} : memref<448x128xbf16, #tpu.memory_space<vmem>>, vector<64x128xbf16>,
    %c0_19 = arith.constant 0 : index
    %c384 = arith.constant 384 : index
    %20 = vector.load %arg6[%c0_19, %c384] : memref<128x896xbf16, #tpu.memory_space<vmem>>, vector<128x128xbf16>
    %cst_20 = arith.constant dense<0.000000e+00> : vector<64x128xf32>
    %21 = tpu.matmul %7, %20, %cst_20 {dimension_numbers = #tpu.dot_dimension_numbers<[1], [0], [0], [1], [0, 0, 1, 1], [], []>} : vector<64x128xbf16>, vector<128x128xbf16>, vector<64x128xf32> -> vector<64x128xf32>
    %22 = arith.truncf %21 : vector<64x128xf32> to vector<64x128xbf16>
    %c192 = arith.constant 192 : index
    %c0_21 = arith.constant 0 : index
    %23 = vector.load %arg19[%c192, %c0_21] : memref<448x128xbf16, #tpu.memory_space<vmem>>, vector<64x128xbf16>
    tpu.vector_store %arg19[%c192, %c0_21], %22 {strides = array<i32>} : memref<448x128xbf16, #tpu.memory_space<vmem>>, vector<64x128xbf16>,
    %c0_22 = arith.constant 0 : index
    %c512 = arith.constant 512 : index
    %24 = vector.load %arg6[%c0_22, %c512] : memref<128x896xbf16, #tpu.memory_space<vmem>>, vector<128x128xbf16>
    %cst_23 = arith.constant dense<0.000000e+00> : vector<64x128xf32>
    %25 = tpu.matmul %7, %24, %cst_23 {dimension_numbers = #tpu.dot_dimension_numbers<[1], [0], [0], [1], [0, 0, 1, 1], [], []>} : vector<64x128xbf16>, vector<128x128xbf16>, vector<64x128xf32> -> vector<64x128xf32>
    %26 = arith.truncf %25 : vector<64x128xf32> to vector<64x128xbf16>
    %c256_24 = arith.constant 256 : index
    %c0_25 = arith.constant 0 : index
    %27 = vector.load %arg19[%c256_24, %c0_25] : memref<448x128xbf16, #tpu.memory_space<vmem>>, vector<64x128xbf16>
    tpu.vector_store %arg19[%c256_24, %c0_25], %26 {strides = array<i32>} : memref<448x128xbf16, #tpu.memory_space<vmem>>, vector<64x128xbf16>,
    %c0_26 = arith.constant 0 : index
    %c640 = arith.constant 640 : index
    %28 = vector.load %arg6[%c0_26, %c640] : memref<128x896xbf16, #tpu.memory_space<vmem>>, vector<128x128xbf16>
    %cst_27 = arith.constant dense<0.000000e+00> : vector<64x128xf32>
    %29 = tpu.matmul %7, %28, %cst_27 {dimension_numbers = #tpu.dot_dimension_numbers<[1], [0], [0], [1], [0, 0, 1, 1], [], []>} : vector<64x128xbf16>, vector<128x128xbf16>, vector<64x128xf32> -> vector<64x128xf32>
    %30 = arith.truncf %29 : vector<64x128xf32> to vector<64x128xbf16>
    %c320 = arith.constant 320 : index
    %c0_28 = arith.constant 0 : index
    %31 = vector.load %arg19[%c320, %c0_28] : memref<448x128xbf16, #tpu.memory_space<vmem>>, vector<64x128xbf16>
    tpu.vector_store %arg19[%c320, %c0_28], %30 {strides = array<i32>} : memref<448x128xbf16, #tpu.memory_space<vmem>>, vector<64x128xbf16>,
    %c0_29 = arith.constant 0 : index
    %c768 = arith.constant 768 : index
    %32 = vector.load %arg6[%c0_29, %c768] : memref<128x896xbf16, #tpu.memory_space<vmem>>, vector<128x128xbf16>
    %cst_30 = arith.constant dense<0.000000e+00> : vector<64x128xf32>
    %33 = tpu.matmul %7, %32, %cst_30 {dimension_numbers = #tpu.dot_dimension_numbers<[1], [0], [0], [1], [0, 0, 1, 1], [], []>} : vector<64x128xbf16>, vector<128x128xbf16>, vector<64x128xf32> -> vector<64x128xf32>
    %34 = arith.truncf %33 : vector<64x128xf32> to vector<64x128xbf16>
    %c384_31 = arith.constant 384 : index
    %c0_32 = arith.constant 0 : index
    %35 = vector.load %arg19[%c384_31, %c0_32] : memref<448x128xbf16, #tpu.memory_space<vmem>>, vector<64x128xbf16>
    tpu.vector_store %arg19[%c384_31, %c0_32], %34 {strides = array<i32>} : memref<448x128xbf16, #tpu.memory_space<vmem>>, vector<64x128xbf16>,
    %c0_33 = arith.constant 0 : index
    %c0_34 = arith.constant 0 : index
    %36 = vector.load %arg1[%c0_33, %c0_34] : memref<64x448xbf16, #tpu.memory_space<vmem>>, vector<64x448xbf16>
    %c0_35 = arith.constant 0 : index
    %c0_36 = arith.constant 0 : index
    %37 = vector.load %arg19[%c0_35, %c0_36] : memref<448x128xbf16, #tpu.memory_space<vmem>>, vector<448x128xbf16>
    %cst_37 = arith.constant dense<0.000000e+00> : vector<64x128xf32>
    %38 = tpu.matmul %36, %37, %cst_37 {dimension_numbers = #tpu.dot_dimension_numbers<[1], [0], [0], [1], [0, 0, 1, 1], [], []>} : vector<64x448xbf16>, vector<448x128xbf16>, vector<64x128xf32> -> vector<64x128xf32>
    %c0_38 = arith.constant 0 : index
    %c0_39 = arith.constant 0 : index
    %39 = vector.load %arg7[%c0_38, %c0_39] : memref<1x128xf32, #tpu.memory_space<vmem>>, vector<1x128xf32>
    %40 = vector.broadcast %39 : vector<1x128xf32> to vector<64x128xf32>
    %41 = arith.addf %38, %40 : vector<64x128xf32>
    %42 = arith.addf %41, %6 : vector<64x128xf32>
    %cst_40 = arith.constant 0.000000e+00 : f32
    %43 = vector.broadcast %cst_40 : f32 to vector<64x128xf32>
    %44 = arith.cmpf oge, %42, %43 : vector<64x128xf32>
    %45 = vector.broadcast %0 : f32 to vector<64x128xf32>
    %46 = arith.mulf %45, %42 : vector<64x128xf32>
    %47 = arith.select %44, %42, %46 : vector<64x128xi1>, vector<64x128xf32>
    %48 = arith.mulf %47, %47 : vector<64x128xf32>
    %cst_41 = arith.constant dense<0.000000e+00> : vector<64xf32>
    %49 = vector.multi_reduction <add>, %48, %cst_41 [1] : vector<64x128xf32> to vector<64xf32>
    %50 = vector.shape_cast %49 : vector<64xf32> to vector<64x1xf32>
    %cst_42 = arith.constant 1.000000e-24 : f32
    %51 = vector.broadcast %cst_42 : f32 to vector<64x1xf32>
    %52 = arith.maximumf %50, %51 : vector<64x1xf32>
    %53 = math.rsqrt %52 : vector<64x1xf32>
    %54 = vector.broadcast %53 : vector<64x1xf32> to vector<64x128xf32>
    %55 = arith.mulf %47, %54 : vector<64x128xf32>
    %56 = arith.truncf %55 : vector<64x128xf32> to vector<64x128xbf16>
    %c0_43 = arith.constant 0 : index
    %c0_44 = arith.constant 0 : index
    %57 = vector.load %arg8[%c0_43, %c0_44] : memref<128x896xbf16, #tpu.memory_space<vmem>>, vector<128x128xbf16>
    %cst_45 = arith.constant dense<0.000000e+00> : vector<64x128xf32>
    %58 = tpu.matmul %56, %57, %cst_45 {dimension_numbers = #tpu.dot_dimension_numbers<[1], [0], [0], [1], [0, 0, 1, 1], [], []>} : vector<64x128xbf16>, vector<128x128xbf16>, vector<64x128xf32> -> vector<64x128xf32>
    %59 = arith.truncf %58 : vector<64x128xf32> to vector<64x128xbf16>
    %c0_46 = arith.constant 0 : index
    %c0_47 = arith.constant 0 : index
    %60 = vector.load %arg19[%c0_46, %c0_47] : memref<448x128xbf16, #tpu.memory_space<vmem>>, vector<64x128xbf16>
    tpu.vector_store %arg19[%c0_46, %c0_47], %59 {strides = array<i32>} : memref<448x128xbf16, #tpu.memory_space<vmem>>, vector<64x128xbf16>,
    %c0_48 = arith.constant 0 : index
    %c128_49 = arith.constant 128 : index
    %61 = vector.load %arg8[%c0_48, %c128_49] : memref<128x896xbf16, #tpu.memory_space<vmem>>, vector<128x128xbf16>
    %cst_50 = arith.constant dense<0.000000e+00> : vector<64x128xf32>
    %62 = tpu.matmul %56, %61, %cst_50 {dimension_numbers = #tpu.dot_dimension_numbers<[1], [0], [0], [1], [0, 0, 1, 1], [], []>} : vector<64x128xbf16>, vector<128x128xbf16>, vector<64x128xf32> -> vector<64x128xf32>
    %63 = arith.truncf %62 : vector<64x128xf32> to vector<64x128xbf16>
    %c64_51 = arith.constant 64 : index
    %c0_52 = arith.constant 0 : index
    %64 = vector.load %arg19[%c64_51, %c0_52] : memref<448x128xbf16, #tpu.memory_space<vmem>>, vector<64x128xbf16>
    tpu.vector_store %arg19[%c64_51, %c0_52], %63 {strides = array<i32>} : memref<448x128xbf16, #tpu.memory_space<vmem>>, vector<64x128xbf16>,
    %c0_53 = arith.constant 0 : index
    %c256_54 = arith.constant 256 : index
    %65 = vector.load %arg8[%c0_53, %c256_54] : memref<128x896xbf16, #tpu.memory_space<vmem>>, vector<128x128xbf16>
    %cst_55 = arith.constant dense<0.000000e+00> : vector<64x128xf32>
    %66 = tpu.matmul %56, %65, %cst_55 {dimension_numbers = #tpu.dot_dimension_numbers<[1], [0], [0], [1], [0, 0, 1, 1], [], []>} : vector<64x128xbf16>, vector<128x128xbf16>, vector<64x128xf32> -> vector<64x128xf32>
    %67 = arith.truncf %66 : vector<64x128xf32> to vector<64x128xbf16>
    %c128_56 = arith.constant 128 : index
    %c0_57 = arith.constant 0 : index
    %68 = vector.load %arg19[%c128_56, %c0_57] : memref<448x128xbf16, #tpu.memory_space<vmem>>, vector<64x128xbf16>
    tpu.vector_store %arg19[%c128_56, %c0_57], %67 {strides = array<i32>} : memref<448x128xbf16, #tpu.memory_space<vmem>>, vector<64x128xbf16>,
    %c0_58 = arith.constant 0 : index
    %c384_59 = arith.constant 384 : index
    %69 = vector.load %arg8[%c0_58, %c384_59] : memref<128x896xbf16, #tpu.memory_space<vmem>>, vector<128x128xbf16>
    %cst_60 = arith.constant dense<0.000000e+00> : vector<64x128xf32>
    %70 = tpu.matmul %56, %69, %cst_60 {dimension_numbers = #tpu.dot_dimension_numbers<[1], [0], [0], [1], [0, 0, 1, 1], [], []>} : vector<64x128xbf16>, vector<128x128xbf16>, vector<64x128xf32> -> vector<64x128xf32>
    %71 = arith.truncf %70 : vector<64x128xf32> to vector<64x128xbf16>
    %c192_61 = arith.constant 192 : index
    %c0_62 = arith.constant 0 : index
    %72 = vector.load %arg19[%c192_61, %c0_62] : memref<448x128xbf16, #tpu.memory_space<vmem>>, vector<64x128xbf16>
    tpu.vector_store %arg19[%c192_61, %c0_62], %71 {strides = array<i32>} : memref<448x128xbf16, #tpu.memory_space<vmem>>, vector<64x128xbf16>,
    %c0_63 = arith.constant 0 : index
    %c512_64 = arith.constant 512 : index
    %73 = vector.load %arg8[%c0_63, %c512_64] : memref<128x896xbf16, #tpu.memory_space<vmem>>, vector<128x128xbf16>
    %cst_65 = arith.constant dense<0.000000e+00> : vector<64x128xf32>
    %74 = tpu.matmul %56, %73, %cst_65 {dimension_numbers = #tpu.dot_dimension_numbers<[1], [0], [0], [1], [0, 0, 1, 1], [], []>} : vector<64x128xbf16>, vector<128x128xbf16>, vector<64x128xf32> -> vector<64x128xf32>
    %75 = arith.truncf %74 : vector<64x128xf32> to vector<64x128xbf16>
    %c256_66 = arith.constant 256 : index
    %c0_67 = arith.constant 0 : index
    %76 = vector.load %arg19[%c256_66, %c0_67] : memref<448x128xbf16, #tpu.memory_space<vmem>>, vector<64x128xbf16>
    tpu.vector_store %arg19[%c256_66, %c0_67], %75 {strides = array<i32>} : memref<448x128xbf16, #tpu.memory_space<vmem>>, vector<64x128xbf16>,
    %c0_68 = arith.constant 0 : index
    %c640_69 = arith.constant 640 : index
    %77 = vector.load %arg8[%c0_68, %c640_69] : memref<128x896xbf16, #tpu.memory_space<vmem>>, vector<128x128xbf16>
    %cst_70 = arith.constant dense<0.000000e+00> : vector<64x128xf32>
    %78 = tpu.matmul %56, %77, %cst_70 {dimension_numbers = #tpu.dot_dimension_numbers<[1], [0], [0], [1], [0, 0, 1, 1], [], []>} : vector<64x128xbf16>, vector<128x128xbf16>, vector<64x128xf32> -> vector<64x128xf32>
    %79 = arith.truncf %78 : vector<64x128xf32> to vector<64x128xbf16>
    %c320_71 = arith.constant 320 : index
    %c0_72 = arith.constant 0 : index
    %80 = vector.load %arg19[%c320_71, %c0_72] : memref<448x128xbf16, #tpu.memory_space<vmem>>, vector<64x128xbf16>
    tpu.vector_store %arg19[%c320_71, %c0_72], %79 {strides = array<i32>} : memref<448x128xbf16, #tpu.memory_space<vmem>>, vector<64x128xbf16>,
    %c0_73 = arith.constant 0 : index
    %c768_74 = arith.constant 768 : index
    %81 = vector.load %arg8[%c0_73, %c768_74] : memref<128x896xbf16, #tpu.memory_space<vmem>>, vector<128x128xbf16>
    %cst_75 = arith.constant dense<0.000000e+00> : vector<64x128xf32>
    %82 = tpu.matmul %56, %81, %cst_75 {dimension_numbers = #tpu.dot_dimension_numbers<[1], [0], [0], [1], [0, 0, 1, 1], [], []>} : vector<64x128xbf16>, vector<128x128xbf16>, vector<64x128xf32> -> vector<64x128xf32>
    %83 = arith.truncf %82 : vector<64x128xf32> to vector<64x128xbf16>
    %c384_76 = arith.constant 384 : index
    %c0_77 = arith.constant 0 : index
    %84 = vector.load %arg19[%c384_76, %c0_77] : memref<448x128xbf16, #tpu.memory_space<vmem>>, vector<64x128xbf16>
    tpu.vector_store %arg19[%c384_76, %c0_77], %83 {strides = array<i32>} : memref<448x128xbf16, #tpu.memory_space<vmem>>, vector<64x128xbf16>,
    %c0_78 = arith.constant 0 : index
    %c0_79 = arith.constant 0 : index
    %85 = vector.load %arg1[%c0_78, %c0_79] : memref<64x448xbf16, #tpu.memory_space<vmem>>, vector<64x448xbf16>
    %c0_80 = arith.constant 0 : index
    %c0_81 = arith.constant 0 : index
    %86 = vector.load %arg19[%c0_80, %c0_81] : memref<448x128xbf16, #tpu.memory_space<vmem>>, vector<448x128xbf16>
    %cst_82 = arith.constant dense<0.000000e+00> : vector<64x128xf32>
    %87 = tpu.matmul %85, %86, %cst_82 {dimension_numbers = #tpu.dot_dimension_numbers<[1], [0], [0], [1], [0, 0, 1, 1], [], []>} : vector<64x448xbf16>, vector<448x128xbf16>, vector<64x128xf32> -> vector<64x128xf32>
    %c0_83 = arith.constant 0 : index
    %c0_84 = arith.constant 0 : index
    %88 = vector.load %arg9[%c0_83, %c0_84] : memref<1x128xf32, #tpu.memory_space<vmem>>, vector<1x128xf32>
    %89 = vector.broadcast %88 : vector<1x128xf32> to vector<64x128xf32>
    %90 = arith.addf %87, %89 : vector<64x128xf32>
    %91 = arith.addf %90, %55 : vector<64x128xf32>
    %cst_85 = arith.constant 0.000000e+00 : f32
    %92 = vector.broadcast %cst_85 : f32 to vector<64x128xf32>
    %93 = arith.cmpf oge, %91, %92 : vector<64x128xf32>
    %94 = vector.broadcast %0 : f32 to vector<64x128xf32>
    %95 = arith.mulf %94, %91 : vector<64x128xf32>
    %96 = arith.select %93, %91, %95 : vector<64x128xi1>, vector<64x128xf32>
    %97 = arith.mulf %96, %96 : vector<64x128xf32>
    %cst_86 = arith.constant dense<0.000000e+00> : vector<64xf32>
    %98 = vector.multi_reduction <add>, %97, %cst_86 [1] : vector<64x128xf32> to vector<64xf32>
    %99 = vector.shape_cast %98 : vector<64xf32> to vector<64x1xf32>
    %cst_87 = arith.constant 1.000000e-24 : f32
    %100 = vector.broadcast %cst_87 : f32 to vector<64x1xf32>
    %101 = arith.maximumf %99, %100 : vector<64x1xf32>
    %102 = math.rsqrt %101 : vector<64x1xf32>
    %103 = vector.broadcast %102 : vector<64x1xf32> to vector<64x128xf32>
    %104 = arith.mulf %96, %103 : vector<64x128xf32>
    %105 = arith.truncf %104 : vector<64x128xf32> to vector<64x128xbf16>
    %c0_88 = arith.constant 0 : index
    %c0_89 = arith.constant 0 : index
    %106 = vector.load %arg10[%c0_88, %c0_89] : memref<128x128xbf16, #tpu.memory_space<vmem>>, vector<128x128xbf16>
    %cst_90 = arith.constant dense<0.000000e+00> : vector<64x128xf32>
    %107 = tpu.matmul %105, %106, %cst_90 {dimension_numbers = #tpu.dot_dimension_numbers<[1], [0], [0], [1], [0, 0, 1, 1], [], []>} : vector<64x128xbf16>, vector<128x128xbf16>, vector<64x128xf32> -> vector<64x128xf32>
    %c0_91 = arith.constant 0 : index
    %c0_92 = arith.constant 0 : index
    %108 = vector.load %arg11[%c0_91, %c0_92] : memref<1x128xf32, #tpu.memory_space<vmem>>, vector<1x128xf32>
    %109 = vector.broadcast %108 : vector<1x128xf32> to vector<64x128xf32>
    %110 = arith.addf %107, %109 : vector<64x128xf32>
    %cst_93 = arith.constant 0.000000e+00 : f32
    %111 = vector.broadcast %cst_93 : f32 to vector<64x128xf32>
    %112 = arith.maximumf %110, %111 : vector<64x128xf32>
    %113 = arith.truncf %112 : vector<64x128xf32> to vector<64x128xbf16>
    %c0_94 = arith.constant 0 : index
    %c0_95 = arith.constant 0 : index
    %114 = vector.load %arg12[%c0_94, %c0_95] : memref<128x128xbf16, #tpu.memory_space<vmem>>, vector<128x128xbf16>
    %cst_96 = arith.constant dense<0.000000e+00> : vector<64x128xf32>
    %115 = tpu.matmul %113, %114, %cst_96 {dimension_numbers = #tpu.dot_dimension_numbers<[1], [0], [0], [1], [0, 0, 1, 1], [], []>} : vector<64x128xbf16>, vector<128x128xbf16>, vector<64x128xf32> -> vector<64x128xf32>
    %c0_97 = arith.constant 0 : index
    %c0_98 = arith.constant 0 : index
    %116 = vector.load %arg13[%c0_97, %c0_98] : memref<1x128xf32, #tpu.memory_space<vmem>>, vector<1x128xf32>
    %117 = vector.broadcast %116 : vector<1x128xf32> to vector<64x128xf32>
    %118 = arith.addf %115, %117 : vector<64x128xf32>
    %c0_99 = arith.constant 0 : index
    %c0_100 = arith.constant 0 : index
    %119 = vector.load %arg2[%c0_99, %c0_100] : memref<4x64xbf16, #tpu.memory_space<vmem>>, vector<4x64xbf16>
    %120 = arith.truncf %118 : vector<64x128xf32> to vector<64x128xbf16>
    %cst_101 = arith.constant dense<0.000000e+00> : vector<4x128xf32>
    %121 = tpu.matmul %119, %120, %cst_101 {dimension_numbers = #tpu.dot_dimension_numbers<[1], [0], [0], [1], [0, 0, 1, 1], [], []>} : vector<4x64xbf16>, vector<64x128xbf16>, vector<4x128xf32> -> vector<4x128xf32>
    %122 = arith.truncf %121 : vector<4x128xf32> to vector<4x128xbf16>
    %c0_102 = arith.constant 0 : index
    %c0_103 = arith.constant 0 : index
    %123 = vector.load %arg14[%c0_102, %c0_103] : memref<128x64xbf16, #tpu.memory_space<vmem>>, vector<128x64xbf16>
    %cst_104 = arith.constant dense<0.000000e+00> : vector<4x64xf32>
    %124 = tpu.matmul %122, %123, %cst_104 {dimension_numbers = #tpu.dot_dimension_numbers<[1], [0], [0], [1], [0, 0, 1, 1], [], []>} : vector<4x128xbf16>, vector<128x64xbf16>, vector<4x64xf32> -> vector<4x64xf32>
    %c0_105 = arith.constant 0 : index
    %c0_106 = arith.constant 0 : index
    %125 = vector.load %arg15[%c0_105, %c0_106] : memref<1x64xf32, #tpu.memory_space<vmem>>, vector<1x64xf32>
    %126 = vector.broadcast %125 : vector<1x64xf32> to vector<4x64xf32>
    %127 = arith.addf %124, %126 : vector<4x64xf32>
    %cst_107 = arith.constant 0.000000e+00 : f32
    %128 = vector.broadcast %cst_107 : f32 to vector<4x64xf32>
    %129 = arith.maximumf %127, %128 : vector<4x64xf32>
    %130 = arith.truncf %129 : vector<4x64xf32> to vector<4x64xbf16>
    %c0_108 = arith.constant 0 : index
    %c0_109 = arith.constant 0 : index
    %131 = vector.load %arg16[%c0_108, %c0_109] : memref<64x1xbf16, #tpu.memory_space<vmem>>, vector<64x1xbf16>
    %cst_110 = arith.constant dense<0.000000e+00> : vector<4x1xf32>
    %132 = tpu.matmul %130, %131, %cst_110 {dimension_numbers = #tpu.dot_dimension_numbers<[1], [0], [0], [1], [0, 0, 1, 1], [], []>} : vector<4x64xbf16>, vector<64x1xbf16>, vector<4x1xf32> -> vector<4x1xf32>
    %c0_111 = arith.constant 0 : index
    %c0_112 = arith.constant 0 : index
    %133 = vector.load %arg17[%c0_111, %c0_112] : memref<1x1xf32, #tpu.memory_space<vmem>>, vector<1x1xf32>
    %134 = vector.broadcast %133 : vector<1x1xf32> to vector<4x1xf32>
    %135 = arith.addf %132, %134 : vector<4x1xf32>
    %cst_113 = arith.constant 0.000000e+00 : f32
    %136 = vector.broadcast %cst_113 : f32 to vector<4x1xf32>
    %137 = arith.maximumf %135, %136 : vector<4x1xf32>
    %c0_114 = arith.constant 0 : index
    %c0_115 = arith.constant 0 : index
    %138 = vector.load %arg18[%c0_114, %c0_115] : memref<4x1xf32, #tpu.memory_space<vmem>>, vector<4x1xf32>
    tpu.vector_store %arg18[%c0_114, %c0_115], %137 {strides = array<i32>} : memref<4x1xf32, #tpu.memory_space<vmem>>, vector<4x1xf32>,
    return
  }
}

</mosaic_0001>

<llo_original>
// kernel: rgcn_skip_forward.1
$region0: #{rgcn_skip_forward.1}
  #allocation0 [shape = 'u32[]', space=smem, size = 0x4, offset = 0x4, fixed_abs, tag = 'smem constant byte address 0x4 - core index']
  #allocation1 [shape = 'u32[144,128]{1,0:T(1,128)}', space=vmem, size = 0x12000, scoped, tag = 'internal scratch']
  #allocation2 [shape = 'bf16[448,128]{1,0:T(16,128)(2,1)}', space=vmem, size = 0x1c000, scoped, tag = 'scratch operand']
  #allocation3 [shape = 'f32[1,1]{1,0:T(1,128)S(6)}', space=smem, size = 0x200, scoped, tag = 'scoped memory for rgcn_skip_forward.1']
  #allocation4 [shape = 'f32[1,1]{1,0:T(1,128)S(1)}', space=vmem, size = 0x200, scoped, tag = 'scoped memory for rgcn_skip_forward.1']
  %s0 = inlined_call_operand.vmem [shape: bf16[64,128], index: 0, kind: input, shape index: {}]
  %s1 = inlined_call_operand.vmem [shape: bf16[64,448], index: 1, kind: input, shape index: {}]
  %s2 = inlined_call_operand.vmem [shape: bf16[4,64], index: 2, kind: input, shape index: {}]
  %s3 = inlined_call_operand.<no memory space> [shape: f32[1,1], index: 3, kind: input, shape index: {}]
  %s4 = inlined_call_operand.hbm [shape: bf16[128,128], index: 4, kind: input, shape index: {}]
  %s5 = inlined_call_operand.vmem [shape: f32[1,128], index: 5, kind: input, shape index: {}]
  %s6 = inlined_call_operand.hbm [shape: bf16[128,896], index: 6, kind: input, shape index: {}]
  %s7 = inlined_call_operand.vmem [shape: f32[1,128], index: 7, kind: input, shape index: {}]
  %s8 = inlined_call_operand.hbm [shape: bf16[128,896], index: 8, kind: input, shape index: {}]
  %s9 = inlined_call_operand.vmem [shape: f32[1,128], index: 9, kind: input, shape index: {}]
  %s10 = inlined_call_operand.hbm [shape: bf16[128,128], index: 10, kind: input, shape index: {}]
  %s11 = inlined_call_operand.vmem [shape: f32[1,128], index: 11, kind: input, shape index: {}]
  %s12 = inlined_call_operand.hbm [shape: bf16[128,128], index: 12, kind: input, shape index: {}]
  %s13 = inlined_call_operand.vmem [shape: f32[1,128], index: 13, kind: input, shape index: {}]
  %s14 = inlined_call_operand.vmem [shape: bf16[128,64], index: 14, kind: input, shape index: {}]
  %s15 = inlined_call_operand.vmem [shape: f32[1,64], index: 15, kind: input, shape index: {}]
  %s16 = inlined_call_operand.vmem [shape: bf16[64,1], index: 16, kind: input, shape index: {}]
  %s17 = inlined_call_operand.<no memory space> [shape: f32[1,1], index: 17, kind: input, shape index: {}]
  %s18 = inlined_call_operand.vmem [shape: f32[4,1], index: 18, kind: output, shape index: {}]
  %s19 = sld [smem:[#allocation0]]
  $region102: #{rgcn_skip_forward.1} parent=0
    _
  %s21 = ssub.s32 1, %s19
  %s22 = scalar_select 0, %s21, %s19
  %23 = sst [smem:[#allocation3]] %s3
  %v24 = vstv %s17
  %25 = vst [vmem:[#allocation4] sm:$0x1] %v24
  $region1: #{rgcn_skip_forward.1} parent=0
    #allocation5 [shape = 'u8[32768]{0}', space=vmem, size = 0x8000, scoped, tag = 'input window, operand 4, single buffered']
    #allocation6 [shape = 's32[1]{0}', space=sflag, size = 0x4, scoped, tag = 'scoped memory for rgcn_skip_forward.1']
    #allocation7 [shape = 'u8[229376]{0}', space=vmem, size = 0x38000, scoped, tag = 'input window, operand 6, single buffered']
    #allocation8 [shape = 's32[1]{0}', space=sflag, size = 0x4, scoped, tag = 'scoped memory for rgcn_skip_forward.1']
    #allocation9 [shape = 'u8[229376]{0}', space=vmem, size = 0x38000, scoped, tag = 'input window, operand 8, single buffered']
    #allocation10 [shape = 'u8[32768]{0}', space=vmem, size = 0x8000, scoped, tag = 'input window, operand 10, single buffered']
    #allocation11 [shape = 's32[1]{0}', space=sflag, size = 0x4, scoped, tag = 'scoped memory for rgcn_skip_forward.1']
    #allocation12 [shape = 'u8[32768]{0}', space=vmem, size = 0x8000, scoped, tag = 'input window, operand 12, single buffered']
    %26 = vsyncpa [#allocation6], 0
    %27 = vsyncpa [#allocation8], 0
    %28 = vsyncpa [#allocation11], 0
    // Predicated region
    $region2: #{rgcn_skip_forward.1} parent=1 // pred_check
      _
    $region3: #{rgcn_skip_forward.1} parent=1 // pred_check_branch
      %30 = sbr.rel (0) target = $region5
    $region4: #{rgcn_skip_forward.1} parent=1 // pred_region
      _
    $region5: #{rgcn_skip_forward.1} parent=1 // pred_fallthru
      _
    // Predicated region
    $region6: #{rgcn_skip_forward.1} parent=1 // pred_check
      _
    $region7: #{rgcn_skip_forward.1} parent=1 // pred_check_branch
      %32 = sbr.rel (0) target = $region9
    $region8: #{rgcn_skip_forward.1} parent=1 // pred_region
      _
    $region9: #{rgcn_skip_forward.1} parent=1 // pred_fallthru
      _
    // Predicated region
    $region10: #{rgcn_skip_forward.1} parent=1 // pred_check
      _
    $region11: #{rgcn_skip_forward.1} parent=1 // pred_check_branch
      %34 = sbr.rel (0) target = $region13
    $region12: #{rgcn_skip_forward.1} parent=1 // pred_region
      _
    $region13: #{rgcn_skip_forward.1} parent=1 // pred_fallthru
      _
    // Predicated region
    $region14: #{rgcn_skip_forward.1} parent=1 // pred_check
      _
    $region15: #{rgcn_skip_forward.1} parent=1 // pred_check_branch
      %36 = sbr.rel (0) target = $region17
    $region16: #{rgcn_skip_forward.1} parent=1 // pred_region
      _
    $region17: #{rgcn_skip_forward.1} parent=1 // pred_fallthru
      _
    // Predicated region
    $region18: #{rgcn_skip_forward.1} parent=1 // pred_check
      _
    $region19: #{rgcn_skip_forward.1} parent=1 // pred_check_branch
      %38 = sbr.rel (0) target = $region21
    $region20: #{rgcn_skip_forward.1} parent=1 // pred_region
      %s40 = ssub.s32 1024, 1024
      %41 = vsyncadd [#allocation6], %s40
      %s42 = sshll.u32 [#allocation5], 4
      %s43 = int_to_ptr.vmem [resolvable:$true] %s42
      %48 = dma.hbm_to_vmem [thread:$0]  %s4, 1024, %s43, [#allocation6], 64, 64, 4
    $region21: #{rgcn_skip_forward.1} parent=1 // pred_fallthru
      _
    // Predicated region
    $region22: #{rgcn_skip_forward.1} parent=1 // pred_check
      _
    $region23: #{rgcn_skip_forward.1} parent=1 // pred_check_branch
      %50 = sbr.rel (0) target = $region25
    $region24: #{rgcn_skip_forward.1} parent=1 // pred_region
      _
    $region25: #{rgcn_skip_forward.1} parent=1 // pred_fallthru
      _
    // Predicated region
    $region26: #{rgcn_skip_forward.1} parent=1 // pred_check
      _
    $region27: #{rgcn_skip_forward.1} parent=1 // pred_check_branch
      %52 = sbr.rel (0) target = $region29
    $region28: #{rgcn_skip_forward.1} parent=1 // pred_region
      %s54 = ssub.s32 7168, 7168
      %55 = vsyncadd [#allocation8], %s54
      %s56 = sshll.u32 [#allocation7], 4
      %s57 = int_to_ptr.vmem [resolvable:$true] %s56
      %62 = dma.hbm_to_vmem [thread:$0]  %s6, 7168, %s57, [#allocation8], 448, 448, 28
    $region29: #{rgcn_skip_forward.1} parent=1 // pred_fallthru
      _
    // Predicated region
    $region30: #{rgcn_skip_forward.1} parent=1 // pred_check
      _
    $region31: #{rgcn_skip_forward.1} parent=1 // pred_check_branch
      %64 = sbr.rel (0) target = $region33
    $region32: #{rgcn_skip_forward.1} parent=1 // pred_region
      _
    $region33: #{rgcn_skip_forward.1} parent=1 // pred_fallthru
      _
    // Predicated region
    $region34: #{rgcn_skip_forward.1} parent=1 // pred_check
      _
    $region35: #{rgcn_skip_forward.1} parent=1 // pred_check_branch
      %66 = sbr.rel (0) target = $region37
    $region36: #{rgcn_skip_forward.1} parent=1 // pred_region
      %s68 = ssub.s32 7168, 7168
      %69 = vsyncadd [#allocation8], %s68
      %s70 = sshll.u32 [#allocation9], 4
      %s71 = int_to_ptr.vmem [resolvable:$true] %s70
      %76 = dma.hbm_to_vmem [thread:$0]  %s8, 7168, %s71, [#allocation8], 448, 448, 28
    $region37: #{rgcn_skip_forward.1} parent=1 // pred_fallthru
      _
    // Predicated region
    $region38: #{rgcn_skip_forward.1} parent=1 // pred_check
      _
    $region39: #{rgcn_skip_forward.1} parent=1 // pred_check_branch
      %78 = sbr.rel (0) target = $region41
    $region40: #{rgcn_skip_forward.1} parent=1 // pred_region
      _
    $region41: #{rgcn_skip_forward.1} parent=1 // pred_fallthru
      _
    // Predicated region
    $region42: #{rgcn_skip_forward.1} parent=1 // pred_check
      _
    $region43: #{rgcn_skip_forward.1} parent=1 // pred_check_branch
      %80 = sbr.rel (0) target = $region45
    $region44: #{rgcn_skip_forward.1} parent=1 // pred_region
      %s82 = ssub.s32 1024, 1024
      %83 = vsyncadd [#allocation11], %s82
      %s84 = sshll.u32 [#allocation10], 4
      %s85 = int_to_ptr.vmem [resolvable:$true] %s84
      %90 = dma.hbm_to_vmem [thread:$0]  %s10, 1024, %s85, [#allocation11], 64, 64, 4
    $region45: #{rgcn_skip_forward.1} parent=1 // pred_fallthru
      _
    // Predicated region
    $region46: #{rgcn_skip_forward.1} parent=1 // pred_check
      _
    $region47: #{rgcn_skip_forward.1} parent=1 // pred_check_branch
      %92 = sbr.rel (0) target = $region49
    $region48: #{rgcn_skip_forward.1} parent=1 // pred_region
      _
    $region49: #{rgcn_skip_forward.1} parent=1 // pred_fallthru
      _
    // Predicated region
    $region50: #{rgcn_skip_forward.1} parent=1 // pred_check
      _
    $region51: #{rgcn_skip_forward.1} parent=1 // pred_check_branch
      %94 = sbr.rel (0) target = $region53
    $region52: #{rgcn_skip_forward.1} parent=1 // pred_region
      %s96 = ssub.s32 1024, 1024
      %97 = vsyncadd [#allocation11], %s96
      %s98 = sshll.u32 [#allocation12], 4
      %s99 = int_to_ptr.vmem [resolvable:$true] %s98
      %104 = dma.hbm_to_vmem [thread:$0]  %s12, 1024, %s99, [#allocation11], 64, 64, 4
    $region53: #{rgcn_skip_forward.1} parent=1 // pred_fallthru
      _
    // Predicated region
    $region54: #{rgcn_skip_forward.1} parent=1 // pred_check
      _
    $region55: #{rgcn_skip_forward.1} parent=1 // pred_check_branch
      %106 = sbr.rel (0) target = $region57
    $region56: #{rgcn_skip_forward.1} parent=1 // pred_region
      _
    $region57: #{rgcn_skip_forward.1} parent=1 // pred_fallthru
      _
    // Predicated region
    $region58: #{rgcn_skip_forward.1} parent=1 // pred_check
      _
    $region59: #{rgcn_skip_forward.1} parent=1 // pred_check_branch
      %108 = sbr.rel (0) target = $region61
    $region60: #{rgcn_skip_forward.1} parent=1 // pred_region
      _
    $region61: #{rgcn_skip_forward.1} parent=1 // pred_fallthru
      _
    // Predicated region
    $region62: #{rgcn_skip_forward.1} parent=1 // pred_check
      _
    $region63: #{rgcn_skip_forward.1} parent=1 // pred_check_branch
      %110 = sbr.rel (0) target = $region65
    $region64: #{rgcn_skip_forward.1} parent=1 // pred_region
      _
    $region65: #{rgcn_skip_forward.1} parent=1 // pred_fallthru
      _
    // Predicated region
    $region66: #{rgcn_skip_forward.1} parent=1 // pred_check
      _
    $region67: #{rgcn_skip_forward.1} parent=1 // pred_check_branch
      %112 = sbr.rel (0) target = $region69
    $region68: #{rgcn_skip_forward.1} parent=1 // pred_region
      _
    $region69: #{rgcn_skip_forward.1} parent=1 // pred_fallthru
      _
    // Predicated region
    $region70: #{rgcn_skip_forward.1} parent=1 // pred_check
      _
    $region71: #{rgcn_skip_forward.1} parent=1 // pred_check_branch
      %114 = sbr.rel (0) target = $region73
    $region72: #{rgcn_skip_forward.1} parent=1 // pred_region
      _
    $region73: #{rgcn_skip_forward.1} parent=1 // pred_fallthru
      _
    // Predicated region
    $region74: #{rgcn_skip_forward.1} parent=1 // pred_check
      _
    $region75: #{rgcn_skip_forward.1} parent=1 // pred_check_branch
      %116 = sbr.rel (0) target = $region77
    $region76: #{rgcn_skip_forward.1} parent=1 // pred_region
      %117 = dma.done [#allocation6], 1024
    $region77: #{rgcn_skip_forward.1} parent=1 // pred_fallthru
      _
    // Predicated region
    $region78: #{rgcn_skip_forward.1} parent=1 // pred_check
      _
    $region79: #{rgcn_skip_forward.1} parent=1 // pred_check_branch
      %119 = sbr.rel (0) target = $region81
    $region80: #{rgcn_skip_forward.1} parent=1 // pred_region
      %120 = dma.done [#allocation8], 7168
    $region81: #{rgcn_skip_forward.1} parent=1 // pred_fallthru
      _
    // Predicated region
    $region82: #{rgcn_skip_forward.1} parent=1 // pred_check
      _
    $region83: #{rgcn_skip_forward.1} parent=1 // pred_check_branch
      %122 = sbr.rel (0) target = $region85
    $region84: #{rgcn_skip_forward.1} parent=1 // pred_region
      %123 = dma.done [#allocation8], 7168
    $region85: #{rgcn_skip_forward.1} parent=1 // pred_fallthru
      _
    // Predicated region
    $region86: #{rgcn_skip_forward.1} parent=1 // pred_check
      _
    $region87: #{rgcn_skip_forward.1} parent=1 // pred_check_branch
      %125 = sbr.rel (0) target = $region89
    $region88: #{rgcn_skip_forward.1} parent=1 // pred_region
      %126 = dma.done [#allocation11], 1024
    $region89: #{rgcn_skip_forward.1} parent=1 // pred_fallthru
      _
    // Predicated region
    $region90: #{rgcn_skip_forward.1} parent=1 // pred_check
      _
    $region91: #{rgcn_skip_forward.1} parent=1 // pred_check_branch
      %128 = sbr.rel (0) target = $region93
    $region92: #{rgcn_skip_forward.1} parent=1 // pred_region
      %129 = dma.done [#allocation11], 1024
    $region93: #{rgcn_skip_forward.1} parent=1 // pred_fallthru
      _
    %s131 = sld [smem:[#allocation3]]
    %v132 = vld [vmem:[%s0] sm:$0xf]
    %v133 = vld [vmem:[%s0 + $0x4] sm:$0xf]
    %v134 = vld [vmem:[%s0 + $0x8] sm:$0xf]
    %v135 = vld [vmem:[%s0 + $0xc] sm:$0xf]
    %v136 = vld [vmem:[%s0 + $0x10] sm:$0xf]
    %v137 = vld [vmem:[%s0 + $0x14] sm:$0xf]
    %v138 = vld [vmem:[%s0 + $0x18] sm:$0xf]
    %v139 = vld [vmem:[%s0 + $0x1c] sm:$0xf]
    %v140 = vld [vmem:[#allocation5] sm:$0xf]
    %v141 = vld [vmem:[#allocation5 + $0x4] sm:$0xf]
    %v142 = vld [vmem:[#allocation5 + $0x8] sm:$0xf]
    %v143 = vld [vmem:[#allocation5 + $0xc] sm:$0xf]
    %v144 = vld [vmem:[#allocation5 + $0x10] sm:$0xf]
    %v145 = vld [vmem:[#allocation5 + $0x14] sm:$0xf]
    %v146 = vld [vmem:[#allocation5 + $0x18] sm:$0xf]
    %v147 = vld [vmem:[#allocation5 + $0x1c] sm:$0xf]
    %v148 = vld [vmem:[#allocation5 + $0x20] sm:$0xf]
    %v149 = vld [vmem:[#allocation5 + $0x24] sm:$0xf]
    %v150 = vld [vmem:[#allocation5 + $0x28] sm:$0xf]
    %v151 = vld [vmem:[#allocation5 + $0x2c] sm:$0xf]
    %v152 = vld [vmem:[#allocation5 + $0x30] sm:$0xf]
    %v153 = vld [vmem:[#allocation5 + $0x34] sm:$0xf]
    %v154 = vld [vmem:[#allocation5 + $0x38] sm:$0xf]
    %v155 = vld [vmem:[#allocation5 + $0x3c] sm:$0xf]
    %v156 = vld [vmem:[%s5] sm:$0x1]
    %v158 = vlaneseq
    %v159 = vshrl.u32 %v158, 7
    %v160 = vsub.s32 0, %v159
    %v161 = vrot.slane %v156, %v160
    %v171 = vunpack.c.l.b16 %v132
    %v172 = vunpack.c.l.b16 %v133
    %v173 = vunpack.c.l.b16 %v134
    %v174 = vunpack.c.l.b16 %v135
    %v175 = vunpack.c.l.b16 %v136
    %v176 = vunpack.c.l.b16 %v137
    %v177 = vunpack.c.l.b16 %v138
    %v178 = vunpack.c.l.b16 %v139
    %v179 = vpack.c.b16 %v172, %v171
    %v180 = vpack.c.b16 %v174, %v173
    %v181 = vpack.c.b16 %v176, %v175
    %v182 = vpack.c.b16 %v178, %v177
    %v203 = vunpack.c.l.b16 %v140
    %v204 = vunpack.c.l.b16 %v141
    %v205 = vunpack.c.l.b16 %v142
    %v206 = vunpack.c.l.b16 %v143
    %v207 = vunpack.c.l.b16 %v144
    %v208 = vunpack.c.l.b16 %v145
    %v209 = vunpack.c.l.b16 %v146
    %v210 = vunpack.c.l.b16 %v147
    %v211 = vunpack.c.l.b16 %v148
    %v212 = vunpack.c.l.b16 %v149
    %v213 = vunpack.c.l.b16 %v150
    %v214 = vunpack.c.l.b16 %v151
    %v215 = vunpack.c.l.b16 %v152
    %v216 = vunpack.c.l.b16 %v153
    %v217 = vunpack.c.l.b16 %v154
    %v218 = vunpack.c.l.b16 %v155
    %v219 = vpack.c.b16 %v204, %v203
    %v220 = vpack.c.b16 %v206, %v205
    %v221 = vpack.c.b16 %v208, %v207
    %v222 = vpack.c.b16 %v210, %v209
    %v223 = vpack.c.b16 %v212, %v211
    %v224 = vpack.c.b16 %v214, %v213
    %v225 = vpack.c.b16 %v216, %v215
    %v226 = vpack.c.b16 %v218, %v217
    %235 = vmatprep.subr.bf16.mxu0 0
    %236 = vmatpush1.bf16.msra.mxu0 %v219
    %237 = vmatprep.subr.bf16.mxu0 0
    %238 = vmatpush1.bf16.msra.mxu0 %v220
    %239 = vmatprep.subr.bf16.mxu0 0
    %240 = vmatpush1.bf16.msra.mxu0 %v221
    %241 = vmatprep.subr.bf16.mxu0 0
    %242 = vmatpush1.bf16.msra.mxu0 %v222
    %243 = vmatprep.subr.bf16.mxu0 0
    %244 = vmatpush1.bf16.msra.mxu0 %v223
    %245 = vmatprep.subr.bf16.mxu0 0
    %246 = vmatpush1.bf16.msra.mxu0 %v224
    %247 = vmatprep.subr.bf16.mxu0 0
    %248 = vmatpush1.bf16.msra.mxu0 %v225
    %249 = vmatprep.subr.bf16.mxu0 0
    %250 = vmatpush1.bf16.msra.mxu0 %v226
    %251 = vmatprep.subr.bf16.mxu0 0
    %252 = vmatpush1.bf16.msra.mxu0 0
    %253 = vmatprep.subr.bf16.mxu0 0
    %254 = vmatpush1.bf16.msra.mxu0 0
    %255 = vmatprep.subr.bf16.mxu0 0
    %256 = vmatpush1.bf16.msra.mxu0 0
    %257 = vmatprep.subr.bf16.mxu0 0
    %258 = vmatpush1.bf16.msra.mxu0 0
    %259 = vmatprep.subr.bf16.mxu0 0
    %260 = vmatpush1.bf16.msra.mxu0 0
    %261 = vmatprep.subr.bf16.mxu0 0
    %262 = vmatpush1.bf16.msra.mxu0 0
    %263 = vmatprep.subr.bf16.mxu0 0
    %264 = vmatpush1.bf16.msra.mxu0 0
    %265 = vmatprep.subr.bf16.mxu0 0
    %266 = vmatpush1.bf16.msra.mxu0 0
    %267 = vmatprep.mubr.bf16.mxu0 0
    %268 = vmatmul.mubr.bf16.gmra.mrb[0].mxu0 %v179
    %v269 = vpop.f32.mrb[0].mxu0
    %v270 = vadd.f32 %v161, %v269
    %v271 = vpop.f32.mrb[0].mxu0
    %v272 = vpop.f32.mrb[0].mxu0
    %v273 = vadd.f32 %v161, %v272
    %v274 = vpop.f32.mrb[0].mxu0
    %275 = vmatprep.mubr.bf16.mxu0 0
    %276 = vmatmul.mubr.bf16.gmra.mrb[0].mxu0 %v180
    %v277 = vpop.f32.mrb[0].mxu0
    %v278 = vadd.f32 %v161, %v277
    %v279 = vpop.f32.mrb[0].mxu0
    %v280 = vpop.f32.mrb[0].mxu0
    %v281 = vadd.f32 %v161, %v280
    %v282 = vpop.f32.mrb[0].mxu0
    %283 = vmatprep.mubr.bf16.mxu0 0
    %284 = vmatmul.mubr.bf16.gmra.mrb[0].mxu0 %v181
    %v285 = vpop.f32.mrb[0].mxu0
    %v286 = vadd.f32 %v161, %v285
    %v287 = vpop.f32.mrb[0].mxu0
    %v288 = vpop.f32.mrb[0].mxu0
    %v289 = vadd.f32 %v161, %v288
    %v290 = vpop.f32.mrb[0].mxu0
    %291 = vmatprep.mubr.bf16.mxu0 0
    %292 = vmatmul.mubr.bf16.gmra.mrb[0].mxu0 %v182
    %v293 = vpop.f32.mrb[0].mxu0
    %v294 = vadd.f32 %v161, %v293
    %v295 = vpop.f32.mrb[0].mxu0
    %v296 = vpop.f32.mrb[0].mxu0
    %v297 = vadd.f32 %v161, %v296
    %v298 = vpop.f32.mrb[0].mxu0
    %299 = vdwg.mxu0
    %v300 = vpack.c.bf16 %v273, %v270
    %v301 = vpack.c.bf16 %v281, %v278
    %v302 = vpack.c.bf16 %v289, %v286
    %v303 = vpack.c.bf16 %v297, %v294
    %v304 = vld [vmem:[#allocation7] sm:$0xf]
    %v305 = vld [vmem:[#allocation7 + $0x1c] sm:$0xf]
    %v306 = vld [vmem:[#allocation7 + $0x38] sm:$0xf]
    %v307 = vld [vmem:[#allocation7 + $0x54] sm:$0xf]
    %v308 = vld [vmem:[#allocation7 + $0x70] sm:$0xf]
    %v309 = vld [vmem:[#allocation7 + $0x8c] sm:$0xf]
    %v310 = vld [vmem:[#allocation7 + $0xa8] sm:$0xf]
    %v311 = vld [vmem:[#allocation7 + $0xc4] sm:$0xf]
    %v312 = vld [vmem:[#allocation7 + $0xe0] sm:$0xf]
    %v313 = vld [vmem:[#allocation7 + $0xfc] sm:$0xf]
    %v314 = vld [vmem:[#allocation7 + $0x118] sm:$0xf]
    %v315 = vld [vmem:[#allocation7 + $0x134] sm:$0xf]
    %v316 = vld [vmem:[#allocation7 + $0x150] sm:$0xf]
    %v317 = vld [vmem:[#allocation7 + $0x16c] sm:$0xf]
    %v318 = vld [vmem:[#allocation7 + $0x188] sm:$0xf]
    %v319 = vld [vmem:[#allocation7 + $0x1a4] sm:$0xf]
    %v336 = vunpack.c.l.b16 %v304
    %v337 = vunpack.c.l.b16 %v305
    %v338 = vunpack.c.l.b16 %v306
    %v339 = vunpack.c.l.b16 %v307
    %v340 = vunpack.c.l.b16 %v308
    %v341 = vunpack.c.l.b16 %v309
    %v342 = vunpack.c.l.b16 %v310
    %v343 = vunpack.c.l.b16 %v311
    %v344 = vunpack.c.l.b16 %v312
    %v345 = vunpack.c.l.b16 %v313
    %v346 = vunpack.c.l.b16 %v314
    %v347 = vunpack.c.l.b16 %v315
    %v348 = vunpack.c.l.b16 %v316
    %v349 = vunpack.c.l.b16 %v317
    %v350 = vunpack.c.l.b16 %v318
    %v351 = vunpack.c.l.b16 %v319
    %v352 = vpack.c.b16 %v337, %v336
    %v353 = vpack.c.b16 %v339, %v338
    %v354 = vpack.c.b16 %v341, %v340
    %v355 = vpack.c.b16 %v343, %v342
    %v356 = vpack.c.b16 %v345, %v344
    %v357 = vpack.c.b16 %v347, %v346
    %v358 = vpack.c.b16 %v349, %v348
    %v359 = vpack.c.b16 %v351, %v350
    %368 = vmatprep.subr.bf16.mxu0 0
    %369 = vmatpush1.bf16.msra.mxu0 %v352
    %370 = vmatprep.subr.bf16.mxu0 0
    %371 = vmatpush1.bf16.msra.mxu0 %v353
    %372 = vmatprep.subr.bf16.mxu0 0
    %373 = vmatpush1.bf16.msra.mxu0 %v354
    %374 = vmatprep.subr.bf16.mxu0 0
    %375 = vmatpush1.bf16.msra.mxu0 %v355
    %376 = vmatprep.subr.bf16.mxu0 0
    %377 = vmatpush1.bf16.msra.mxu0 %v356
    %378 = vmatprep.subr.bf16.mxu0 0
    %379 = vmatpush1.bf16.msra.mxu0 %v357
    %380 = vmatprep.subr.bf16.mxu0 0
    %381 = vmatpush1.bf16.msra.mxu0 %v358
    %382 = vmatprep.subr.bf16.mxu0 0
    %383 = vmatpush1.bf16.msra.mxu0 %v359
    %384 = vmatprep.subr.bf16.mxu0 0
    %385 = vmatpush1.bf16.msra.mxu0 0
    %386 = vmatprep.subr.bf16.mxu0 0
    %387 = vmatpush1.bf16.msra.mxu0 0
    %388 = vmatprep.subr.bf16.mxu0 0
    %389 = vmatpush1.bf16.msra.mxu0 0
    %390 = vmatprep.subr.bf16.mxu0 0
    %391 = vmatpush1.bf16.msra.mxu0 0
    %392 = vmatprep.subr.bf16.mxu0 0
    %393 = vmatpush1.bf16.msra.mxu0 0
    %394 = vmatprep.subr.bf16.mxu0 0
    %395 = vmatpush1.bf16.msra.mxu0 0
    %396 = vmatprep.subr.bf16.mxu0 0
    %397 = vmatpush1.bf16.msra.mxu0 0
    %398 = vmatprep.subr.bf16.mxu0 0
    %399 = vmatpush1.bf16.msra.mxu0 0
    %400 = vmatprep.mubr.bf16.mxu0 0
    %401 = vmatmul.mubr.bf16.gmra.mrb[0].mxu0 %v300
    %v402 = vpop.f32.mrb[0].mxu0
    %v403 = vadd.f32 0.0, %v402
    %v404 = vpop.f32.mrb[0].mxu0
    %v405 = vpop.f32.mrb[0].mxu0
    %v406 = vadd.f32 0.0, %v405
    %v407 = vpop.f32.mrb[0].mxu0
    %408 = vmatprep.mubr.bf16.mxu0 0
    %409 = vmatmul.mubr.bf16.gmra.mrb[0].mxu0 %v301
    %v410 = vpop.f32.mrb[0].mxu0
    %v411 = vadd.f32 0.0, %v410
    %v412 = vpop.f32.mrb[0].mxu0
    %v413 = vpop.f32.mrb[0].mxu0
    %v414 = vadd.f32 0.0, %v413
    %v415 = vpop.f32.mrb[0].mxu0
    %416 = vmatprep.mubr.bf16.mxu0 0
    %417 = vmatmul.mubr.bf16.gmra.mrb[0].mxu0 %v302
    %v418 = vpop.f32.mrb[0].mxu0
    %v419 = vadd.f32 0.0, %v418
    %v420 = vpop.f32.mrb[0].mxu0
    %v421 = vpop.f32.mrb[0].mxu0
    %v422 = vadd.f32 0.0, %v421
    %v423 = vpop.f32.mrb[0].mxu0
    %424 = vmatprep.mubr.bf16.mxu0 0
    %425 = vmatmul.mubr.bf16.gmra.mrb[0].mxu0 %v303
    %v426 = vpop.f32.mrb[0].mxu0
    %v427 = vadd.f32 0.0, %v426
    %v428 = vpop.f32.mrb[0].mxu0
    %v429 = vpop.f32.mrb[0].mxu0
    %v430 = vadd.f32 0.0, %v429
    %v431 = vpop.f32.mrb[0].mxu0
    %432 = vdwg.mxu0
    %v433 = vpack.c.bf16 %v406, %v403
    %v434 = vpack.c.bf16 %v414, %v411
    %v435 = vpack.c.bf16 %v422, %v419
    %v436 = vpack.c.bf16 %v430, %v427
    %437 = vst [vmem:[#allocation2] sm:$0xff] %v433
    %438 = vst [vmem:[#allocation2 + $0x8] sm:$0xff] %v434
    %439 = vst [vmem:[#allocation2 + $0x10] sm:$0xff] %v435
    %440 = vst [vmem:[#allocation2 + $0x18] sm:$0xff] %v436
    %v441 = vld [vmem:[#allocation7 + $0x4] sm:$0xf]
    %v442 = vld [vmem:[#allocation7 + $0x20] sm:$0xf]
    %v443 = vld [vmem:[#allocation7 + $0x3c] sm:$0xf]
    %v444 = vld [vmem:[#allocation7 + $0x58] sm:$0xf]
    %v445 = vld [vmem:[#allocation7 + $0x74] sm:$0xf]
    %v446 = vld [vmem:[#allocation7 + $0x90] sm:$0xf]
    %v447 = vld [vmem:[#allocation7 + $0xac] sm:$0xf]
    %v448 = vld [vmem:[#allocation7 + $0xc8] sm:$0xf]
    %v449 = vld [vmem:[#allocation7 + $0xe4] sm:$0xf]
    %v450 = vld [vmem:[#allocation7 + $0x100] sm:$0xf]
    %v451 = vld [vmem:[#allocation7 + $0x11c] sm:$0xf]
    %v452 = vld [vmem:[#allocation7 + $0x138] sm:$0xf]
    %v453 = vld [vmem:[#allocation7 + $0x154] sm:$0xf]
    %v454 = vld [vmem:[#allocation7 + $0x170] sm:$0xf]
    %v455 = vld [vmem:[#allocation7 + $0x18c] sm:$0xf]
    %v456 = vld [vmem:[#allocation7 + $0x1a8] sm:$0xf]
    %v473 = vunpack.c.l.b16 %v441
    %v474 = vunpack.c.l.b16 %v442
    %v475 = vunpack.c.l.b16 %v443
    %v476 = vunpack.c.l.b16 %v444
    %v477 = vunpack.c.l.b16 %v445
    %v478 = vunpack.c.l.b16 %v446
    %v479 = vunpack.c.l.b16 %v447
    %v480 = vunpack.c.l.b16 %v448
    %v481 = vunpack.c.l.b16 %v449
    %v482 = vunpack.c.l.b16 %v450
    %v483 = vunpack.c.l.b16 %v451
    %v484 = vunpack.c.l.b16 %v452
    %v485 = vunpack.c.l.b16 %v453
    %v486 = vunpack.c.l.b16 %v454
    %v487 = vunpack.c.l.b16 %v455
    %v488 = vunpack.c.l.b16 %v456
    %v489 = vpack.c.b16 %v474, %v473
    %v490 = vpack.c.b16 %v476, %v475
    %v491 = vpack.c.b16 %v478, %v477
    %v492 = vpack.c.b16 %v480, %v479
    %v493 = vpack.c.b16 %v482, %v481
    %v494 = vpack.c.b16 %v484, %v483
    %v495 = vpack.c.b16 %v486, %v485
    %v496 = vpack.c.b16 %v488, %v487
    %505 = vmatprep.subr.bf16.mxu0 0
    %506 = vmatpush1.bf16.msra.mxu0 %v489
    %507 = vmatprep.subr.bf16.mxu0 0
    %508 = vmatpush1.bf16.msra.mxu0 %v490
    %509 = vmatprep.subr.bf16.mxu0 0
    %510 = vmatpush1.bf16.msra.mxu0 %v491
    %511 = vmatprep.subr.bf16.mxu0 0
    %512 = vmatpush1.bf16.msra.mxu0 %v492
    %513 = vmatprep.subr.bf16.mxu0 0
    %514 = vmatpush1.bf16.msra.mxu0 %v493
    %515 = vmatprep.subr.bf16.mxu0 0
    %516 = vmatpush1.bf16.msra.mxu0 %v494
    %517 = vmatprep.subr.bf16.mxu0 0
    %518 = vmatpush1.bf16.msra.mxu0 %v495
    %519 = vmatprep.subr.bf16.mxu0 0
    %520 = vmatpush1.bf16.msra.mxu0 %v496
    %521 = vmatprep.subr.bf16.mxu0 0
    %522 = vmatpush1.bf16.msra.mxu0 0
    %523 = vmatprep.subr.bf16.mxu0 0
    %524 = vmatpush1.bf16.msra.mxu0 0
    %525 = vmatprep.subr.bf16.mxu0 0
    %526 = vmatpush1.bf16.msra.mxu0 0
    %527 = vmatprep.subr.bf16.mxu0 0
    %528 = vmatpush1.bf16.msra.mxu0 0
    %529 = vmatprep.subr.bf16.mxu0 0
    %530 = vmatpush1.bf16.msra.mxu0 0
    %531 = vmatprep.subr.bf16.mxu0 0
    %532 = vmatpush1.bf16.msra.mxu0 0
    %533 = vmatprep.subr.bf16.mxu0 0
    %534 = vmatpush1.bf16.msra.mxu0 0
    %535 = vmatprep.subr.bf16.mxu0 0
    %536 = vmatpush1.bf16.msra.mxu0 0
    %537 = vmatprep.mubr.bf16.mxu0 0
    %538 = vmatmul.mubr.bf16.gmra.mrb[0].mxu0 %v300
    %v539 = vpop.f32.mrb[0].mxu0
    %v540 = vadd.f32 0.0, %v539
    %v541 = vpop.f32.mrb[0].mxu0
    %v542 = vpop.f32.mrb[0].mxu0
    %v543 = vadd.f32 0.0, %v542
    %v544 = vpop.f32.mrb[0].mxu0
    %545 = vmatprep.mubr.bf16.mxu0 0
    %546 = vmatmul.mubr.bf16.gmra.mrb[0].mxu0 %v301
    %v547 = vpop.f32.mrb[0].mxu0
    %v548 = vadd.f32 0.0, %v547
    %v549 = vpop.f32.mrb[0].mxu0
    %v550 = vpop.f32.mrb[0].mxu0
    %v551 = vadd.f32 0.0, %v550
    %v552 = vpop.f32.mrb[0].mxu0
    %553 = vmatprep.mubr.bf16.mxu0 0
    %554 = vmatmul.mubr.bf16.gmra.mrb[0].mxu0 %v302
    %v555 = vpop.f32.mrb[0].mxu0
    %v556 = vadd.f32 0.0, %v555
    %v557 = vpop.f32.mrb[0].mxu0
    %v558 = vpop.f32.mrb[0].mxu0
    %v559 = vadd.f32 0.0, %v558
    %v560 = vpop.f32.mrb[0].mxu0
    %561 = vmatprep.mubr.bf16.mxu0 0
    %562 = vmatmul.mubr.bf16.gmra.mrb[0].mxu0 %v303
    %v563 = vpop.f32.mrb[0].mxu0
    %v564 = vadd.f32 0.0, %v563
    %v565 = vpop.f32.mrb[0].mxu0
    %v566 = vpop.f32.mrb[0].mxu0
    %v567 = vadd.f32 0.0, %v566
    %v568 = vpop.f32.mrb[0].mxu0
    %569 = vdwg.mxu0
    %v570 = vpack.c.bf16 %v543, %v540
    %v571 = vpack.c.bf16 %v551, %v548
    %v572 = vpack.c.bf16 %v559, %v556
    %v573 = vpack.c.bf16 %v567, %v564
    %574 = vst [vmem:[#allocation2 + $0x20] sm:$0xff] %v570
    %575 = vst [vmem:[#allocation2 + $0x28] sm:$0xff] %v571
    %576 = vst [vmem:[#allocation2 + $0x30] sm:$0xff] %v572
    %577 = vst [vmem:[#allocation2 + $0x38] sm:$0xff] %v573
    %v578 = vld [vmem:[#allocation7 + $0x8] sm:$0xf]
    %v579 = vld [vmem:[#allocation7 + $0x24] sm:$0xf]
    %v580 = vld [vmem:[#allocation7 + $0x40] sm:$0xf]
    %v581 = vld [vmem:[#allocation7 + $0x5c] sm:$0xf]
    %v582 = vld [vmem:[#allocation7 + $0x78] sm:$0xf]
    %v583 = vld [vmem:[#allocation7 + $0x94] sm:$0xf]
    %v584 = vld [vmem:[#allocation7 + $0xb0] sm:$0xf]
    %v585 = vld [vmem:[#allocation7 + $0xcc] sm:$0xf]
    %v586 = vld [vmem:[#allocation7 + $0xe8] sm:$0xf]
    %v587 = vld [vmem:[#allocation7 + $0x104] sm:$0xf]
    %v588 = vld [vmem:[#allocation7 + $0x120] sm:$0xf]
    %v589 = vld [vmem:[#allocation7 + $0x13c] sm:$0xf]
    %v590 = vld [vmem:[#allocation7 + $0x158] sm:$0xf]
    %v591 = vld [vmem:[#allocation7 + $0x174] sm:$0xf]
    %v592 = vld [vmem:[#allocation7 + $0x190] sm:$0xf]
    %v593 = vld [vmem:[#allocation7 + $0x1ac] sm:$0xf]
    %v610 = vunpack.c.l.b16 %v578
    %v611 = vunpack.c.l.b16 %v579
    %v612 = vunpack.c.l.b16 %v580
    %v613 = vunpack.c.l.b16 %v581
    %v614 = vunpack.c.l.b16 %v582
    %v615 = vunpack.c.l.b16 %v583
    %v616 = vunpack.c.l.b16 %v584
    %v617 = vunpack.c.l.b16 %v585
    %v618 = vunpack.c.l.b16 %v586
    %v619 = vunpack.c.l.b16 %v587
    %v620 = vunpack.c.l.b16 %v588
    %v621 = vunpack.c.l.b16 %v589
    %v622 = vunpack.c.l.b16 %v590
    %v623 = vunpack.c.l.b16 %v591
    %v624 = vunpack.c.l.b16 %v592
    %v625 = vunpack.c.l.b16 %v593
    %v626 = vpack.c.b16 %v611, %v610
    %v627 = vpack.c.b16 %v613, %v612
    %v628 = vpack.c.b16 %v615, %v614
    %v629 = vpack.c.b16 %v617, %v616
    %v630 = vpack.c.b16 %v619, %v618
    %v631 = vpack.c.b16 %v621, %v620
    %v632 = vpack.c.b16 %v623, %v622
    %v633 = vpack.c.b16 %v625, %v624
    %642 = vmatprep.subr.bf16.mxu0 0
    %643 = vmatpush1.bf16.msra.mxu0 %v626
    %644 = vmatprep.subr.bf16.mxu0 0
    %645 = vmatpush1.bf16.msra.mxu0 %v627
    %646 = vmatprep.subr.bf16.mxu0 0
    %647 = vmatpush1.bf16.msra.mxu0 %v628
    %648 = vmatprep.subr.bf16.mxu0 0
    %649 = vmatpush1.bf16.msra.mxu0 %v629
    %650 = vmatprep.subr.bf16.mxu0 0
    %651 = vmatpush1.bf16.msra.mxu0 %v630
    %652 = vmatprep.subr.bf16.mxu0 0
    %653 = vmatpush1.bf16.msra.mxu0 %v631
    %654 = vmatprep.subr.bf16.mxu0 0
    %655 = vmatpush1.bf16.msra.mxu0 %v632
    %656 = vmatprep.subr.bf16.mxu0 0
    %657 = vmatpush1.bf16.msra.mxu0 %v633
    %658 = vmatprep.subr.bf16.mxu0 0
    %659 = vmatpush1.bf16.msra.mxu0 0
    %660 = vmatprep.subr.bf16.mxu0 0
    %661 = vmatpush1.bf16.msra.mxu0 0
    %662 = vmatprep.subr.bf16.mxu0 0
    %663 = vmatpush1.bf16.msra.mxu0 0
    %664 = vmatprep.subr.bf16.mxu0 0
    %665 = vmatpush1.bf16.msra.mxu0 0
    %666 = vmatprep.subr.bf16.mxu0 0
    %667 = vmatpush1.bf16.msra.mxu0 0
    %668 = vmatprep.subr.bf16.mxu0 0
    %669 = vmatpush1.bf16.msra.mxu0 0
    %670 = vmatprep.subr.bf16.mxu0 0
    %671 = vmatpush1.bf16.msra.mxu0 0
    %672 = vmatprep.subr.bf16.mxu0 0
    %673 = vmatpush1.bf16.msra.mxu0 0
    %674 = vmatprep.mubr.bf16.mxu0 0
    %675 = vmatmul.mubr.bf16.gmra.mrb[0].mxu0 %v300
    %v676 = vpop.f32.mrb[0].mxu0
    %v677 = vadd.f32 0.0, %v676
    %v678 = vpop.f32.mrb[0].mxu0
    %v679 = vpop.f32.mrb[0].mxu0
    %v680 = vadd.f32 0.0, %v679
    %v681 = vpop.f32.mrb[0].mxu0
    %682 = vmatprep.mubr.bf16.mxu0 0
    %683 = vmatmul.mubr.bf16.gmra.mrb[0].mxu0 %v301
    %v684 = vpop.f32.mrb[0].mxu0
    %v685 = vadd.f32 0.0, %v684
    %v686 = vpop.f32.mrb[0].mxu0
    %v687 = vpop.f32.mrb[0].mxu0
    %v688 = vadd.f32 0.0, %v687
    %v689 = vpop.f32.mrb[0].mxu0
    %690 = vmatprep.mubr.bf16.mxu0 0
    %691 = vmatmul.mubr.bf16.gmra.mrb[0].mxu0 %v302
    %v692 = vpop.f32.mrb[0].mxu0
    %v693 = vadd.f32 0.0, %v692
    %v694 = vpop.f32.mrb[0].mxu0
    %v695 = vpop.f32.mrb[0].mxu0
    %v696 = vadd.f32 0.0, %v695
    %v697 = vpop.f32.mrb[0].mxu0
    %698 = vmatprep.mubr.bf16.mxu0 0
    %699 = vmatmul.mubr.bf16.gmra.mrb[0].mxu0 %v303
    %v700 = vpop.f32.mrb[0].mxu0
    %v701 = vadd.f32 0.0, %v700
    %v702 = vpop.f32.mrb[0].mxu0
    %v703 = vpop.f32.mrb[0].mxu0
    %v704 = vadd.f32 0.0, %v703
    %v705 = vpop.f32.mrb[0].mxu0
    %706 = vdwg.mxu0
    %v707 = vpack.c.bf16 %v680, %v677
    %v708 = vpack.c.bf16 %v688, %v685
    %v709 = vpack.c.bf16 %v696, %v693
    %v710 = vpack.c.bf16 %v704, %v701
    %711 = vst [vmem:[#allocation2 + $0x40] sm:$0xff] %v707
    %712 = vst [vmem:[#allocation2 + $0x48] sm:$0xff] %v708
    %713 = vst [vmem:[#allocation2 + $0x50] sm:$0xff] %v709
    %714 = vst [vmem:[#allocation2 + $0x58] sm:$0xff] %v710
    %v715 = vld [vmem:[#allocation7 + $0xc] sm:$0xf]
    %v716 = vld [vmem:[#allocation7 + $0x28] sm:$0xf]
    %v717 = vld [vmem:[#allocation7 + $0x44] sm:$0xf]
    %v718 = vld [vmem:[#allocation7 + $0x60] sm:$0xf]
    %v719 = vld [vmem:[#allocation7 + $0x7c] sm:$0xf]
    %v720 = vld [vmem:[#allocation7 + $0x98] sm:$0xf]
    %v721 = vld [vmem:[#allocation7 + $0xb4] sm:$0xf]
    %v722 = vld [vmem:[#allocation7 + $0xd0] sm:$0xf]
    %v723 = vld [vmem:[#allocation7 + $0xec] sm:$0xf]
    %v724 = vld [vmem:[#allocation7 + $0x108] sm:$0xf]
    %v725 = vld [vmem:[#allocation7 + $0x124] sm:$0xf]
    %v726 = vld [vmem:[#allocation7 + $0x140] sm:$0xf]
    %v727 = vld [vmem:[#allocation7 + $0x15c] sm:$0xf]
    %v728 = vld [vmem:[#allocation7 + $0x178] sm:$0xf]
    %v729 = vld [vmem:[#allocation7 + $0x194] sm:$0xf]
    %v730 = vld [vmem:[#allocation7 + $0x1b0] sm:$0xf]
    %v747 = vunpack.c.l.b16 %v715
    %v748 = vunpack.c.l.b16 %v716
    %v749 = vunpack.c.l.b16 %v717
    %v750 = vunpack.c.l.b16 %v718
    %v751 = vunpack.c.l.b16 %v719
    %v752 = vunpack.c.l.b16 %v720
    %v753 = vunpack.c.l.b16 %v721
    %v754 = vunpack.c.l.b16 %v722
    %v755 = vunpack.c.l.b16 %v723
    %v756 = vunpack.c.l.b16 %v724
    %v757 = vunpack.c.l.b16 %v725
    %v758 = vunpack.c.l.b16 %v726
    %v759 = vunpack.c.l.b16 %v727
    %v760 = vunpack.c.l.b16 %v728
    %v761 = vunpack.c.l.b16 %v729
    %v762 = vunpack.c.l.b16 %v730
    %v763 = vpack.c.b16 %v748, %v747
    %v764 = vpack.c.b16 %v750, %v749
    %v765 = vpack.c.b16 %v752, %v751
    %v766 = vpack.c.b16 %v754, %v753
    %v767 = vpack.c.b16 %v756, %v755
    %v768 = vpack.c.b16 %v758, %v757
    %v769 = vpack.c.b16 %v760, %v759
    %v770 = vpack.c.b16 %v762, %v761
    %779 = vmatprep.subr.bf16.mxu0 0
    %780 = vmatpush1.bf16.msra.mxu0 %v763
    %781 = vmatprep.subr.bf16.mxu0 0
    %782 = vmatpush1.bf16.msra.mxu0 %v764
    %783 = vmatprep.subr.bf16.mxu0 0
    %784 = vmatpush1.bf16.msra.mxu0 %v765
    %785 = vmatprep.subr.bf16.mxu0 0
    %786 = vmatpush1.bf16.msra.mxu0 %v766
    %787 = vmatprep.subr.bf16.mxu0 0
    %788 = vmatpush1.bf16.msra.mxu0 %v767
    %789 = vmatprep.subr.bf16.mxu0 0
    %790 = vmatpush1.bf16.msra.mxu0 %v768
    %791 = vmatprep.subr.bf16.mxu0 0
    %792 = vmatpush1.bf16.msra.mxu0 %v769
    %793 = vmatprep.subr.bf16.mxu0 0
    %794 = vmatpush1.bf16.msra.mxu0 %v770
    %795 = vmatprep.subr.bf16.mxu0 0
    %796 = vmatpush1.bf16.msra.mxu0 0
    %797 = vmatprep.subr.bf16.mxu0 0
    %798 = vmatpush1.bf16.msra.mxu0 0
    %799 = vmatprep.subr.bf16.mxu0 0
    %800 = vmatpush1.bf16.msra.mxu0 0
    %801 = vmatprep.subr.bf16.mxu0 0
    %802 = vmatpush1.bf16.msra.mxu0 0
    %803 = vmatprep.subr.bf16.mxu0 0
    %804 = vmatpush1.bf16.msra.mxu0 0
    %805 = vmatprep.subr.bf16.mxu0 0
    %806 = vmatpush1.bf16.msra.mxu0 0
    %807 = vmatprep.subr.bf16.mxu0 0
    %808 = vmatpush1.bf16.msra.mxu0 0
    %809 = vmatprep.subr.bf16.mxu0 0
    %810 = vmatpush1.bf16.msra.mxu0 0
    %811 = vmatprep.mubr.bf16.mxu0 0
    %812 = vmatmul.mubr.bf16.gmra.mrb[0].mxu0 %v300
    %v813 = vpop.f32.mrb[0].mxu0
    %v814 = vadd.f32 0.0, %v813
    %v815 = vpop.f32.mrb[0].mxu0
    %v816 = vpop.f32.mrb[0].mxu0
    %v817 = vadd.f32 0.0, %v816
    %v818 = vpop.f32.mrb[0].mxu0
    %819 = vmatprep.mubr.bf16.mxu0 0
    %820 = vmatmul.mubr.bf16.gmra.mrb[0].mxu0 %v301
    %v821 = vpop.f32.mrb[0].mxu0
    %v822 = vadd.f32 0.0, %v821
    %v823 = vpop.f32.mrb[0].mxu0
    %v824 = vpop.f32.mrb[0].mxu0
    %v825 = vadd.f32 0.0, %v824
    %v826 = vpop.f32.mrb[0].mxu0
    %827 = vmatprep.mubr.bf16.mxu0 0
    %828 = vmatmul.mubr.bf16.gmra.mrb[0].mxu0 %v302
    %v829 = vpop.f32.mrb[0].mxu0
    %v830 = vadd.f32 0.0, %v829
    %v831 = vpop.f32.mrb[0].mxu0
    %v832 = vpop.f32.mrb[0].mxu0
    %v833 = vadd.f32 0.0, %v832
    %v834 = vpop.f32.mrb[0].mxu0
    %835 = vmatprep.mubr.bf16.mxu0 0
    %836 = vmatmul.mubr.bf16.gmra.mrb[0].mxu0 %v303
    %v837 = vpop.f32.mrb[0].mxu0
    %v838 = vadd.f32 0.0, %v837
    %v839 = vpop.f32.mrb[0].mxu0
    %v840 = vpop.f32.mrb[0].mxu0
    %v841 = vadd.f32 0.0, %v840
    %v842 = vpop.f32.mrb[0].mxu0
    %843 = vdwg.mxu0
    %v844 = vpack.c.bf16 %v817, %v814
    %v845 = vpack.c.bf16 %v825, %v822
    %v846 = vpack.c.bf16 %v833, %v830
    %v847 = vpack.c.bf16 %v841, %v838
    %848 = vst [vmem:[#allocation2 + $0x60] sm:$0xff] %v844
    %849 = vst [vmem:[#allocation2 + $0x68] sm:$0xff] %v845
    %850 = vst [vmem:[#allocation2 + $0x70] sm:$0xff] %v846
    %851 = vst [vmem:[#allocation2 + $0x78] sm:$0xff] %v847
    %v852 = vld [vmem:[#allocation7 + $0x10] sm:$0xf]
    %v853 = vld [vmem:[#allocation7 + $0x2c] sm:$0xf]
    %v854 = vld [vmem:[#allocation7 + $0x48] sm:$0xf]
    %v855 = vld [vmem:[#allocation7 + $0x64] sm:$0xf]
    %v856 = vld [vmem:[#allocation7 + $0x80] sm:$0xf]
    %v857 = vld [vmem:[#allocation7 + $0x9c] sm:$0xf]
    %v858 = vld [vmem:[#allocation7 + $0xb8] sm:$0xf]
    %v859 = vld [vmem:[#allocation7 + $0xd4] sm:$0xf]
    %v860 = vld [vmem:[#allocation7 + $0xf0] sm:$0xf]
    %v861 = vld [vmem:[#allocation7 + $0x10c] sm:$0xf]
    %v862 = vld [vmem:[#allocation7 + $0x128] sm:$0xf]
    %v863 = vld [vmem:[#allocation7 + $0x144] sm:$0xf]
    %v864 = vld [vmem:[#allocation7 + $0x160] sm:$0xf]
    %v865 = vld [vmem:[#allocation7 + $0x17c] sm:$0xf]
    %v866 = vld [vmem:[#allocation7 + $0x198] sm:$0xf]
    %v867 = vld [vmem:[#allocation7 + $0x1b4] sm:$0xf]
    %v884 = vunpack.c.l.b16 %v852
    %v885 = vunpack.c.l.b16 %v853
    %v886 = vunpack.c.l.b16 %v854
    %v887 = vunpack.c.l.b16 %v855
    %v888 = vunpack.c.l.b16 %v856
    %v889 = vunpack.c.l.b16 %v857
    %v890 = vunpack.c.l.b16 %v858
    %v891 = vunpack.c.l.b16 %v859
    %v892 = vunpack.c.l.b16 %v860
    %v893 = vunpack.c.l.b16 %v861
    %v894 = vunpack.c.l.b16 %v862
    %v895 = vunpack.c.l.b16 %v863
    %v896 = vunpack.c.l.b16 %v864
    %v897 = vunpack.c.l.b16 %v865
    %v898 = vunpack.c.l.b16 %v866
    %v899 = vunpack.c.l.b16 %v867
    %v900 = vpack.c.b16 %v885, %v884
    %v901 = vpack.c.b16 %v887, %v886
    %v902 = vpack.c.b16 %v889, %v888
    %v903 = vpack.c.b16 %v891, %v890
    %v904 = vpack.c.b16 %v893, %v892
    %v905 = vpack.c.b16 %v895, %v894
    %v906 = vpack.c.b16 %v897, %v896
    %v907 = vpack.c.b16 %v899, %v898
    %916 = vmatprep.subr.bf16.mxu0 0
    %917 = vmatpush1.bf16.msra.mxu0 %v900
    %918 = vmatprep.subr.bf16.mxu0 0
    %919 = vmatpush1.bf16.msra.mxu0 %v901
    %920 = vmatprep.subr.bf16.mxu0 0
    %921 = vmatpush1.bf16.msra.mxu0 %v902
    %922 = vmatprep.subr.bf16.mxu0 0
    %923 = vmatpush1.bf16.msra.mxu0 %v903
    %924 = vmatprep.subr.bf16.mxu0 0
    %925 = vmatpush1.bf16.msra.mxu0 %v904
    %926 = vmatprep.subr.bf16.mxu0 0
    %927 = vmatpush1.bf16.msra.mxu0 %v905
    %928 = vmatprep.subr.bf16.mxu0 0
    %929 = vmatpush1.bf16.msra.mxu0 %v906
    %930 = vmatprep.subr.bf16.mxu0 0
    %931 = vmatpush1.bf16.msra.mxu0 %v907
    %932 = vmatprep.subr.bf16.mxu0 0
    %933 = vmatpush1.bf16.msra.mxu0 0
    %934 = vmatprep.subr.bf16.mxu0 0
    %935 = vmatpush1.bf16.msra.mxu0 0
    %936 = vmatprep.subr.bf16.mxu0 0
    %937 = vmatpush1.bf16.msra.mxu0 0
    %938 = vmatprep.subr.bf16.mxu0 0
    %939 = vmatpush1.bf16.msra.mxu0 0
    %940 = vmatprep.subr.bf16.mxu0 0
    %941 = vmatpush1.bf16.msra.mxu0 0
    %942 = vmatprep.subr.bf16.mxu0 0
    %943 = vmatpush1.bf16.msra.mxu0 0
    %944 = vmatprep.subr.bf16.mxu0 0
    %945 = vmatpush1.bf16.msra.mxu0 0
    %946 = vmatprep.subr.bf16.mxu0 0
    %947 = vmatpush1.bf16.msra.mxu0 0
    %948 = vmatprep.mubr.bf16.mxu0 0
    %949 = vmatmul.mubr.bf16.gmra.mrb[0].mxu0 %v300
    %v950 = vpop.f32.mrb[0].mxu0
    %v951 = vadd.f32 0.0, %v950
    %v952 = vpop.f32.mrb[0].mxu0
    %v953 = vpop.f32.mrb[0].mxu0
    %v954 = vadd.f32 0.0, %v953
    %v955 = vpop.f32.mrb[0].mxu0
    %956 = vmatprep.mubr.bf16.mxu0 0
    %957 = vmatmul.mubr.bf16.gmra.mrb[0].mxu0 %v301
    %v958 = vpop.f32.mrb[0].mxu0
    %v959 = vadd.f32 0.0, %v958
    %v960 = vpop.f32.mrb[0].mxu0
    %v961 = vpop.f32.mrb[0].mxu0
    %v962 = vadd.f32 0.0, %v961
    %v963 = vpop.f32.mrb[0].mxu0
    %964 = vmatprep.mubr.bf16.mxu0 0
    %965 = vmatmul.mubr.bf16.gmra.mrb[0].mxu0 %v302
    %v966 = vpop.f32.mrb[0].mxu0
    %v967 = vadd.f32 0.0, %v966
    %v968 = vpop.f32.mrb[0].mxu0
    %v969 = vpop.f32.mrb[0].mxu0
    %v970 = vadd.f32 0.0, %v969
    %v971 = vpop.f32.mrb[0].mxu0
    %972 = vmatprep.mubr.bf16.mxu0 0
    %973 = vmatmul.mubr.bf16.gmra.mrb[0].mxu0 %v303
    %v974 = vpop.f32.mrb[0].mxu0
    %v975 = vadd.f32 0.0, %v974
    %v976 = vpop.f32.mrb[0].mxu0
    %v977 = vpop.f32.mrb[0].mxu0
    %v978 = vadd.f32 0.0, %v977
    %v979 = vpop.f32.mrb[0].mxu0
    %980 = vdwg.mxu0
    %v981 = vpack.c.bf16 %v954, %v951
    %v982 = vpack.c.bf16 %v962, %v959
    %v983 = vpack.c.bf16 %v970, %v967
    %v984 = vpack.c.bf16 %v978, %v975
    %985 = vst [vmem:[#allocation2 + $0x80] sm:$0xff] %v981
    %986 = vst [vmem:[#allocation2 + $0x88] sm:$0xff] %v982
    %987 = vst [vmem:[#allocation2 + $0x90] sm:$0xff] %v983
    %988 = vst [vmem:[#allocation2 + $0x98] sm:$0xff] %v984
    %v989 = vld [vmem:[#allocation7 + $0x14] sm:$0xf]
    %v990 = vld [vmem:[#allocation7 + $0x30] sm:$0xf]
    %v991 = vld [vmem:[#allocation7 + $0x4c] sm:$0xf]
    %v992 = vld [vmem:[#allocation7 + $0x68] sm:$0xf]
    %v993 = vld [vmem:[#allocation7 + $0x84] sm:$0xf]
    %v994 = vld [vmem:[#allocation7 + $0xa0] sm:$0xf]
    %v995 = vld [vmem:[#allocation7 + $0xbc] sm:$0xf]
    %v996 = vld [vmem:[#allocation7 + $0xd8] sm:$0xf]
    %v997 = vld [vmem:[#allocation7 + $0xf4] sm:$0xf]
    %v998 = vld [vmem:[#allocation7 + $0x110] sm:$0xf]
    %v999 = vld [vmem:[#allocation7 + $0x12c] sm:$0xf]
    %v1000 = vld [vmem:[#allocation7 + $0x148] sm:$0xf]
    %v1001 = vld [vmem:[#allocation7 + $0x164] sm:$0xf]
    %v1002 = vld [vmem:[#allocation7 + $0x180] sm:$0xf]
    %v1003 = vld [vmem:[#allocation7 + $0x19c] sm:$0xf]
    %v1004 = vld [vmem:[#allocation7 + $0x1b8] sm:$0xf]
    %v1021 = vunpack.c.l.b16 %v989
    %v1022 = vunpack.c.l.b16 %v990
    %v1023 = vunpack.c.l.b16 %v991
    %v1024 = vunpack.c.l.b16 %v992
    %v1025 = vunpack.c.l.b16 %v993
    %v1026 = vunpack.c.l.b16 %v994
    %v1027 = vunpack.c.l.b16 %v995
    %v1028 = vunpack.c.l.b16 %v996
    %v1029 = vunpack.c.l.b16 %v997
    %v1030 = vunpack.c.l.b16 %v998
    %v1031 = vunpack.c.l.b16 %v999
    %v1032 = vunpack.c.l.b16 %v1000
    %v1033 = vunpack.c.l.b16 %v1001
    %v1034 = vunpack.c.l.b16 %v1002
    %v1035 = vunpack.c.l.b16 %v1003
    %v1036 = vunpack.c.l.b16 %v1004
    %v1037 = vpack.c.b16 %v1022, %v1021
    %v1038 = vpack.c.b16 %v1024, %v1023
    %v1039 = vpack.c.b16 %v1026, %v1025
    %v1040 = vpack.c.b16 %v1028, %v1027
    %v1041 = vpack.c.b16 %v1030, %v1029
    %v1042 = vpack.c.b16 %v1032, %v1031
    %v1043 = vpack.c.b16 %v1034, %v1033
    %v1044 = vpack.c.b16 %v1036, %v1035
    %1053 = vmatprep.subr.bf16.mxu0 0
    %1054 = vmatpush1.bf16.msra.mxu0 %v1037
    %1055 = vmatprep.subr.bf16.mxu0 0
    %1056 = vmatpush1.bf16.msra.mxu0 %v1038
    %1057 = vmatprep.subr.bf16.mxu0 0
    %1058 = vmatpush1.bf16.msra.mxu0 %v1039
    %1059 = vmatprep.subr.bf16.mxu0 0
    %1060 = vmatpush1.bf16.msra.mxu0 %v1040
    %1061 = vmatprep.subr.bf16.mxu0 0
    %1062 = vmatpush1.bf16.msra.mxu0 %v1041
    %1063 = vmatprep.subr.bf16.mxu0 0
    %1064 = vmatpush1.bf16.msra.mxu0 %v1042
    %1065 = vmatprep.subr.bf16.mxu0 0
    %1066 = vmatpush1.bf16.msra.mxu0 %v1043
    %1067 = vmatprep.subr.bf16.mxu0 0
    %1068 = vmatpush1.bf16.msra.mxu0 %v1044
    %1069 = vmatprep.subr.bf16.mxu0 0
    %1070 = vmatpush1.bf16.msra.mxu0 0
    %1071 = vmatprep.subr.bf16.mxu0 0
    %1072 = vmatpush1.bf16.msra.mxu0 0
    %1073 = vmatprep.subr.bf16.mxu0 0
    %1074 = vmatpush1.bf16.msra.mxu0 0
    %1075 = vmatprep.subr.bf16.mxu0 0
    %1076 = vmatpush1.bf16.msra.mxu0 0
    %1077 = vmatprep.subr.bf16.mxu0 0
    %1078 = vmatpush1.bf16.msra.mxu0 0
    %1079 = vmatprep.subr.bf16.mxu0 0
    %1080 = vmatpush1.bf16.msra.mxu0 0
    %1081 = vmatprep.subr.bf16.mxu0 0
    %1082 = vmatpush1.bf16.msra.mxu0 0
    %1083 = vmatprep.subr.bf16.mxu0 0
    %1084 = vmatpush1.bf16.msra.mxu0 0
    %1085 = vmatprep.mubr.bf16.mxu0 0
    %1086 = vmatmul.mubr.bf16.gmra.mrb[0].mxu0 %v300
    %v1087 = vpop.f32.mrb[0].mxu0
    %v1088 = vadd.f32 0.0, %v1087
    %v1089 = vpop.f32.mrb[0].mxu0
    %v1090 = vpop.f32.mrb[0].mxu0
    %v1091 = vadd.f32 0.0, %v1090
    %v1092 = vpop.f32.mrb[0].mxu0
    %1093 = vmatprep.mubr.bf16.mxu0 0
    %1094 = vmatmul.mubr.bf16.gmra.mrb[0].mxu0 %v301
    %v1095 = vpop.f32.mrb[0].mxu0
    %v1096 = vadd.f32 0.0, %v1095
    %v1097 = vpop.f32.mrb[0].mxu0
    %v1098 = vpop.f32.mrb[0].mxu0
    %v1099 = vadd.f32 0.0, %v1098
    %v1100 = vpop.f32.mrb[0].mxu0
    %1101 = vmatprep.mubr.bf16.mxu0 0
    %1102 = vmatmul.mubr.bf16.gmra.mrb[0].mxu0 %v302
    %v1103 = vpop.f32.mrb[0].mxu0
    %v1104 = vadd.f32 0.0, %v1103
    %v1105 = vpop.f32.mrb[0].mxu0
    %v1106 = vpop.f32.mrb[0].mxu0
    %v1107 = vadd.f32 0.0, %v1106
    %v1108 = vpop.f32.mrb[0].mxu0
    %1109 = vmatprep.mubr.bf16.mxu0 0
    %1110 = vmatmul.mubr.bf16.gmra.mrb[0].mxu0 %v303
    %v1111 = vpop.f32.mrb[0].mxu0
    %v1112 = vadd.f32 0.0, %v1111
    %v1113 = vpop.f32.mrb[0].mxu0
    %v1114 = vpop.f32.mrb[0].mxu0
    %v1115 = vadd.f32 0.0, %v1114
    %v1116 = vpop.f32.mrb[0].mxu0
    %1117 = vdwg.mxu0
    %v1118 = vpack.c.bf16 %v1091, %v1088
    %v1119 = vpack.c.bf16 %v1099, %v1096
    %v1120 = vpack.c.bf16 %v1107, %v1104
    %v1121 = vpack.c.bf16 %v1115, %v1112
    %1122 = vst [vmem:[#allocation2 + $0xa0] sm:$0xff] %v1118
    %1123 = vst [vmem:[#allocation2 + $0xa8] sm:$0xff] %v1119
    %1124 = vst [vmem:[#allocation2 + $0xb0] sm:$0xff] %v1120
    %1125 = vst [vmem:[#allocation2 + $0xb8] sm:$0xff] %v1121
    %v1126 = vld [vmem:[#allocation7 + $0x18] sm:$0xf]
    %v1127 = vld [vmem:[#allocation7 + $0x34] sm:$0xf]
    %v1128 = vld [vmem:[#allocation7 + $0x50] sm:$0xf]
    %v1129 = vld [vmem:[#allocation7 + $0x6c] sm:$0xf]
    %v1130 = vld [vmem:[#allocation7 + $0x88] sm:$0xf]
    %v1131 = vld [vmem:[#allocation7 + $0xa4] sm:$0xf]
    %v1132 = vld [vmem:[#allocation7 + $0xc0] sm:$0xf]
    %v1133 = vld [vmem:[#allocation7 + $0xdc] sm:$0xf]
    %v1134 = vld [vmem:[#allocation7 + $0xf8] sm:$0xf]
    %v1135 = vld [vmem:[#allocation7 + $0x114] sm:$0xf]
    %v1136 = vld [vmem:[#allocation7 + $0x130] sm:$0xf]
    %v1137 = vld [vmem:[#allocation7 + $0x14c] sm:$0xf]
    %v1138 = vld [vmem:[#allocation7 + $0x168] sm:$0xf]
    %v1139 = vld [vmem:[#allocation7 + $0x184] sm:$0xf]
    %v1140 = vld [vmem:[#allocation7 + $0x1a0] sm:$0xf]
    %v1141 = vld [vmem:[#allocation7 + $0x1bc] sm:$0xf]
    %v1158 = vunpack.c.l.b16 %v1126
    %v1159 = vunpack.c.l.b16 %v1127
    %v1160 = vunpack.c.l.b16 %v1128
    %v1161 = vunpack.c.l.b16 %v1129
    %v1162 = vunpack.c.l.b16 %v1130
    %v1163 = vunpack.c.l.b16 %v1131
    %v1164 = vunpack.c.l.b16 %v1132
    %v1165 = vunpack.c.l.b16 %v1133
    %v1166 = vunpack.c.l.b16 %v1134
    %v1167 = vunpack.c.l.b16 %v1135
    %v1168 = vunpack.c.l.b16 %v1136
    %v1169 = vunpack.c.l.b16 %v1137
    %v1170 = vunpack.c.l.b16 %v1138
    %v1171 = vunpack.c.l.b16 %v1139
    %v1172 = vunpack.c.l.b16 %v1140
    %v1173 = vunpack.c.l.b16 %v1141
    %v1174 = vpack.c.b16 %v1159, %v1158
    %v1175 = vpack.c.b16 %v1161, %v1160
    %v1176 = vpack.c.b16 %v1163, %v1162
    %v1177 = vpack.c.b16 %v1165, %v1164
    %v1178 = vpack.c.b16 %v1167, %v1166
    %v1179 = vpack.c.b16 %v1169, %v1168
    %v1180 = vpack.c.b16 %v1171, %v1170
    %v1181 = vpack.c.b16 %v1173, %v1172
    %1190 = vmatprep.subr.bf16.mxu0 0
    %1191 = vmatpush1.bf16.msra.mxu0 %v1174
    %1192 = vmatprep.subr.bf16.mxu0 0
    %1193 = vmatpush1.bf16.msra.mxu0 %v1175
    %1194 = vmatprep.subr.bf16.mxu0 0
    %1195 = vmatpush1.bf16.msra.mxu0 %v1176
    %1196 = vmatprep.subr.bf16.mxu0 0
    %1197 = vmatpush1.bf16.msra.mxu0 %v1177
    %1198 = vmatprep.subr.bf16.mxu0 0
    %1199 = vmatpush1.bf16.msra.mxu0 %v1178
    %1200 = vmatprep.subr.bf16.mxu0 0
    %1201 = vmatpush1.bf16.msra.mxu0 %v1179
    %1202 = vmatprep.subr.bf16.mxu0 0
    %1203 = vmatpush1.bf16.msra.mxu0 %v1180
    %1204 = vmatprep.subr.bf16.mxu0 0
    %1205 = vmatpush1.bf16.msra.mxu0 %v1181
    %1206 = vmatprep.subr.bf16.mxu0 0
    %1207 = vmatpush1.bf16.msra.mxu0 0
    %1208 = vmatprep.subr.bf16.mxu0 0
    %1209 = vmatpush1.bf16.msra.mxu0 0
    %1210 = vmatprep.subr.bf16.mxu0 0
    %1211 = vmatpush1.bf16.msra.mxu0 0
    %1212 = vmatprep.subr.bf16.mxu0 0
    %1213 = vmatpush1.bf16.msra.mxu0 0
    %1214 = vmatprep.subr.bf16.mxu0 0
    %1215 = vmatpush1.bf16.msra.mxu0 0
    %1216 = vmatprep.subr.bf16.mxu0 0
    %1217 = vmatpush1.bf16.msra.mxu0 0
    %1218 = vmatprep.subr.bf16.mxu0 0
    %1219 = vmatpush1.bf16.msra.mxu0 0
    %1220 = vmatprep.subr.bf16.mxu0 0
    %1221 = vmatpush1.bf16.msra.mxu0 0
    %1222 = vmatprep.mubr.bf16.mxu0 0
    %1223 = vmatmul.mubr.bf16.gmra.mrb[0].mxu0 %v300
    %v1224 = vpop.f32.mrb[0].mxu0
    %v1225 = vadd.f32 0.0, %v1224
    %v1226 = vpop.f32.mrb[0].mxu0
    %v1227 = vpop.f32.mrb[0].mxu0
    %v1228 = vadd.f32 0.0, %v1227
    %v1229 = vpop.f32.mrb[0].mxu0
    %1230 = vmatprep.mubr.bf16.mxu0 0
    %1231 = vmatmul.mubr.bf16.gmra.mrb[0].mxu0 %v301
    %v1232 = vpop.f32.mrb[0].mxu0
    %v1233 = vadd.f32 0.0, %v1232
    %v1234 = vpop.f32.mrb[0].mxu0
    %v1235 = vpop.f32.mrb[0].mxu0
    %v1236 = vadd.f32 0.0, %v1235
    %v1237 = vpop.f32.mrb[0].mxu0
    %1238 = vmatprep.mubr.bf16.mxu0 0
    %1239 = vmatmul.mubr.bf16.gmra.mrb[0].mxu0 %v302
    %v1240 = vpop.f32.mrb[0].mxu0
    %v1241 = vadd.f32 0.0, %v1240
    %v1242 = vpop.f32.mrb[0].mxu0
    %v1243 = vpop.f32.mrb[0].mxu0
    %v1244 = vadd.f32 0.0, %v1243
    %v1245 = vpop.f32.mrb[0].mxu0
    %1246 = vmatprep.mubr.bf16.mxu0 0
    %1247 = vmatmul.mubr.bf16.gmra.mrb[0].mxu0 %v303
    %v1248 = vpop.f32.mrb[0].mxu0
    %v1249 = vadd.f32 0.0, %v1248
    %v1250 = vpop.f32.mrb[0].mxu0
    %v1251 = vpop.f32.mrb[0].mxu0
    %v1252 = vadd.f32 0.0, %v1251
    %v1253 = vpop.f32.mrb[0].mxu0
    %1254 = vdwg.mxu0
    %v1255 = vpack.c.bf16 %v1228, %v1225
    %v1256 = vpack.c.bf16 %v1236, %v1233
    %v1257 = vpack.c.bf16 %v1244, %v1241
    %v1258 = vpack.c.bf16 %v1252, %v1249
    %1259 = vst [vmem:[#allocation2 + $0xc0] sm:$0xff] %v1255
    %1260 = vst [vmem:[#allocation2 + $0xc8] sm:$0xff] %v1256
    %1261 = vst [vmem:[#allocation2 + $0xd0] sm:$0xff] %v1257
    %1262 = vst [vmem:[#allocation2 + $0xd8] sm:$0xff] %v1258
    %v1263 = vld [vmem:[%s1] sm:$0xff]
    %v1264 = vld [vmem:[%s1 + $0x8] sm:$0xff]
    %v1265 = vld [vmem:[%s1 + $0x10] sm:$0xff]
    %v1266 = vld [vmem:[%s1 + $0x18] sm:$0xff]
    %v1267 = vld [vmem:[%s1 + $0x20] sm:$0xff]
    %v1268 = vld [vmem:[%s1 + $0x28] sm:$0xff]
    %v1269 = vld [vmem:[%s1 + $0x30] sm:$0xff]
    %v1270 = vld [vmem:[%s1 + $0x38] sm:$0xff]
    %v1271 = vld [vmem:[%s1 + $0x40] sm:$0xff]
    %v1272 = vld [vmem:[%s1 + $0x48] sm:$0xff]
    %v1273 = vld [vmem:[%s1 + $0x50] sm:$0xff]
    %v1274 = vld [vmem:[%s1 + $0x58] sm:$0xff]
    %v1275 = vld [vmem:[%s1 + $0x60] sm:$0xff]
    %v1276 = vld [vmem:[%s1 + $0x68] sm:$0xff]
    %v1277 = vld [vmem:[%s1 + $0x70] sm:$0xff]
    %v1278 = vld [vmem:[%s1 + $0x78] sm:$0xff]
    %v1279 = vld [vmem:[#allocation2] sm:$0xff]
    %v1280 = vld [vmem:[#allocation2 + $0x8] sm:$0xff]
    %v1281 = vld [vmem:[#allocation2 + $0x10] sm:$0xff]
    %v1282 = vld [vmem:[#allocation2 + $0x18] sm:$0xff]
    %v1283 = vld [vmem:[#allocation2 + $0x20] sm:$0xff]
    %v1284 = vld [vmem:[#allocation2 + $0x28] sm:$0xff]
    %v1285 = vld [vmem:[#allocation2 + $0x30] sm:$0xff]
    %v1286 = vld [vmem:[#allocation2 + $0x38] sm:$0xff]
    %v1287 = vld [vmem:[#allocation2 + $0x40] sm:$0xff]
    %v1288 = vld [vmem:[#allocation2 + $0x48] sm:$0xff]
    %v1289 = vld [vmem:[#allocation2 + $0x50] sm:$0xff]
    %v1290 = vld [vmem:[#allocation2 + $0x58] sm:$0xff]
    %v1291 = vld [vmem:[#allocation2 + $0x60] sm:$0xff]
    %v1292 = vld [vmem:[#allocation2 + $0x68] sm:$0xff]
    %v1293 = vld [vmem:[#allocation2 + $0x70] sm:$0xff]
    %v1294 = vld [vmem:[#allocation2 + $0x78] sm:$0xff]
    %v1295 = vld [vmem:[#allocation2 + $0x80] sm:$0xff]
    %v1296 = vld [vmem:[#allocation2 + $0x88] sm:$0xff]
    %v1297 = vld [vmem:[#allocation2 + $0x90] sm:$0xff]
    %v1298 = vld [vmem:[#allocation2 + $0x98] sm:$0xff]
    %v1299 = vld [vmem:[#allocation2 + $0xa0] sm:$0xff]
    %v1300 = vld [vmem:[#allocation2 + $0xa8] sm:$0xff]
    %v1301 = vld [vmem:[#allocation2 + $0xb0] sm:$0xff]
    %v1302 = vld [vmem:[#allocation2 + $0xb8] sm:$0xff]
    %v1303 = vld [vmem:[#allocation2 + $0xc0] sm:$0xff]
    %v1304 = vld [vmem:[#allocation2 + $0xc8] sm:$0xff]
    %v1305 = vld [vmem:[#allocation2 + $0xd0] sm:$0xff]
    %v1306 = vld [vmem:[#allocation2 + $0xd8] sm:$0xff]
    %v1307 = vld [vmem:[%s7] sm:$0x1]
    %v1309 = vlaneseq
    %v1310 = vshrl.u32 %v1309, 7
    %v1311 = vsub.s32 0, %v1310
    %v1312 = vrot.slane %v1307, %v1311
    %v1330 = vunpack.c.l.b16 %v1263
    %v1331 = vunpack.c.h.b16 %v1263
    %v1332 = vunpack.c.l.b16 %v1264
    %v1333 = vunpack.c.h.b16 %v1264
    %v1334 = vunpack.c.l.b16 %v1265
    %v1335 = vunpack.c.h.b16 %v1265
    %v1336 = vunpack.c.l.b16 %v1266
    %v1337 = vunpack.c.h.b16 %v1266
    %v1338 = vunpack.c.l.b16 %v1267
    %v1339 = vunpack.c.h.b16 %v1267
    %v1340 = vunpack.c.l.b16 %v1268
    %v1341 = vunpack.c.h.b16 %v1268
    %v1342 = vunpack.c.l.b16 %v1269
    %v1343 = vunpack.c.h.b16 %v1269
    %v1344 = vunpack.c.l.b16 %v1270
    %v1345 = vunpack.c.h.b16 %v1270
    %v1346 = vunpack.c.l.b16 %v1271
    %v1347 = vunpack.c.h.b16 %v1271
    %v1348 = vunpack.c.l.b16 %v1272
    %v1349 = vunpack.c.h.b16 %v1272
    %v1350 = vunpack.c.l.b16 %v1273
    %v1351 = vunpack.c.h.b16 %v1273
    %v1352 = vunpack.c.l.b16 %v1274
    %v1353 = vunpack.c.h.b16 %v1274
    %v1354 = vunpack.c.l.b16 %v1275
    %v1355 = vunpack.c.h.b16 %v1275
    %v1356 = vunpack.c.l.b16 %v1276
    %v1357 = vunpack.c.h.b16 %v1276
    %v1358 = vunpack.c.l.b16 %v1277
    %v1359 = vunpack.c.h.b16 %v1277
    %v1360 = vunpack.c.l.b16 %v1278
    %v1361 = vunpack.c.h.b16 %v1278
    %v1362 = vpack.c.b16 %v1334, %v1330
    %v1363 = vpack.c.b16 %v1335, %v1331
    %v1364 = vpack.c.b16 %v1336, %v1332
    %v1365 = vpack.c.b16 %v1337, %v1333
    %v1366 = vpack.c.b16 %v1342, %v1338
    %v1367 = vpack.c.b16 %v1343, %v1339
    %v1368 = vpack.c.b16 %v1344, %v1340
    %v1369 = vpack.c.b16 %v1345, %v1341
    %v1370 = vpack.c.b16 %v1350, %v1346
    %v1371 = vpack.c.b16 %v1351, %v1347
    %v1372 = vpack.c.b16 %v1352, %v1348
    %v1373 = vpack.c.b16 %v1353, %v1349
    %v1374 = vpack.c.b16 %v1358, %v1354
    %v1375 = vpack.c.b16 %v1359, %v1355
    %v1376 = vpack.c.b16 %v1360, %v1356
    %v1377 = vpack.c.b16 %v1361, %v1357
    %vm1390 = vcmask 523264
    %v1392 = vsel %vm1390, %v1365, 0
    %v1395 = vsel %vm1390, %v1369, 0
    %v1398 = vsel %vm1390, %v1373, 0
    %v1401 = vsel %vm1390, %v1377, 0
    %1403 = vmatprep.subr.bf16.mxu0 0
    %1404 = vmatpush1.bf16.msra.mxu0 %v1279
    %1405 = vmatprep.subr.bf16.mxu0 0
    %1406 = vmatpush1.bf16.msra.mxu0 %v1280
    %1407 = vmatprep.subr.bf16.mxu0 0
    %1408 = vmatpush1.bf16.msra.mxu0 %v1281
    %1409 = vmatprep.subr.bf16.mxu0 0
    %1410 = vmatpush1.bf16.msra.mxu0 %v1282
    %1411 = vmatprep.subr.bf16.mxu0 0
    %1412 = vmatpush1.bf16.msra.mxu0 %v1283
    %1413 = vmatprep.subr.bf16.mxu0 0
    %1414 = vmatpush1.bf16.msra.mxu0 %v1284
    %1415 = vmatprep.subr.bf16.mxu0 0
    %1416 = vmatpush1.bf16.msra.mxu0 %v1285
    %1417 = vmatprep.subr.bf16.mxu0 0
    %1418 = vmatpush1.bf16.msra.mxu0 %v1286
    %1419 = vmatprep.subr.bf16.mxu0 0
    %1420 = vmatpush1.bf16.msra.mxu0 %v1287
    %1421 = vmatprep.subr.bf16.mxu0 0
    %1422 = vmatpush1.bf16.msra.mxu0 %v1288
    %1423 = vmatprep.subr.bf16.mxu0 0
    %1424 = vmatpush1.bf16.msra.mxu0 %v1289
    %1425 = vmatprep.subr.bf16.mxu0 0
    %1426 = vmatpush1.bf16.msra.mxu0 %v1290
    %1427 = vmatprep.subr.bf16.mxu0 0
    %1428 = vmatpush1.bf16.msra.mxu0 %v1291
    %1429 = vmatprep.subr.bf16.mxu0 0
    %1430 = vmatpush1.bf16.msra.mxu0 %v1292
    %1431 = vmatprep.subr.bf16.mxu0 0
    %1432 = vmatpush1.bf16.msra.mxu0 %v1293
    %1433 = vmatprep.subr.bf16.mxu0 0
    %1434 = vmatpush1.bf16.msra.mxu0 %v1294
    %1435 = vmatprep.mubr.bf16.mxu0 %v1363
    %1436 = vmatmul.mubr.bf16.gmra.mrb[0].mxu0 %v1362
    %v1437 = vpop.f32.mrb[0].mxu0
    %v1438 = vadd.f32 %v1312, %v1437
    %v1439 = vpop.f32.mrb[0].mxu0
    %v1440 = vpop.f32.mrb[0].mxu0
    %v1441 = vadd.f32 %v1312, %v1440
    %v1442 = vpop.f32.mrb[0].mxu0
    %1443 = vmatprep.mubr.bf16.mxu0 %v1367
    %1444 = vmatmul.mubr.bf16.gmra.mrb[0].mxu0 %v1366
    %v1445 = vpop.f32.mrb[0].mxu0
    %v1446 = vadd.f32 %v1312, %v1445
    %v1447 = vpop.f32.mrb[0].mxu0
    %v1448 = vpop.f32.mrb[0].mxu0
    %v1449 = vadd.f32 %v1312, %v1448
    %v1450 = vpop.f32.mrb[0].mxu0
    %1451 = vmatprep.mubr.bf16.mxu0 %v1371
    %1452 = vmatmul.mubr.bf16.gmra.mrb[0].mxu0 %v1370
    %v1453 = vpop.f32.mrb[0].mxu0
    %v1454 = vadd.f32 %v1312, %v1453
    %v1455 = vpop.f32.mrb[0].mxu0
    %v1456 = vpop.f32.mrb[0].mxu0
    %v1457 = vadd.f32 %v1312, %v1456
    %v1458 = vpop.f32.mrb[0].mxu0
    %1459 = vmatprep.mubr.bf16.mxu0 %v1375
    %1460 = vmatmul.mubr.bf16.gmra.mrb[0].mxu0 %v1374
    %v1461 = vpop.f32.mrb[0].mxu0
    %v1462 = vadd.f32 %v1312, %v1461
    %v1463 = vpop.f32.mrb[0].mxu0
    %v1464 = vpop.f32.mrb[0].mxu0
    %v1465 = vadd.f32 %v1312, %v1464
    %v1466 = vpop.f32.mrb[0].mxu0
    %1467 = vdwg.mxu0
    %1468 = vmatprep.subr.bf16.mxu0 0
    %1469 = vmatpush1.bf16.msra.mxu0 %v1295
    %1470 = vmatprep.subr.bf16.mxu0 0
    %1471 = vmatpush1.bf16.msra.mxu0 %v1296
    %1472 = vmatprep.subr.bf16.mxu0 0
    %1473 = vmatpush1.bf16.msra.mxu0 %v1297
    %1474 = vmatprep.subr.bf16.mxu0 0
    %1475 = vmatpush1.bf16.msra.mxu0 %v1298
    %1476 = vmatprep.subr.bf16.mxu0 0
    %1477 = vmatpush1.bf16.msra.mxu0 %v1299
    %1478 = vmatprep.subr.bf16.mxu0 0
    %1479 = vmatpush1.bf16.msra.mxu0 %v1300
    %1480 = vmatprep.subr.bf16.mxu0 0
    %1481 = vmatpush1.bf16.msra.mxu0 %v1301
    %1482 = vmatprep.subr.bf16.mxu0 0
    %1483 = vmatpush1.bf16.msra.mxu0 %v1302
    %1484 = vmatprep.subr.bf16.mxu0 0
    %1485 = vmatpush1.bf16.msra.mxu0 %v1303
    %1486 = vmatprep.subr.bf16.mxu0 0
    %1487 = vmatpush1.bf16.msra.mxu0 %v1304
    %1488 = vmatprep.subr.bf16.mxu0 0
    %1489 = vmatpush1.bf16.msra.mxu0 %v1305
    %1490 = vmatprep.subr.bf16.mxu0 0
    %1491 = vmatpush1.bf16.msra.mxu0 %v1306
    %1492 = vmatprep.subr.bf16.mxu0 0
    %1493 = vmatpush1.bf16.msra.mxu0 0
    %1494 = vmatprep.subr.bf16.mxu0 0
    %1495 = vmatpush1.bf16.msra.mxu0 0
    %1496 = vmatprep.subr.bf16.mxu0 0
    %1497 = vmatpush1.bf16.msra.mxu0 0
    %1498 = vmatprep.subr.bf16.mxu0 0
    %1499 = vmatpush1.bf16.msra.mxu0 0
    %1500 = vmatprep.mubr.bf16.mxu0 %v1392
    %1501 = vmatmul.mubr.bf16.gmra.mrb[0].mxu0 %v1364
    %v1502 = vpop.f32.mrb[0].mxu0
    %v1503 = vadd.f32 %v1438, %v1502
    %v1504 = vpop.f32.mrb[0].mxu0
    %v1505 = vpop.f32.mrb[0].mxu0
    %v1506 = vadd.f32 %v1441, %v1505
    %v1507 = vpop.f32.mrb[0].mxu0
    %1508 = vmatprep.mubr.bf16.mxu0 %v1395
    %1509 = vmatmul.mubr.bf16.gmra.mrb[0].mxu0 %v1368
    %v1510 = vpop.f32.mrb[0].mxu0
    %v1511 = vadd.f32 %v1446, %v1510
    %v1512 = vpop.f32.mrb[0].mxu0
    %v1513 = vpop.f32.mrb[0].mxu0
    %v1514 = vadd.f32 %v1449, %v1513
    %v1515 = vpop.f32.mrb[0].mxu0
    %1516 = vmatprep.mubr.bf16.mxu0 %v1398
    %1517 = vmatmul.mubr.bf16.gmra.mrb[0].mxu0 %v1372
    %v1518 = vpop.f32.mrb[0].mxu0
    %v1519 = vadd.f32 %v1454, %v1518
    %v1520 = vpop.f32.mrb[0].mxu0
    %v1521 = vpop.f32.mrb[0].mxu0
    %v1522 = vadd.f32 %v1457, %v1521
    %v1523 = vpop.f32.mrb[0].mxu0
    %1524 = vmatprep.mubr.bf16.mxu0 %v1401
    %1525 = vmatmul.mubr.bf16.gmra.mrb[0].mxu0 %v1376
    %v1526 = vpop.f32.mrb[0].mxu0
    %v1527 = vadd.f32 %v1462, %v1526
    %v1528 = vpop.f32.mrb[0].mxu0
    %v1529 = vpop.f32.mrb[0].mxu0
    %v1530 = vadd.f32 %v1465, %v1529
    %v1531 = vpop.f32.mrb[0].mxu0
    %1532 = vdwg.mxu0
    %v1533 = vadd.f32 %v1503, %v270
    %v1534 = vadd.f32 %v1506, %v273
    %v1535 = vadd.f32 %v1511, %v278
    %v1536 = vadd.f32 %v1514, %v281
    %v1537 = vadd.f32 %v1519, %v286
    %v1538 = vadd.f32 %v1522, %v289
    %v1539 = vadd.f32 %v1527, %v294
    %v1540 = vadd.f32 %v1530, %v297
    %vm1541 = vcmp.ge.f32.partialorder %v1533, 0.0
    %vm1542 = vcmp.ge.f32.partialorder %v1534, 0.0
    %vm1543 = vcmp.ge.f32.partialorder %v1535, 0.0
    %vm1544 = vcmp.ge.f32.partialorder %v1536, 0.0
    %vm1545 = vcmp.ge.f32.partialorder %v1537, 0.0
    %vm1546 = vcmp.ge.f32.partialorder %v1538, 0.0
    %vm1547 = vcmp.ge.f32.partialorder %v1539, 0.0
    %vm1548 = vcmp.ge.f32.partialorder %v1540, 0.0
    %v1549 = vstv %s131
    %v1550 = vmul.f32 %v1549, %v1533
    %v1551 = vmul.f32 %v1549, %v1534
    %v1552 = vmul.f32 %v1549, %v1535
    %v1553 = vmul.f32 %v1549, %v1536
    %v1554 = vmul.f32 %v1549, %v1537
    %v1555 = vmul.f32 %v1549, %v1538
    %v1556 = vmul.f32 %v1549, %v1539
    %v1557 = vmul.f32 %v1549, %v1540
    %v1558 = vsel %vm1541, %v1533, %v1550
    %v1559 = vsel %vm1542, %v1534, %v1551
    %v1560 = vsel %vm1543, %v1535, %v1552
    %v1561 = vsel %vm1544, %v1536, %v1553
    %v1562 = vsel %vm1545, %v1537, %v1554
    %v1563 = vsel %vm1546, %v1538, %v1555
    %v1564 = vsel %vm1547, %v1539, %v1556
    %v1565 = vsel %vm1548, %v1540, %v1557
    %v1566 = vmul.f32 %v1558, %v1558
    %v1567 = vmul.f32 %v1559, %v1559
    %v1568 = vmul.f32 %v1560, %v1560
    %v1569 = vmul.f32 %v1561, %v1561
    %v1570 = vmul.f32 %v1562, %v1562
    %v1571 = vmul.f32 %v1563, %v1563
    %v1572 = vmul.f32 %v1564, %v1564
    %v1573 = vmul.f32 %v1565, %v1565
    %1574 = vadd.xlane.f32.xlu0 %v1566
    %v1575 = vpop.xlane.xlu0 %1574
    %1576 = vadd.xlane.f32.xlu0 %v1567
    %v1577 = vpop.xlane.xlu0 %1576
    %1578 = vadd.xlane.f32.xlu0 %v1568
    %v1579 = vpop.xlane.xlu0 %1578
    %1580 = vadd.xlane.f32.xlu0 %v1569
    %v1581 = vpop.xlane.xlu0 %1580
    %1582 = vadd.xlane.f32.xlu0 %v1570
    %v1583 = vpop.xlane.xlu0 %1582
    %1584 = vadd.xlane.f32.xlu0 %v1571
    %v1585 = vpop.xlane.xlu0 %1584
    %1586 = vadd.xlane.f32.xlu0 %v1572
    %v1587 = vpop.xlane.xlu0 %1586
    %1588 = vadd.xlane.f32.xlu0 %v1573
    %v1589 = vpop.xlane.xlu0 %1588
    %v1590 = vmax.f32 %v1575, 1e-24
    %v1591 = vmax.f32 %v1577, 1e-24
    %v1592 = vmax.f32 %v1579, 1e-24
    %v1593 = vmax.f32 %v1581, 1e-24
    %v1594 = vmax.f32 %v1583, 1e-24
    %v1595 = vmax.f32 %v1585, 1e-24
    %v1596 = vmax.f32 %v1587, 1e-24
    %v1597 = vmax.f32 %v1589, 1e-24
    %v1598 = vrsqrt.pop %v1590
    %v1599 = vrsqrt.pop %v1591
    %v1600 = vrsqrt.pop %v1592
    %v1601 = vrsqrt.pop %v1593
    %v1602 = vrsqrt.pop %v1594
    %v1603 = vrsqrt.pop %v1595
    %v1604 = vrsqrt.pop %v1596
    %v1605 = vrsqrt.pop %v1597
    %v1606 = vmul.f32 %v1558, %v1598
    %v1607 = vmul.f32 %v1559, %v1599
    %v1608 = vmul.f32 %v1560, %v1600
    %v1609 = vmul.f32 %v1561, %v1601
    %v1610 = vmul.f32 %v1562, %v1602
    %v1611 = vmul.f32 %v1563, %v1603
    %v1612 = vmul.f32 %v1564, %v1604
    %v1613 = vmul.f32 %v1565, %v1605
    %v1614 = vpack.c.bf16 %v1607, %v1606
    %v1615 = vpack.c.bf16 %v1609, %v1608
    %v1616 = vpack.c.bf16 %v1611, %v1610
    %v1617 = vpack.c.bf16 %v1613, %v1612
    %v1618 = vld [vmem:[#allocation9] sm:$0xf]
    %v1619 = vld [vmem:[#allocation9 + $0x1c] sm:$0xf]
    %v1620 = vld [vmem:[#allocation9 + $0x38] sm:$0xf]
    %v1621 = vld [vmem:[#allocation9 + $0x54] sm:$0xf]
    %v1622 = vld [vmem:[#allocation9 + $0x70] sm:$0xf]
    %v1623 = vld [vmem:[#allocation9 + $0x8c] sm:$0xf]
    %v1624 = vld [vmem:[#allocation9 + $0xa8] sm:$0xf]
    %v1625 = vld [vmem:[#allocation9 + $0xc4] sm:$0xf]
    %v1626 = vld [vmem:[#allocation9 + $0xe0] sm:$0xf]
    %v1627 = vld [vmem:[#allocation9 + $0xfc] sm:$0xf]
    %v1628 = vld [vmem:[#allocation9 + $0x118] sm:$0xf]
    %v1629 = vld [vmem:[#allocation9 + $0x134] sm:$0xf]
    %v1630 = vld [vmem:[#allocation9 + $0x150] sm:$0xf]
    %v1631 = vld [vmem:[#allocation9 + $0x16c] sm:$0xf]
    %v1632 = vld [vmem:[#allocation9 + $0x188] sm:$0xf]
    %v1633 = vld [vmem:[#allocation9 + $0x1a4] sm:$0xf]
    %v1650 = vunpack.c.l.b16 %v1618
    %v1651 = vunpack.c.l.b16 %v1619
    %v1652 = vunpack.c.l.b16 %v1620
    %v1653 = vunpack.c.l.b16 %v1621
    %v1654 = vunpack.c.l.b16 %v1622
    %v1655 = vunpack.c.l.b16 %v1623
    %v1656 = vunpack.c.l.b16 %v1624
    %v1657 = vunpack.c.l.b16 %v1625
    %v1658 = vunpack.c.l.b16 %v1626
    %v1659 = vunpack.c.l.b16 %v1627
    %v1660 = vunpack.c.l.b16 %v1628
    %v1661 = vunpack.c.l.b16 %v1629
    %v1662 = vunpack.c.l.b16 %v1630
    %v1663 = vunpack.c.l.b16 %v1631
    %v1664 = vunpack.c.l.b16 %v1632
    %v1665 = vunpack.c.l.b16 %v1633
    %v1666 = vpack.c.b16 %v1651, %v1650
    %v1667 = vpack.c.b16 %v1653, %v1652
    %v1668 = vpack.c.b16 %v1655, %v1654
    %v1669 = vpack.c.b16 %v1657, %v1656
    %v1670 = vpack.c.b16 %v1659, %v1658
    %v1671 = vpack.c.b16 %v1661, %v1660
    %v1672 = vpack.c.b16 %v1663, %v1662
    %v1673 = vpack.c.b16 %v1665, %v1664
    %1682 = vmatprep.subr.bf16.mxu0 0
    %1683 = vmatpush1.bf16.msra.mxu0 %v1666
    %1684 = vmatprep.subr.bf16.mxu0 0
    %1685 = vmatpush1.bf16.msra.mxu0 %v1667
    %1686 = vmatprep.subr.bf16.mxu0 0
    %1687 = vmatpush1.bf16.msra.mxu0 %v1668
    %1688 = vmatprep.subr.bf16.mxu0 0
    %1689 = vmatpush1.bf16.msra.mxu0 %v1669
    %1690 = vmatprep.subr.bf16.mxu0 0
    %1691 = vmatpush1.bf16.msra.mxu0 %v1670
    %1692 = vmatprep.subr.bf16.mxu0 0
    %1693 = vmatpush1.bf16.msra.mxu0 %v1671
    %1694 = vmatprep.subr.bf16.mxu0 0
    %1695 = vmatpush1.bf16.msra.mxu0 %v1672
    %1696 = vmatprep.subr.bf16.mxu0 0
    %1697 = vmatpush1.bf16.msra.mxu0 %v1673
    %1698 = vmatprep.subr.bf16.mxu0 0
    %1699 = vmatpush1.bf16.msra.mxu0 0
    %1700 = vmatprep.subr.bf16.mxu0 0
    %1701 = vmatpush1.bf16.msra.mxu0 0
    %1702 = vmatprep.subr.bf16.mxu0 0
    %1703 = vmatpush1.bf16.msra.mxu0 0
    %1704 = vmatprep.subr.bf16.mxu0 0
    %1705 = vmatpush1.bf16.msra.mxu0 0
    %1706 = vmatprep.subr.bf16.mxu0 0
    %1707 = vmatpush1.bf16.msra.mxu0 0
    %1708 = vmatprep.subr.bf16.mxu0 0
    %1709 = vmatpush1.bf16.msra.mxu0 0
    %1710 = vmatprep.subr.bf16.mxu0 0
    %1711 = vmatpush1.bf16.msra.mxu0 0
    %1712 = vmatprep.subr.bf16.mxu0 0
    %1713 = vmatpush1.bf16.msra.mxu0 0
    %1714 = vmatprep.mubr.bf16.mxu0 0
    %1715 = vmatmul.mubr.bf16.gmra.mrb[0].mxu0 %v1614
    %v1716 = vpop.f32.mrb[0].mxu0
    %v1717 = vadd.f32 0.0, %v1716
    %v1718 = vpop.f32.mrb[0].mxu0
    %v1719 = vpop.f32.mrb[0].mxu0
    %v1720 = vadd.f32 0.0, %v1719
    %v1721 = vpop.f32.mrb[0].mxu0
    %1722 = vmatprep.mubr.bf16.mxu0 0
    %1723 = vmatmul.mubr.bf16.gmra.mrb[0].mxu0 %v1615
    %v1724 = vpop.f32.mrb[0].mxu0
    %v1725 = vadd.f32 0.0, %v1724
    %v1726 = vpop.f32.mrb[0].mxu0
    %v1727 = vpop.f32.mrb[0].mxu0
    %v1728 = vadd.f32 0.0, %v1727
    %v1729 = vpop.f32.mrb[0].mxu0
    %1730 = vmatprep.mubr.bf16.mxu0 0
    %1731 = vmatmul.mubr.bf16.gmra.mrb[0].mxu0 %v1616
    %v1732 = vpop.f32.mrb[0].mxu0
    %v1733 = vadd.f32 0.0, %v1732
    %v1734 = vpop.f32.mrb[0].mxu0
    %v1735 = vpop.f32.mrb[0].mxu0
    %v1736 = vadd.f32 0.0, %v1735
    %v1737 = vpop.f32.mrb[0].mxu0
    %1738 = vmatprep.mubr.bf16.mxu0 0
    %1739 = vmatmul.mubr.bf16.gmra.mrb[0].mxu0 %v1617
    %v1740 = vpop.f32.mrb[0].mxu0
    %v1741 = vadd.f32 0.0, %v1740
    %v1742 = vpop.f32.mrb[0].mxu0
    %v1743 = vpop.f32.mrb[0].mxu0
    %v1744 = vadd.f32 0.0, %v1743
    %v1745 = vpop.f32.mrb[0].mxu0
    %1746 = vdwg.mxu0
    %v1747 = vpack.c.bf16 %v1720, %v1717
    %v1748 = vpack.c.bf16 %v1728, %v1725
    %v1749 = vpack.c.bf16 %v1736, %v1733
    %v1750 = vpack.c.bf16 %v1744, %v1741
    %1751 = vst [vmem:[#allocation2] sm:$0xff] %v1747
    %1752 = vst [vmem:[#allocation2 + $0x8] sm:$0xff] %v1748
    %1753 = vst [vmem:[#allocation2 + $0x10] sm:$0xff] %v1749
    %1754 = vst [vmem:[#allocation2 + $0x18] sm:$0xff] %v1750
    %v1755 = vld [vmem:[#allocation9 + $0x4] sm:$0xf]
    %v1756 = vld [vmem:[#allocation9 + $0x20] sm:$0xf]
    %v1757 = vld [vmem:[#allocation9 + $0x3c] sm:$0xf]
    %v1758 = vld [vmem:[#allocation9 + $0x58] sm:$0xf]
    %v1759 = vld [vmem:[#allocation9 + $0x74] sm:$0xf]
    %v1760 = vld [vmem:[#allocation9 + $0x90] sm:$0xf]
    %v1761 = vld [vmem:[#allocation9 + $0xac] sm:$0xf]
    %v1762 = vld [vmem:[#allocation9 + $0xc8] sm:$0xf]
    %v1763 = vld [vmem:[#allocation9 + $0xe4] sm:$0xf]
    %v1764 = vld [vmem:[#allocation9 + $0x100] sm:$0xf]
    %v1765 = vld [vmem:[#allocation9 + $0x11c] sm:$0xf]
    %v1766 = vld [vmem:[#allocation9 + $0x138] sm:$0xf]
    %v1767 = vld [vmem:[#allocation9 + $0x154] sm:$0xf]
    %v1768 = vld [vmem:[#allocation9 + $0x170] sm:$0xf]
    %v1769 = vld [vmem:[#allocation9 + $0x18c] sm:$0xf]
    %v1770 = vld [vmem:[#allocation9 + $0x1a8] sm:$0xf]
    %v1787 = vunpack.c.l.b16 %v1755
    %v1788 = vunpack.c.l.b16 %v1756
    %v1789 = vunpack.c.l.b16 %v1757
    %v1790 = vunpack.c.l.b16 %v1758
    %v1791 = vunpack.c.l.b16 %v1759
    %v1792 = vunpack.c.l.b16 %v1760
    %v1793 = vunpack.c.l.b16 %v1761
    %v1794 = vunpack.c.l.b16 %v1762
    %v1795 = vunpack.c.l.b16 %v1763
    %v1796 = vunpack.c.l.b16 %v1764
    %v1797 = vunpack.c.l.b16 %v1765
    %v1798 = vunpack.c.l.b16 %v1766
    %v1799 = vunpack.c.l.b16 %v1767
    %v1800 = vunpack.c.l.b16 %v1768
    %v1801 = vunpack.c.l.b16 %v1769
    %v1802 = vunpack.c.l.b16 %v1770
    %v1803 = vpack.c.b16 %v1788, %v1787
    %v1804 = vpack.c.b16 %v1790, %v1789
    %v1805 = vpack.c.b16 %v1792, %v1791
    %v1806 = vpack.c.b16 %v1794, %v1793
    %v1807 = vpack.c.b16 %v1796, %v1795
    %v1808 = vpack.c.b16 %v1798, %v1797
    %v1809 = vpack.c.b16 %v1800, %v1799
    %v1810 = vpack.c.b16 %v1802, %v1801
    %1819 = vmatprep.subr.bf16.mxu0 0
    %1820 = vmatpush1.bf16.msra.mxu0 %v1803
    %1821 = vmatprep.subr.bf16.mxu0 0
    %1822 = vmatpush1.bf16.msra.mxu0 %v1804
    %1823 = vmatprep.subr.bf16.mxu0 0
    %1824 = vmatpush1.bf16.msra.mxu0 %v1805
    %1825 = vmatprep.subr.bf16.mxu0 0
    %1826 = vmatpush1.bf16.msra.mxu0 %v1806
    %1827 = vmatprep.subr.bf16.mxu0 0
    %1828 = vmatpush1.bf16.msra.mxu0 %v1807
    %1829 = vmatprep.subr.bf16.mxu0 0
    %1830 = vmatpush1.bf16.msra.mxu0 %v1808
    %1831 = vmatprep.subr.bf16.mxu0 0
    %1832 = vmatpush1.bf16.msra.mxu0 %v1809
    %1833 = vmatprep.subr.bf16.mxu0 0
    %1834 = vmatpush1.bf16.msra.mxu0 %v1810
    %1835 = vmatprep.subr.bf16.mxu0 0
    %1836 = vmatpush1.bf16.msra.mxu0 0
    %1837 = vmatprep.subr.bf16.mxu0 0
    %1838 = vmatpush1.bf16.msra.mxu0 0
    %1839 = vmatprep.subr.bf16.mxu0 0
    %1840 = vmatpush1.bf16.msra.mxu0 0
    %1841 = vmatprep.subr.bf16.mxu0 0
    %1842 = vmatpush1.bf16.msra.mxu0 0
    %1843 = vmatprep.subr.bf16.mxu0 0
    %1844 = vmatpush1.bf16.msra.mxu0 0
    %1845 = vmatprep.subr.bf16.mxu0 0
    %1846 = vmatpush1.bf16.msra.mxu0 0
    %1847 = vmatprep.subr.bf16.mxu0 0
    %1848 = vmatpush1.bf16.msra.mxu0 0
    %1849 = vmatprep.subr.bf16.mxu0 0
    %1850 = vmatpush1.bf16.msra.mxu0 0
    %1851 = vmatprep.mubr.bf16.mxu0 0
    %1852 = vmatmul.mubr.bf16.gmra.mrb[0].mxu0 %v1614
    %v1853 = vpop.f32.mrb[0].mxu0
    %v1854 = vadd.f32 0.0, %v1853
    %v1855 = vpop.f32.mrb[0].mxu0
    %v1856 = vpop.f32.mrb[0].mxu0
    %v1857 = vadd.f32 0.0, %v1856
    %v1858 = vpop.f32.mrb[0].mxu0
    %1859 = vmatprep.mubr.bf16.mxu0 0
    %1860 = vmatmul.mubr.bf16.gmra.mrb[0].mxu0 %v1615
    %v1861 = vpop.f32.mrb[0].mxu0
    %v1862 = vadd.f32 0.0, %v1861
    %v1863 = vpop.f32.mrb[0].mxu0
    %v1864 = vpop.f32.mrb[0].mxu0
    %v1865 = vadd.f32 0.0, %v1864
    %v1866 = vpop.f32.mrb[0].mxu0
    %1867 = vmatprep.mubr.bf16.mxu0 0
    %1868 = vmatmul.mubr.bf16.gmra.mrb[0].mxu0 %v1616
    %v1869 = vpop.f32.mrb[0].mxu0
    %v1870 = vadd.f32 0.0, %v1869
    %v1871 = vpop.f32.mrb[0].mxu0
    %v1872 = vpop.f32.mrb[0].mxu0
    %v1873 = vadd.f32 0.0, %v1872
    %v1874 = vpop.f32.mrb[0].mxu0
    %1875 = vmatprep.mubr.bf16.mxu0 0
    %1876 = vmatmul.mubr.bf16.gmra.mrb[0].mxu0 %v1617
    %v1877 = vpop.f32.mrb[0].mxu0
    %v1878 = vadd.f32 0.0, %v1877
    %v1879 = vpop.f32.mrb[0].mxu0
    %v1880 = vpop.f32.mrb[0].mxu0
    %v1881 = vadd.f32 0.0, %v1880
    %v1882 = vpop.f32.mrb[0].mxu0
    %1883 = vdwg.mxu0
    %v1884 = vpack.c.bf16 %v1857, %v1854
    %v1885 = vpack.c.bf16 %v1865, %v1862
    %v1886 = vpack.c.bf16 %v1873, %v1870
    %v1887 = vpack.c.bf16 %v1881, %v1878
    %1888 = vst [vmem:[#allocation2 + $0x20] sm:$0xff] %v1884
    %1889 = vst [vmem:[#allocation2 + $0x28] sm:$0xff] %v1885
    %1890 = vst [vmem:[#allocation2 + $0x30] sm:$0xff] %v1886
    %1891 = vst [vmem:[#allocation2 + $0x38] sm:$0xff] %v1887
    %v1892 = vld [vmem:[#allocation9 + $0x8] sm:$0xf]
    %v1893 = vld [vmem:[#allocation9 + $0x24] sm:$0xf]
    %v1894 = vld [vmem:[#allocation9 + $0x40] sm:$0xf]
    %v1895 = vld [vmem:[#allocation9 + $0x5c] sm:$0xf]
    %v1896 = vld [vmem:[#allocation9 + $0x78] sm:$0xf]
    %v1897 = vld [vmem:[#allocation9 + $0x94] sm:$0xf]
    %v1898 = vld [vmem:[#allocation9 + $0xb0] sm:$0xf]
    %v1899 = vld [vmem:[#allocation9 + $0xcc] sm:$0xf]
    %v1900 = vld [vmem:[#allocation9 + $0xe8] sm:$0xf]
    %v1901 = vld [vmem:[#allocation9 + $0x104] sm:$0xf]
    %v1902 = vld [vmem:[#allocation9 + $0x120] sm:$0xf]
    %v1903 = vld [vmem:[#allocation9 + $0x13c] sm:$0xf]
    %v1904 = vld [vmem:[#allocation9 + $0x158] sm:$0xf]
    %v1905 = vld [vmem:[#allocation9 + $0x174] sm:$0xf]
    %v1906 = vld [vmem:[#allocation9 + $0x190] sm:$0xf]
    %v1907 = vld [vmem:[#allocation9 + $0x1ac] sm:$0xf]
    %v1924 = vunpack.c.l.b16 %v1892
    %v1925 = vunpack.c.l.b16 %v1893
    %v1926 = vunpack.c.l.b16 %v1894
    %v1927 = vunpack.c.l.b16 %v1895
    %v1928 = vunpack.c.l.b16 %v1896
    %v1929 = vunpack.c.l.b16 %v1897
    %v1930 = vunpack.c.l.b16 %v1898
    %v1931 = vunpack.c.l.b16 %v1899
    %v1932 = vunpack.c.l.b16 %v1900
    %v1933 = vunpack.c.l.b16 %v1901
    %v1934 = vunpack.c.l.b16 %v1902
    %v1935 = vunpack.c.l.b16 %v1903
    %v1936 = vunpack.c.l.b16 %v1904
    %v1937 = vunpack.c.l.b16 %v1905
    %v1938 = vunpack.c.l.b16 %v1906
    %v1939 = vunpack.c.l.b16 %v1907
    %v1940 = vpack.c.b16 %v1925, %v1924
    %v1941 = vpack.c.b16 %v1927, %v1926
    %v1942 = vpack.c.b16 %v1929, %v1928
    %v1943 = vpack.c.b16 %v1931, %v1930
    %v1944 = vpack.c.b16 %v1933, %v1932
    %v1945 = vpack.c.b16 %v1935, %v1934
    %v1946 = vpack.c.b16 %v1937, %v1936
    %v1947 = vpack.c.b16 %v1939, %v1938
    %1956 = vmatprep.subr.bf16.mxu0 0
    %1957 = vmatpush1.bf16.msra.mxu0 %v1940
    %1958 = vmatprep.subr.bf16.mxu0 0
    %1959 = vmatpush1.bf16.msra.mxu0 %v1941
    %1960 = vmatprep.subr.bf16.mxu0 0
    %1961 = vmatpush1.bf16.msra.mxu0 %v1942
    %1962 = vmatprep.subr.bf16.mxu0 0
    %1963 = vmatpush1.bf16.msra.mxu0 %v1943
    %1964 = vmatprep.subr.bf16.mxu0 0
    %1965 = vmatpush1.bf16.msra.mxu0 %v1944
    %1966 = vmatprep.subr.bf16.mxu0 0
    %1967 = vmatpush1.bf16.msra.mxu0 %v1945
    %1968 = vmatprep.subr.bf16.mxu0 0
    %1969 = vmatpush1.bf16.msra.mxu0 %v1946
    %1970 = vmatprep.subr.bf16.mxu0 0
    %1971 = vmatpush1.bf16.msra.mxu0 %v1947
    %1972 = vmatprep.subr.bf16.mxu0 0
    %1973 = vmatpush1.bf16.msra.mxu0 0
    %1974 = vmatprep.subr.bf16.mxu0 0
    %1975 = vmatpush1.bf16.msra.mxu0 0
    %1976 = vmatprep.subr.bf16.mxu0 0
    %1977 = vmatpush1.bf16.msra.mxu0 0
    %1978 = vmatprep.subr.bf16.mxu0 0
    %1979 = vmatpush1.bf16.msra.mxu0 0
    %1980 = vmatprep.subr.bf16.mxu0 0
    %1981 = vmatpush1.bf16.msra.mxu0 0
    %1982 = vmatprep.subr.bf16.mxu0 0
    %1983 = vmatpush1.bf16.msra.mxu0 0
    %1984 = vmatprep.subr.bf16.mxu0 0
    %1985 = vmatpush1.bf16.msra.mxu0 0
    %1986 = vmatprep.subr.bf16.mxu0 0
    %1987 = vmatpush1.bf16.msra.mxu0 0
    %1988 = vmatprep.mubr.bf16.mxu0 0
    %1989 = vmatmul.mubr.bf16.gmra.mrb[0].mxu0 %v1614
    %v1990 = vpop.f32.mrb[0].mxu0
    %v1991 = vadd.f32 0.0, %v1990
    %v1992 = vpop.f32.mrb[0].mxu0
    %v1993 = vpop.f32.mrb[0].mxu0
    %v1994 = vadd.f32 0.0, %v1993
    %v1995 = vpop.f32.mrb[0].mxu0
    %1996 = vmatprep.mubr.bf16.mxu0 0
    %1997 = vmatmul.mubr.bf16.gmra.mrb[0].mxu0 %v1615
    %v1998 = vpop.f32.mrb[0].mxu0
    %v1999 = vadd.f32 0.0, %v1998
    %v2000 = vpop.f32.mrb[0].mxu0
    %v2001 = vpop.f32.mrb[0].mxu0
    %v2002 = vadd.f32 0.0, %v2001
    %v2003 = vpop.f32.mrb[0].mxu0
    %2004 = vmatprep.mubr.bf16.mxu0 0
    %2005 = vmatmul.mubr.bf16.gmra.mrb[0].mxu0 %v1616
    %v2006 = vpop.f32.mrb[0].mxu0
    %v2007 = vadd.f32 0.0, %v2006
    %v2008 = vpop.f32.mrb[0].mxu0
    %v2009 = vpop.f32.mrb[0].mxu0
    %v2010 = vadd.f32 0.0, %v2009
    %v2011 = vpop.f32.mrb[0].mxu0
    %2012 = vmatprep.mubr.bf16.mxu0 0
    %2013 = vmatmul.mubr.bf16.gmra.mrb[0].mxu0 %v1617
    %v2014 = vpop.f32.mrb[0].mxu0
    %v2015 = vadd.f32 0.0, %v2014
    %v2016 = vpop.f32.mrb[0].mxu0
    %v2017 = vpop.f32.mrb[0].mxu0
    %v2018 = vadd.f32 0.0, %v2017
    %v2019 = vpop.f32.mrb[0].mxu0
    %2020 = vdwg.mxu0
    %v2021 = vpack.c.bf16 %v1994, %v1991
    %v2022 = vpack.c.bf16 %v2002, %v1999
    %v2023 = vpack.c.bf16 %v2010, %v2007
    %v2024 = vpack.c.bf16 %v2018, %v2015
    %2025 = vst [vmem:[#allocation2 + $0x40] sm:$0xff] %v2021
    %2026 = vst [vmem:[#allocation2 + $0x48] sm:$0xff] %v2022
    %2027 = vst [vmem:[#allocation2 + $0x50] sm:$0xff] %v2023
    %2028 = vst [vmem:[#allocation2 + $0x58] sm:$0xff] %v2024
    %v2029 = vld [vmem:[#allocation9 + $0xc] sm:$0xf]
    %v2030 = vld [vmem:[#allocation9 + $0x28] sm:$0xf]
    %v2031 = vld [vmem:[#allocation9 + $0x44] sm:$0xf]
    %v2032 = vld [vmem:[#allocation9 + $0x60] sm:$0xf]
    %v2033 = vld [vmem:[#allocation9 + $0x7c] sm:$0xf]
    %v2034 = vld [vmem:[#allocation9 + $0x98] sm:$0xf]
    %v2035 = vld [vmem:[#allocation9 + $0xb4] sm:$0xf]
    %v2036 = vld [vmem:[#allocation9 + $0xd0] sm:$0xf]
    %v2037 = vld [vmem:[#allocation9 + $0xec] sm:$0xf]
    %v2038 = vld [vmem:[#allocation9 + $0x108] sm:$0xf]
    %v2039 = vld [vmem:[#allocation9 + $0x124] sm:$0xf]
    %v2040 = vld [vmem:[#allocation9 + $0x140] sm:$0xf]
    %v2041 = vld [vmem:[#allocation9 + $0x15c] sm:$0xf]
    %v2042 = vld [vmem:[#allocation9 + $0x178] sm:$0xf]
    %v2043 = vld [vmem:[#allocation9 + $0x194] sm:$0xf]
    %v2044 = vld [vmem:[#allocation9 + $0x1b0] sm:$0xf]
    %v2061 = vunpack.c.l.b16 %v2029
    %v2062 = vunpack.c.l.b16 %v2030
    %v2063 = vunpack.c.l.b16 %v2031
    %v2064 = vunpack.c.l.b16 %v2032
    %v2065 = vunpack.c.l.b16 %v2033
    %v2066 = vunpack.c.l.b16 %v2034
    %v2067 = vunpack.c.l.b16 %v2035
    %v2068 = vunpack.c.l.b16 %v2036
    %v2069 = vunpack.c.l.b16 %v2037
    %v2070 = vunpack.c.l.b16 %v2038
    %v2071 = vunpack.c.l.b16 %v2039
    %v2072 = vunpack.c.l.b16 %v2040
    %v2073 = vunpack.c.l.b16 %v2041
    %v2074 = vunpack.c.l.b16 %v2042
    %v2075 = vunpack.c.l.b16 %v2043
    %v2076 = vunpack.c.l.b16 %v2044
    %v2077 = vpack.c.b16 %v2062, %v2061
    %v2078 = vpack.c.b16 %v2064, %v2063
    %v2079 = vpack.c.b16 %v2066, %v2065
    %v2080 = vpack.c.b16 %v2068, %v2067
    %v2081 = vpack.c.b16 %v2070, %v2069
    %v2082 = vpack.c.b16 %v2072, %v2071
    %v2083 = vpack.c.b16 %v2074, %v2073
    %v2084 = vpack.c.b16 %v2076, %v2075
    %2093 = vmatprep.subr.bf16.mxu0 0
    %2094 = vmatpush1.bf16.msra.mxu0 %v2077
    %2095 = vmatprep.subr.bf16.mxu0 0
    %2096 = vmatpush1.bf16.msra.mxu0 %v2078
    %2097 = vmatprep.subr.bf16.mxu0 0
    %2098 = vmatpush1.bf16.msra.mxu0 %v2079
    %2099 = vmatprep.subr.bf16.mxu0 0
    %2100 = vmatpush1.bf16.msra.mxu0 %v2080
    %2101 = vmatprep.subr.bf16.mxu0 0
    %2102 = vmatpush1.bf16.msra.mxu0 %v2081
    %2103 = vmatprep.subr.bf16.mxu0 0
    %2104 = vmatpush1.bf16.msra.mxu0 %v2082
    %2105 = vmatprep.subr.bf16.mxu0 0
    %2106 = vmatpush1.bf16.msra.mxu0 %v2083
    %2107 = vmatprep.subr.bf16.mxu0 0
    %2108 = vmatpush1.bf16.msra.mxu0 %v2084
    %2109 = vmatprep.subr.bf16.mxu0 0
    %2110 = vmatpush1.bf16.msra.mxu0 0
    %2111 = vmatprep.subr.bf16.mxu0 0
    %2112 = vmatpush1.bf16.msra.mxu0 0
    %2113 = vmatprep.subr.bf16.mxu0 0
    %2114 = vmatpush1.bf16.msra.mxu0 0
    %2115 = vmatprep.subr.bf16.mxu0 0
    %2116 = vmatpush1.bf16.msra.mxu0 0
    %2117 = vmatprep.subr.bf16.mxu0 0
    %2118 = vmatpush1.bf16.msra.mxu0 0
    %2119 = vmatprep.subr.bf16.mxu0 0
    %2120 = vmatpush1.bf16.msra.mxu0 0
    %2121 = vmatprep.subr.bf16.mxu0 0
    %2122 = vmatpush1.bf16.msra.mxu0 0
    %2123 = vmatprep.subr.bf16.mxu0 0
    %2124 = vmatpush1.bf16.msra.mxu0 0
    %2125 = vmatprep.mubr.bf16.mxu0 0
    %2126 = vmatmul.mubr.bf16.gmra.mrb[0].mxu0 %v1614
    %v2127 = vpop.f32.mrb[0].mxu0
    %v2128 = vadd.f32 0.0, %v2127
    %v2129 = vpop.f32.mrb[0].mxu0
    %v2130 = vpop.f32.mrb[0].mxu0
    %v2131 = vadd.f32 0.0, %v2130
    %v2132 = vpop.f32.mrb[0].mxu0
    %2133 = vmatprep.mubr.bf16.mxu0 0
    %2134 = vmatmul.mubr.bf16.gmra.mrb[0].mxu0 %v1615
    %v2135 = vpop.f32.mrb[0].mxu0
    %v2136 = vadd.f32 0.0, %v2135
    %v2137 = vpop.f32.mrb[0].mxu0
    %v2138 = vpop.f32.mrb[0].mxu0
    %v2139 = vadd.f32 0.0, %v2138
    %v2140 = vpop.f32.mrb[0].mxu0
    %2141 = vmatprep.mubr.bf16.mxu0 0
    %2142 = vmatmul.mubr.bf16.gmra.mrb[0].mxu0 %v1616
    %v2143 = vpop.f32.mrb[0].mxu0
    %v2144 = vadd.f32 0.0, %v2143
    %v2145 = vpop.f32.mrb[0].mxu0
    %v2146 = vpop.f32.mrb[0].mxu0
    %v2147 = vadd.f32 0.0, %v2146
    %v2148 = vpop.f32.mrb[0].mxu0
    %2149 = vmatprep.mubr.bf16.mxu0 0
    %2150 = vmatmul.mubr.bf16.gmra.mrb[0].mxu0 %v1617
    %v2151 = vpop.f32.mrb[0].mxu0
    %v2152 = vadd.f32 0.0, %v2151
    %v2153 = vpop.f32.mrb[0].mxu0
    %v2154 = vpop.f32.mrb[0].mxu0
    %v2155 = vadd.f32 0.0, %v2154
    %v2156 = vpop.f32.mrb[0].mxu0
    %2157 = vdwg.mxu0
    %v2158 = vpack.c.bf16 %v2131, %v2128
    %v2159 = vpack.c.bf16 %v2139, %v2136
    %v2160 = vpack.c.bf16 %v2147, %v2144
    %v2161 = vpack.c.bf16 %v2155, %v2152
    %2162 = vst [vmem:[#allocation2 + $0x60] sm:$0xff] %v2158
    %2163 = vst [vmem:[#allocation2 + $0x68] sm:$0xff] %v2159
    %2164 = vst [vmem:[#allocation2 + $0x70] sm:$0xff] %v2160
    %2165 = vst [vmem:[#allocation2 + $0x78] sm:$0xff] %v2161
    %v2166 = vld [vmem:[#allocation9 + $0x10] sm:$0xf]
    %v2167 = vld [vmem:[#allocation9 + $0x2c] sm:$0xf]
    %v2168 = vld [vmem:[#allocation9 + $0x48] sm:$0xf]
    %v2169 = vld [vmem:[#allocation9 + $0x64] sm:$0xf]
    %v2170 = vld [vmem:[#allocation9 + $0x80] sm:$0xf]
    %v2171 = vld [vmem:[#allocation9 + $0x9c] sm:$0xf]
    %v2172 = vld [vmem:[#allocation9 + $0xb8] sm:$0xf]
    %v2173 = vld [vmem:[#allocation9 + $0xd4] sm:$0xf]
    %v2174 = vld [vmem:[#allocation9 + $0xf0] sm:$0xf]
    %v2175 = vld [vmem:[#allocation9 + $0x10c] sm:$0xf]
    %v2176 = vld [vmem:[#allocation9 + $0x128] sm:$0xf]
    %v2177 = vld [vmem:[#allocation9 + $0x144] sm:$0xf]
    %v2178 = vld [vmem:[#allocation9 + $0x160] sm:$0xf]
    %v2179 = vld [vmem:[#allocation9 + $0x17c] sm:$0xf]
    %v2180 = vld [vmem:[#allocation9 + $0x198] sm:$0xf]
    %v2181 = vld [vmem:[#allocation9 + $0x1b4] sm:$0xf]
    %v2198 = vunpack.c.l.b16 %v2166
    %v2199 = vunpack.c.l.b16 %v2167
    %v2200 = vunpack.c.l.b16 %v2168
    %v2201 = vunpack.c.l.b16 %v2169
    %v2202 = vunpack.c.l.b16 %v2170
    %v2203 = vunpack.c.l.b16 %v2171
    %v2204 = vunpack.c.l.b16 %v2172
    %v2205 = vunpack.c.l.b16 %v2173
    %v2206 = vunpack.c.l.b16 %v2174
    %v2207 = vunpack.c.l.b16 %v2175
    %v2208 = vunpack.c.l.b16 %v2176
    %v2209 = vunpack.c.l.b16 %v2177
    %v2210 = vunpack.c.l.b16 %v2178
    %v2211 = vunpack.c.l.b16 %v2179
    %v2212 = vunpack.c.l.b16 %v2180
    %v2213 = vunpack.c.l.b16 %v2181
    %v2214 = vpack.c.b16 %v2199, %v2198
    %v2215 = vpack.c.b16 %v2201, %v2200
    %v2216 = vpack.c.b16 %v2203, %v2202
    %v2217 = vpack.c.b16 %v2205, %v2204
    %v2218 = vpack.c.b16 %v2207, %v2206
    %v2219 = vpack.c.b16 %v2209, %v2208
    %v2220 = vpack.c.b16 %v2211, %v2210
    %v2221 = vpack.c.b16 %v2213, %v2212
    %2230 = vmatprep.subr.bf16.mxu0 0
    %2231 = vmatpush1.bf16.msra.mxu0 %v2214
    %2232 = vmatprep.subr.bf16.mxu0 0
    %2233 = vmatpush1.bf16.msra.mxu0 %v2215
    %2234 = vmatprep.subr.bf16.mxu0 0
    %2235 = vmatpush1.bf16.msra.mxu0 %v2216
    %2236 = vmatprep.subr.bf16.mxu0 0
    %2237 = vmatpush1.bf16.msra.mxu0 %v2217
    %2238 = vmatprep.subr.bf16.mxu0 0
    %2239 = vmatpush1.bf16.msra.mxu0 %v2218
    %2240 = vmatprep.subr.bf16.mxu0 0
    %2241 = vmatpush1.bf16.msra.mxu0 %v2219
    %2242 = vmatprep.subr.bf16.mxu0 0
    %2243 = vmatpush1.bf16.msra.mxu0 %v2220
    %2244 = vmatprep.subr.bf16.mxu0 0
    %2245 = vmatpush1.bf16.msra.mxu0 %v2221
    %2246 = vmatprep.subr.bf16.mxu0 0
    %2247 = vmatpush1.bf16.msra.mxu0 0
    %2248 = vmatprep.subr.bf16.mxu0 0
    %2249 = vmatpush1.bf16.msra.mxu0 0
    %2250 = vmatprep.subr.bf16.mxu0 0
    %2251 = vmatpush1.bf16.msra.mxu0 0
    %2252 = vmatprep.subr.bf16.mxu0 0
    %2253 = vmatpush1.bf16.msra.mxu0 0
    %2254 = vmatprep.subr.bf16.mxu0 0
    %2255 = vmatpush1.bf16.msra.mxu0 0
    %2256 = vmatprep.subr.bf16.mxu0 0
    %2257 = vmatpush1.bf16.msra.mxu0 0
    %2258 = vmatprep.subr.bf16.mxu0 0
    %2259 = vmatpush1.bf16.msra.mxu0 0
    %2260 = vmatprep.subr.bf16.mxu0 0
    %2261 = vmatpush1.bf16.msra.mxu0 0
    %2262 = vmatprep.mubr.bf16.mxu0 0
    %2263 = vmatmul.mubr.bf16.gmra.mrb[0].mxu0 %v1614
    %v2264 = vpop.f32.mrb[0].mxu0
    %v2265 = vadd.f32 0.0, %v2264
    %v2266 = vpop.f32.mrb[0].mxu0
    %v2267 = vpop.f32.mrb[0].mxu0
    %v2268 = vadd.f32 0.0, %v2267
    %v2269 = vpop.f32.mrb[0].mxu0
    %2270 = vmatprep.mubr.bf16.mxu0 0
    %2271 = vmatmul.mubr.bf16.gmra.mrb[0].mxu0 %v1615
    %v2272 = vpop.f32.mrb[0].mxu0
    %v2273 = vadd.f32 0.0, %v2272
    %v2274 = vpop.f32.mrb[0].mxu0
    %v2275 = vpop.f32.mrb[0].mxu0
    %v2276 = vadd.f32 0.0, %v2275
    %v2277 = vpop.f32.mrb[0].mxu0
    %2278 = vmatprep.mubr.bf16.mxu0 0
    %2279 = vmatmul.mubr.bf16.gmra.mrb[0].mxu0 %v1616
    %v2280 = vpop.f32.mrb[0].mxu0
    %v2281 = vadd.f32 0.0, %v2280
    %v2282 = vpop.f32.mrb[0].mxu0
    %v2283 = vpop.f32.mrb[0].mxu0
    %v2284 = vadd.f32 0.0, %v2283
    %v2285 = vpop.f32.mrb[0].mxu0
    %2286 = vmatprep.mubr.bf16.mxu0 0
    %2287 = vmatmul.mubr.bf16.gmra.mrb[0].mxu0 %v1617
    %v2288 = vpop.f32.mrb[0].mxu0
    %v2289 = vadd.f32 0.0, %v2288
    %v2290 = vpop.f32.mrb[0].mxu0
    %v2291 = vpop.f32.mrb[0].mxu0
    %v2292 = vadd.f32 0.0, %v2291
    %v2293 = vpop.f32.mrb[0].mxu0
    %2294 = vdwg.mxu0
    %v2295 = vpack.c.bf16 %v2268, %v2265
    %v2296 = vpack.c.bf16 %v2276, %v2273
    %v2297 = vpack.c.bf16 %v2284, %v2281
    %v2298 = vpack.c.bf16 %v2292, %v2289
    %2299 = vst [vmem:[#allocation2 + $0x80] sm:$0xff] %v2295
    %2300 = vst [vmem:[#allocation2 + $0x88] sm:$0xff] %v2296
    %2301 = vst [vmem:[#allocation2 + $0x90] sm:$0xff] %v2297
    %2302 = vst [vmem:[#allocation2 + $0x98] sm:$0xff] %v2298
    %v2303 = vld [vmem:[#allocation9 + $0x14] sm:$0xf]
    %v2304 = vld [vmem:[#allocation9 + $0x30] sm:$0xf]
    %v2305 = vld [vmem:[#allocation9 + $0x4c] sm:$0xf]
    %v2306 = vld [vmem:[#allocation9 + $0x68] sm:$0xf]
    %v2307 = vld [vmem:[#allocation9 + $0x84] sm:$0xf]
    %v2308 = vld [vmem:[#allocation9 + $0xa0] sm:$0xf]
    %v2309 = vld [vmem:[#allocation9 + $0xbc] sm:$0xf]
    %v2310 = vld [vmem:[#allocation9 + $0xd8] sm:$0xf]
    %v2311 = vld [vmem:[#allocation9 + $0xf4] sm:$0xf]
    %v2312 = vld [vmem:[#allocation9 + $0x110] sm:$0xf]
    %v2313 = vld [vmem:[#allocation9 + $0x12c] sm:$0xf]
    %v2314 = vld [vmem:[#allocation9 + $0x148] sm:$0xf]
    %v2315 = vld [vmem:[#allocation9 + $0x164] sm:$0xf]
    %v2316 = vld [vmem:[#allocation9 + $0x180] sm:$0xf]
    %v2317 = vld [vmem:[#allocation9 + $0x19c] sm:$0xf]
    %v2318 = vld [vmem:[#allocation9 + $0x1b8] sm:$0xf]
    %v2335 = vunpack.c.l.b16 %v2303
    %v2336 = vunpack.c.l.b16 %v2304
    %v2337 = vunpack.c.l.b16 %v2305
    %v2338 = vunpack.c.l.b16 %v2306
    %v2339 = vunpack.c.l.b16 %v2307
    %v2340 = vunpack.c.l.b16 %v2308
    %v2341 = vunpack.c.l.b16 %v2309
    %v2342 = vunpack.c.l.b16 %v2310
    %v2343 = vunpack.c.l.b16 %v2311
    %v2344 = vunpack.c.l.b16 %v2312
    %v2345 = vunpack.c.l.b16 %v2313
    %v2346 = vunpack.c.l.b16 %v2314
    %v2347 = vunpack.c.l.b16 %v2315
    %v2348 = vunpack.c.l.b16 %v2316
    %v2349 = vunpack.c.l.b16 %v2317
    %v2350 = vunpack.c.l.b16 %v2318
    %v2351 = vpack.c.b16 %v2336, %v2335
    %v2352 = vpack.c.b16 %v2338, %v2337
    %v2353 = vpack.c.b16 %v2340, %v2339
    %v2354 = vpack.c.b16 %v2342, %v2341
    %v2355 = vpack.c.b16 %v2344, %v2343
    %v2356 = vpack.c.b16 %v2346, %v2345
    %v2357 = vpack.c.b16 %v2348, %v2347
    %v2358 = vpack.c.b16 %v2350, %v2349
    %2367 = vmatprep.subr.bf16.mxu0 0
    %2368 = vmatpush1.bf16.msra.mxu0 %v2351
    %2369 = vmatprep.subr.bf16.mxu0 0
    %2370 = vmatpush1.bf16.msra.mxu0 %v2352
    %2371 = vmatprep.subr.bf16.mxu0 0
    %2372 = vmatpush1.bf16.msra.mxu0 %v2353
    %2373 = vmatprep.subr.bf16.mxu0 0
    %2374 = vmatpush1.bf16.msra.mxu0 %v2354
    %2375 = vmatprep.subr.bf16.mxu0 0
    %2376 = vmatpush1.bf16.msra.mxu0 %v2355
    %2377 = vmatprep.subr.bf16.mxu0 0
    %2378 = vmatpush1.bf16.msra.mxu0 %v2356
    %2379 = vmatprep.subr.bf16.mxu0 0
    %2380 = vmatpush1.bf16.msra.mxu0 %v2357
    %2381 = vmatprep.subr.bf16.mxu0 0
    %2382 = vmatpush1.bf16.msra.mxu0 %v2358
    %2383 = vmatprep.subr.bf16.mxu0 0
    %2384 = vmatpush1.bf16.msra.mxu0 0
    %2385 = vmatprep.subr.bf16.mxu0 0
    %2386 = vmatpush1.bf16.msra.mxu0 0
    %2387 = vmatprep.subr.bf16.mxu0 0
    %2388 = vmatpush1.bf16.msra.mxu0 0
    %2389 = vmatprep.subr.bf16.mxu0 0
    %2390 = vmatpush1.bf16.msra.mxu0 0
    %2391 = vmatprep.subr.bf16.mxu0 0
    %2392 = vmatpush1.bf16.msra.mxu0 0
    %2393 = vmatprep.subr.bf16.mxu0 0
    %2394 = vmatpush1.bf16.msra.mxu0 0
    %2395 = vmatprep.subr.bf16.mxu0 0
    %2396 = vmatpush1.bf16.msra.mxu0 0
    %2397 = vmatprep.subr.bf16.mxu0 0
    %2398 = vmatpush1.bf16.msra.mxu0 0
    %2399 = vmatprep.mubr.bf16.mxu0 0
    %2400 = vmatmul.mubr.bf16.gmra.mrb[0].mxu0 %v1614
    %v2401 = vpop.f32.mrb[0].mxu0
    %v2402 = vadd.f32 0.0, %v2401
    %v2403 = vpop.f32.mrb[0].mxu0
    %v2404 = vpop.f32.mrb[0].mxu0
    %v2405 = vadd.f32 0.0, %v2404
    %v2406 = vpop.f32.mrb[0].mxu0
    %2407 = vmatprep.mubr.bf16.mxu0 0
    %2408 = vmatmul.mubr.bf16.gmra.mrb[0].mxu0 %v1615
    %v2409 = vpop.f32.mrb[0].mxu0
    %v2410 = vadd.f32 0.0, %v2409
    %v2411 = vpop.f32.mrb[0].mxu0
    %v2412 = vpop.f32.mrb[0].mxu0
    %v2413 = vadd.f32 0.0, %v2412
    %v2414 = vpop.f32.mrb[0].mxu0
    %2415 = vmatprep.mubr.bf16.mxu0 0
    %2416 = vmatmul.mubr.bf16.gmra.mrb[0].mxu0 %v1616
    %v2417 = vpop.f32.mrb[0].mxu0
    %v2418 = vadd.f32 0.0, %v2417
    %v2419 = vpop.f32.mrb[0].mxu0
    %v2420 = vpop.f32.mrb[0].mxu0
    %v2421 = vadd.f32 0.0, %v2420
    %v2422 = vpop.f32.mrb[0].mxu0
    %2423 = vmatprep.mubr.bf16.mxu0 0
    %2424 = vmatmul.mubr.bf16.gmra.mrb[0].mxu0 %v1617
    %v2425 = vpop.f32.mrb[0].mxu0
    %v2426 = vadd.f32 0.0, %v2425
    %v2427 = vpop.f32.mrb[0].mxu0
    %v2428 = vpop.f32.mrb[0].mxu0
    %v2429 = vadd.f32 0.0, %v2428
    %v2430 = vpop.f32.mrb[0].mxu0
    %2431 = vdwg.mxu0
    %v2432 = vpack.c.bf16 %v2405, %v2402
    %v2433 = vpack.c.bf16 %v2413, %v2410
    %v2434 = vpack.c.bf16 %v2421, %v2418
    %v2435 = vpack.c.bf16 %v2429, %v2426
    %2436 = vst [vmem:[#allocation2 + $0xa0] sm:$0xff] %v2432
    %2437 = vst [vmem:[#allocation2 + $0xa8] sm:$0xff] %v2433
    %2438 = vst [vmem:[#allocation2 + $0xb0] sm:$0xff] %v2434
    %2439 = vst [vmem:[#allocation2 + $0xb8] sm:$0xff] %v2435
    %v2440 = vld [vmem:[#allocation9 + $0x18] sm:$0xf]
    %v2441 = vld [vmem:[#allocation9 + $0x34] sm:$0xf]
    %v2442 = vld [vmem:[#allocation9 + $0x50] sm:$0xf]
    %v2443 = vld [vmem:[#allocation9 + $0x6c] sm:$0xf]
    %v2444 = vld [vmem:[#allocation9 + $0x88] sm:$0xf]
    %v2445 = vld [vmem:[#allocation9 + $0xa4] sm:$0xf]
    %v2446 = vld [vmem:[#allocation9 + $0xc0] sm:$0xf]
    %v2447 = vld [vmem:[#allocation9 + $0xdc] sm:$0xf]
    %v2448 = vld [vmem:[#allocation9 + $0xf8] sm:$0xf]
    %v2449 = vld [vmem:[#allocation9 + $0x114] sm:$0xf]
    %v2450 = vld [vmem:[#allocation9 + $0x130] sm:$0xf]
    %v2451 = vld [vmem:[#allocation9 + $0x14c] sm:$0xf]
    %v2452 = vld [vmem:[#allocation9 + $0x168] sm:$0xf]
    %v2453 = vld [vmem:[#allocation9 + $0x184] sm:$0xf]
    %v2454 = vld [vmem:[#allocation9 + $0x1a0] sm:$0xf]
    %v2455 = vld [vmem:[#allocation9 + $0x1bc] sm:$0xf]
    %v2472 = vunpack.c.l.b16 %v2440
    %v2473 = vunpack.c.l.b16 %v2441
    %v2474 = vunpack.c.l.b16 %v2442
    %v2475 = vunpack.c.l.b16 %v2443
    %v2476 = vunpack.c.l.b16 %v2444
    %v2477 = vunpack.c.l.b16 %v2445
    %v2478 = vunpack.c.l.b16 %v2446
    %v2479 = vunpack.c.l.b16 %v2447
    %v2480 = vunpack.c.l.b16 %v2448
    %v2481 = vunpack.c.l.b16 %v2449
    %v2482 = vunpack.c.l.b16 %v2450
    %v2483 = vunpack.c.l.b16 %v2451
    %v2484 = vunpack.c.l.b16 %v2452
    %v2485 = vunpack.c.l.b16 %v2453
    %v2486 = vunpack.c.l.b16 %v2454
    %v2487 = vunpack.c.l.b16 %v2455
    %v2488 = vpack.c.b16 %v2473, %v2472
    %v2489 = vpack.c.b16 %v2475, %v2474
    %v2490 = vpack.c.b16 %v2477, %v2476
    %v2491 = vpack.c.b16 %v2479, %v2478
    %v2492 = vpack.c.b16 %v2481, %v2480
    %v2493 = vpack.c.b16 %v2483, %v2482
    %v2494 = vpack.c.b16 %v2485, %v2484
    %v2495 = vpack.c.b16 %v2487, %v2486
    %2504 = vmatprep.subr.bf16.mxu0 0
    %2505 = vmatpush1.bf16.msra.mxu0 %v2488
    %2506 = vmatprep.subr.bf16.mxu0 0
    %2507 = vmatpush1.bf16.msra.mxu0 %v2489
    %2508 = vmatprep.subr.bf16.mxu0 0
    %2509 = vmatpush1.bf16.msra.mxu0 %v2490
    %2510 = vmatprep.subr.bf16.mxu0 0
    %2511 = vmatpush1.bf16.msra.mxu0 %v2491
    %2512 = vmatprep.subr.bf16.mxu0 0
    %2513 = vmatpush1.bf16.msra.mxu0 %v2492
    %2514 = vmatprep.subr.bf16.mxu0 0
    %2515 = vmatpush1.bf16.msra.mxu0 %v2493
    %2516 = vmatprep.subr.bf16.mxu0 0
    %2517 = vmatpush1.bf16.msra.mxu0 %v2494
    %2518 = vmatprep.subr.bf16.mxu0 0
    %2519 = vmatpush1.bf16.msra.mxu0 %v2495
    %2520 = vmatprep.subr.bf16.mxu0 0
    %2521 = vmatpush1.bf16.msra.mxu0 0
    %2522 = vmatprep.subr.bf16.mxu0 0
    %2523 = vmatpush1.bf16.msra.mxu0 0
    %2524 = vmatprep.subr.bf16.mxu0 0
    %2525 = vmatpush1.bf16.msra.mxu0 0
    %2526 = vmatprep.subr.bf16.mxu0 0
    %2527 = vmatpush1.bf16.msra.mxu0 0
    %2528 = vmatprep.subr.bf16.mxu0 0
    %2529 = vmatpush1.bf16.msra.mxu0 0
    %2530 = vmatprep.subr.bf16.mxu0 0
    %2531 = vmatpush1.bf16.msra.mxu0 0
    %2532 = vmatprep.subr.bf16.mxu0 0
    %2533 = vmatpush1.bf16.msra.mxu0 0
    %2534 = vmatprep.subr.bf16.mxu0 0
    %2535 = vmatpush1.bf16.msra.mxu0 0
    %2536 = vmatprep.mubr.bf16.mxu0 0
    %2537 = vmatmul.mubr.bf16.gmra.mrb[0].mxu0 %v1614
    %v2538 = vpop.f32.mrb[0].mxu0
    %v2539 = vadd.f32 0.0, %v2538
    %v2540 = vpop.f32.mrb[0].mxu0
    %v2541 = vpop.f32.mrb[0].mxu0
    %v2542 = vadd.f32 0.0, %v2541
    %v2543 = vpop.f32.mrb[0].mxu0
    %2544 = vmatprep.mubr.bf16.mxu0 0
    %2545 = vmatmul.mubr.bf16.gmra.mrb[0].mxu0 %v1615
    %v2546 = vpop.f32.mrb[0].mxu0
    %v2547 = vadd.f32 0.0, %v2546
    %v2548 = vpop.f32.mrb[0].mxu0
    %v2549 = vpop.f32.mrb[0].mxu0
    %v2550 = vadd.f32 0.0, %v2549
    %v2551 = vpop.f32.mrb[0].mxu0
    %2552 = vmatprep.mubr.bf16.mxu0 0
    %2553 = vmatmul.mubr.bf16.gmra.mrb[0].mxu0 %v1616
    %v2554 = vpop.f32.mrb[0].mxu0
    %v2555 = vadd.f32 0.0, %v2554
    %v2556 = vpop.f32.mrb[0].mxu0
    %v2557 = vpop.f32.mrb[0].mxu0
    %v2558 = vadd.f32 0.0, %v2557
    %v2559 = vpop.f32.mrb[0].mxu0
    %2560 = vmatprep.mubr.bf16.mxu0 0
    %2561 = vmatmul.mubr.bf16.gmra.mrb[0].mxu0 %v1617
    %v2562 = vpop.f32.mrb[0].mxu0
    %v2563 = vadd.f32 0.0, %v2562
    %v2564 = vpop.f32.mrb[0].mxu0
    %v2565 = vpop.f32.mrb[0].mxu0
    %v2566 = vadd.f32 0.0, %v2565
    %v2567 = vpop.f32.mrb[0].mxu0
    %2568 = vdwg.mxu0
    %v2569 = vpack.c.bf16 %v2542, %v2539
    %v2570 = vpack.c.bf16 %v2550, %v2547
    %v2571 = vpack.c.bf16 %v2558, %v2555
    %v2572 = vpack.c.bf16 %v2566, %v2563
    %2573 = vst [vmem:[#allocation2 + $0xc0] sm:$0xff] %v2569
    %2574 = vst [vmem:[#allocation2 + $0xc8] sm:$0xff] %v2570
    %2575 = vst [vmem:[#allocation2 + $0xd0] sm:$0xff] %v2571
    %2576 = vst [vmem:[#allocation2 + $0xd8] sm:$0xff] %v2572
    %v2577 = vld [vmem:[%s1] sm:$0xff]
    %v2578 = vld [vmem:[%s1 + $0x8] sm:$0xff]
    %v2579 = vld [vmem:[%s1 + $0x10] sm:$0xff]
    %v2580 = vld [vmem:[%s1 + $0x18] sm:$0xff]
    %v2581 = vld [vmem:[%s1 + $0x20] sm:$0xff]
    %v2582 = vld [vmem:[%s1 + $0x28] sm:$0xff]
    %v2583 = vld [vmem:[%s1 + $0x30] sm:$0xff]
    %v2584 = vld [vmem:[%s1 + $0x38] sm:$0xff]
    %v2585 = vld [vmem:[%s1 + $0x40] sm:$0xff]
    %v2586 = vld [vmem:[%s1 + $0x48] sm:$0xff]
    %v2587 = vld [vmem:[%s1 + $0x50] sm:$0xff]
    %v2588 = vld [vmem:[%s1 + $0x58] sm:$0xff]
    %v2589 = vld [vmem:[%s1 + $0x60] sm:$0xff]
    %v2590 = vld [vmem:[%s1 + $0x68] sm:$0xff]
    %v2591 = vld [vmem:[%s1 + $0x70] sm:$0xff]
    %v2592 = vld [vmem:[%s1 + $0x78] sm:$0xff]
    %v2593 = vld [vmem:[#allocation2] sm:$0xff]
    %v2594 = vld [vmem:[#allocation2 + $0x8] sm:$0xff]
    %v2595 = vld [vmem:[#allocation2 + $0x10] sm:$0xff]
    %v2596 = vld [vmem:[#allocation2 + $0x18] sm:$0xff]
    %v2597 = vld [vmem:[#allocation2 + $0x20] sm:$0xff]
    %v2598 = vld [vmem:[#allocation2 + $0x28] sm:$0xff]
    %v2599 = vld [vmem:[#allocation2 + $0x30] sm:$0xff]
    %v2600 = vld [vmem:[#allocation2 + $0x38] sm:$0xff]
    %v2601 = vld [vmem:[#allocation2 + $0x40] sm:$0xff]
    %v2602 = vld [vmem:[#allocation2 + $0x48] sm:$0xff]
    %v2603 = vld [vmem:[#allocation2 + $0x50] sm:$0xff]
    %v2604 = vld [vmem:[#allocation2 + $0x58] sm:$0xff]
    %v2605 = vld [vmem:[#allocation2 + $0x60] sm:$0xff]
    %v2606 = vld [vmem:[#allocation2 + $0x68] sm:$0xff]
    %v2607 = vld [vmem:[#allocation2 + $0x70] sm:$0xff]
    %v2608 = vld [vmem:[#allocation2 + $0x78] sm:$0xff]
    %v2609 = vld [vmem:[#allocation2 + $0x80] sm:$0xff]
    %v2610 = vld [vmem:[#allocation2 + $0x88] sm:$0xff]
    %v2611 = vld [vmem:[#allocation2 + $0x90] sm:$0xff]
    %v2612 = vld [vmem:[#allocation2 + $0x98] sm:$0xff]
    %v2613 = vld [vmem:[#allocation2 + $0xa0] sm:$0xff]
    %v2614 = vld [vmem:[#allocation2 + $0xa8] sm:$0xff]
    %v2615 = vld [vmem:[#allocation2 + $0xb0] sm:$0xff]
    %v2616 = vld [vmem:[#allocation2 + $0xb8] sm:$0xff]
    %v2617 = vld [vmem:[#allocation2 + $0xc0] sm:$0xff]
    %v2618 = vld [vmem:[#allocation2 + $0xc8] sm:$0xff]
    %v2619 = vld [vmem:[#allocation2 + $0xd0] sm:$0xff]
    %v2620 = vld [vmem:[#allocation2 + $0xd8] sm:$0xff]
    %v2621 = vld [vmem:[%s9] sm:$0x1]
    %v2623 = vlaneseq
    %v2624 = vshrl.u32 %v2623, 7
    %v2625 = vsub.s32 0, %v2624
    %v2626 = vrot.slane %v2621, %v2625
    %v2644 = vunpack.c.l.b16 %v2577
    %v2645 = vunpack.c.h.b16 %v2577
    %v2646 = vunpack.c.l.b16 %v2578
    %v2647 = vunpack.c.h.b16 %v2578
    %v2648 = vunpack.c.l.b16 %v2579
    %v2649 = vunpack.c.h.b16 %v2579
    %v2650 = vunpack.c.l.b16 %v2580
    %v2651 = vunpack.c.h.b16 %v2580
    %v2652 = vunpack.c.l.b16 %v2581
    %v2653 = vunpack.c.h.b16 %v2581
    %v2654 = vunpack.c.l.b16 %v2582
    %v2655 = vunpack.c.h.b16 %v2582
    %v2656 = vunpack.c.l.b16 %v2583
    %v2657 = vunpack.c.h.b16 %v2583
    %v2658 = vunpack.c.l.b16 %v2584
    %v2659 = vunpack.c.h.b16 %v2584
    %v2660 = vunpack.c.l.b16 %v2585
    %v2661 = vunpack.c.h.b16 %v2585
    %v2662 = vunpack.c.l.b16 %v2586
    %v2663 = vunpack.c.h.b16 %v2586
    %v2664 = vunpack.c.l.b16 %v2587
    %v2665 = vunpack.c.h.b16 %v2587
    %v2666 = vunpack.c.l.b16 %v2588
    %v2667 = vunpack.c.h.b16 %v2588
    %v2668 = vunpack.c.l.b16 %v2589
    %v2669 = vunpack.c.h.b16 %v2589
    %v2670 = vunpack.c.l.b16 %v2590
    %v2671 = vunpack.c.h.b16 %v2590
    %v2672 = vunpack.c.l.b16 %v2591
    %v2673 = vunpack.c.h.b16 %v2591
    %v2674 = vunpack.c.l.b16 %v2592
    %v2675 = vunpack.c.h.b16 %v2592
    %v2676 = vpack.c.b16 %v2648, %v2644
    %v2677 = vpack.c.b16 %v2649, %v2645
    %v2678 = vpack.c.b16 %v2650, %v2646
    %v2679 = vpack.c.b16 %v2651, %v2647
    %v2680 = vpack.c.b16 %v2656, %v2652
    %v2681 = vpack.c.b16 %v2657, %v2653
    %v2682 = vpack.c.b16 %v2658, %v2654
    %v2683 = vpack.c.b16 %v2659, %v2655
    %v2684 = vpack.c.b16 %v2664, %v2660
    %v2685 = vpack.c.b16 %v2665, %v2661
    %v2686 = vpack.c.b16 %v2666, %v2662
    %v2687 = vpack.c.b16 %v2667, %v2663
    %v2688 = vpack.c.b16 %v2672, %v2668
    %v2689 = vpack.c.b16 %v2673, %v2669
    %v2690 = vpack.c.b16 %v2674, %v2670
    %v2691 = vpack.c.b16 %v2675, %v2671
    %v2705 = vsel %vm1390, %v2679, 0
    %v2708 = vsel %vm1390, %v2683, 0
    %v2711 = vsel %vm1390, %v2687, 0
    %v2714 = vsel %vm1390, %v2691, 0
    %2716 = vmatprep.subr.bf16.mxu0 0
    %2717 = vmatpush1.bf16.msra.mxu0 %v2593
    %2718 = vmatprep.subr.bf16.mxu0 0
    %2719 = vmatpush1.bf16.msra.mxu0 %v2594
    %2720 = vmatprep.subr.bf16.mxu0 0
    %2721 = vmatpush1.bf16.msra.mxu0 %v2595
    %2722 = vmatprep.subr.bf16.mxu0 0
    %2723 = vmatpush1.bf16.msra.mxu0 %v2596
    %2724 = vmatprep.subr.bf16.mxu0 0
    %2725 = vmatpush1.bf16.msra.mxu0 %v2597
    %2726 = vmatprep.subr.bf16.mxu0 0
    %2727 = vmatpush1.bf16.msra.mxu0 %v2598
    %2728 = vmatprep.subr.bf16.mxu0 0
    %2729 = vmatpush1.bf16.msra.mxu0 %v2599
    %2730 = vmatprep.subr.bf16.mxu0 0
    %2731 = vmatpush1.bf16.msra.mxu0 %v2600
    %2732 = vmatprep.subr.bf16.mxu0 0
    %2733 = vmatpush1.bf16.msra.mxu0 %v2601
    %2734 = vmatprep.subr.bf16.mxu0 0
    %2735 = vmatpush1.bf16.msra.mxu0 %v2602
    %2736 = vmatprep.subr.bf16.mxu0 0
    %2737 = vmatpush1.bf16.msra.mxu0 %v2603
    %2738 = vmatprep.subr.bf16.mxu0 0
    %2739 = vmatpush1.bf16.msra.mxu0 %v2604
    %2740 = vmatprep.subr.bf16.mxu0 0
    %2741 = vmatpush1.bf16.msra.mxu0 %v2605
    %2742 = vmatprep.subr.bf16.mxu0 0
    %2743 = vmatpush1.bf16.msra.mxu0 %v2606
    %2744 = vmatprep.subr.bf16.mxu0 0
    %2745 = vmatpush1.bf16.msra.mxu0 %v2607
    %2746 = vmatprep.subr.bf16.mxu0 0
    %2747 = vmatpush1.bf16.msra.mxu0 %v2608
    %2748 = vmatprep.mubr.bf16.mxu0 %v2677
    %2749 = vmatmul.mubr.bf16.gmra.mrb[0].mxu0 %v2676
    %v2750 = vpop.f32.mrb[0].mxu0
    %v2751 = vadd.f32 %v2626, %v2750
    %v2752 = vpop.f32.mrb[0].mxu0
    %v2753 = vpop.f32.mrb[0].mxu0
    %v2754 = vadd.f32 %v2626, %v2753
    %v2755 = vpop.f32.mrb[0].mxu0
    %2756 = vmatprep.mubr.bf16.mxu0 %v2681
    %2757 = vmatmul.mubr.bf16.gmra.mrb[0].mxu0 %v2680
    %v2758 = vpop.f32.mrb[0].mxu0
    %v2759 = vadd.f32 %v2626, %v2758
    %v2760 = vpop.f32.mrb[0].mxu0
    %v2761 = vpop.f32.mrb[0].mxu0
    %v2762 = vadd.f32 %v2626, %v2761
    %v2763 = vpop.f32.mrb[0].mxu0
    %2764 = vmatprep.mubr.bf16.mxu0 %v2685
    %2765 = vmatmul.mubr.bf16.gmra.mrb[0].mxu0 %v2684
    %v2766 = vpop.f32.mrb[0].mxu0
    %v2767 = vadd.f32 %v2626, %v2766
    %v2768 = vpop.f32.mrb[0].mxu0
    %v2769 = vpop.f32.mrb[0].mxu0
    %v2770 = vadd.f32 %v2626, %v2769
    %v2771 = vpop.f32.mrb[0].mxu0
    %2772 = vmatprep.mubr.bf16.mxu0 %v2689
    %2773 = vmatmul.mubr.bf16.gmra.mrb[0].mxu0 %v2688
    %v2774 = vpop.f32.mrb[0].mxu0
    %v2775 = vadd.f32 %v2626, %v2774
    %v2776 = vpop.f32.mrb[0].mxu0
    %v2777 = vpop.f32.mrb[0].mxu0
    %v2778 = vadd.f32 %v2626, %v2777
    %v2779 = vpop.f32.mrb[0].mxu0
    %2780 = vdwg.mxu0
    %2781 = vmatprep.subr.bf16.mxu0 0
    %2782 = vmatpush1.bf16.msra.mxu0 %v2609
    %2783 = vmatprep.subr.bf16.mxu0 0
    %2784 = vmatpush1.bf16.msra.mxu0 %v2610
    %2785 = vmatprep.subr.bf16.mxu0 0
    %2786 = vmatpush1.bf16.msra.mxu0 %v2611
    %2787 = vmatprep.subr.bf16.mxu0 0
    %2788 = vmatpush1.bf16.msra.mxu0 %v2612
    %2789 = vmatprep.subr.bf16.mxu0 0
    %2790 = vmatpush1.bf16.msra.mxu0 %v2613
    %2791 = vmatprep.subr.bf16.mxu0 0
    %2792 = vmatpush1.bf16.msra.mxu0 %v2614
    %2793 = vmatprep.subr.bf16.mxu0 0
    %2794 = vmatpush1.bf16.msra.mxu0 %v2615
    %2795 = vmatprep.subr.bf16.mxu0 0
    %2796 = vmatpush1.bf16.msra.mxu0 %v2616
    %2797 = vmatprep.subr.bf16.mxu0 0
    %2798 = vmatpush1.bf16.msra.mxu0 %v2617
    %2799 = vmatprep.subr.bf16.mxu0 0
    %2800 = vmatpush1.bf16.msra.mxu0 %v2618
    %2801 = vmatprep.subr.bf16.mxu0 0
    %2802 = vmatpush1.bf16.msra.mxu0 %v2619
    %2803 = vmatprep.subr.bf16.mxu0 0
    %2804 = vmatpush1.bf16.msra.mxu0 %v2620
    %2805 = vmatprep.subr.bf16.mxu0 0
    %2806 = vmatpush1.bf16.msra.mxu0 0
    %2807 = vmatprep.subr.bf16.mxu0 0
    %2808 = vmatpush1.bf16.msra.mxu0 0
    %2809 = vmatprep.subr.bf16.mxu0 0
    %2810 = vmatpush1.bf16.msra.mxu0 0
    %2811 = vmatprep.subr.bf16.mxu0 0
    %2812 = vmatpush1.bf16.msra.mxu0 0
    %2813 = vmatprep.mubr.bf16.mxu0 %v2705
    %2814 = vmatmul.mubr.bf16.gmra.mrb[0].mxu0 %v2678
    %v2815 = vpop.f32.mrb[0].mxu0
    %v2816 = vadd.f32 %v2751, %v2815
    %v2817 = vpop.f32.mrb[0].mxu0
    %v2818 = vpop.f32.mrb[0].mxu0
    %v2819 = vadd.f32 %v2754, %v2818
    %v2820 = vpop.f32.mrb[0].mxu0
    %2821 = vmatprep.mubr.bf16.mxu0 %v2708
    %2822 = vmatmul.mubr.bf16.gmra.mrb[0].mxu0 %v2682
    %v2823 = vpop.f32.mrb[0].mxu0
    %v2824 = vadd.f32 %v2759, %v2823
    %v2825 = vpop.f32.mrb[0].mxu0
    %v2826 = vpop.f32.mrb[0].mxu0
    %v2827 = vadd.f32 %v2762, %v2826
    %v2828 = vpop.f32.mrb[0].mxu0
    %2829 = vmatprep.mubr.bf16.mxu0 %v2711
    %2830 = vmatmul.mubr.bf16.gmra.mrb[0].mxu0 %v2686
    %v2831 = vpop.f32.mrb[0].mxu0
    %v2832 = vadd.f32 %v2767, %v2831
    %v2833 = vpop.f32.mrb[0].mxu0
    %v2834 = vpop.f32.mrb[0].mxu0
    %v2835 = vadd.f32 %v2770, %v2834
    %v2836 = vpop.f32.mrb[0].mxu0
    %2837 = vmatprep.mubr.bf16.mxu0 %v2714
    %2838 = vmatmul.mubr.bf16.gmra.mrb[0].mxu0 %v2690
    %v2839 = vpop.f32.mrb[0].mxu0
    %v2840 = vadd.f32 %v2775, %v2839
    %v2841 = vpop.f32.mrb[0].mxu0
    %v2842 = vpop.f32.mrb[0].mxu0
    %v2843 = vadd.f32 %v2778, %v2842
    %v2844 = vpop.f32.mrb[0].mxu0
    %2845 = vdwg.mxu0
    %v2846 = vadd.f32 %v2816, %v1606
    %v2847 = vadd.f32 %v2819, %v1607
    %v2848 = vadd.f32 %v2824, %v1608
    %v2849 = vadd.f32 %v2827, %v1609
    %v2850 = vadd.f32 %v2832, %v1610
    %v2851 = vadd.f32 %v2835, %v1611
    %v2852 = vadd.f32 %v2840, %v1612
    %v2853 = vadd.f32 %v2843, %v1613
    %vm2854 = vcmp.ge.f32.partialorder %v2846, 0.0
    %vm2855 = vcmp.ge.f32.partialorder %v2847, 0.0
    %vm2856 = vcmp.ge.f32.partialorder %v2848, 0.0
    %vm2857 = vcmp.ge.f32.partialorder %v2849, 0.0
    %vm2858 = vcmp.ge.f32.partialorder %v2850, 0.0
    %vm2859 = vcmp.ge.f32.partialorder %v2851, 0.0
    %vm2860 = vcmp.ge.f32.partialorder %v2852, 0.0
    %vm2861 = vcmp.ge.f32.partialorder %v2853, 0.0
    %v2862 = vmul.f32 %v1549, %v2846
    %v2863 = vmul.f32 %v1549, %v2847
    %v2864 = vmul.f32 %v1549, %v2848
    %v2865 = vmul.f32 %v1549, %v2849
    %v2866 = vmul.f32 %v1549, %v2850
    %v2867 = vmul.f32 %v1549, %v2851
    %v2868 = vmul.f32 %v1549, %v2852
    %v2869 = vmul.f32 %v1549, %v2853
    %v2870 = vsel %vm2854, %v2846, %v2862
    %v2871 = vsel %vm2855, %v2847, %v2863
    %v2872 = vsel %vm2856, %v2848, %v2864
    %v2873 = vsel %vm2857, %v2849, %v2865
    %v2874 = vsel %vm2858, %v2850, %v2866
    %v2875 = vsel %vm2859, %v2851, %v2867
    %v2876 = vsel %vm2860, %v2852, %v2868
    %v2877 = vsel %vm2861, %v2853, %v2869
    %v2878 = vmul.f32 %v2870, %v2870
    %v2879 = vmul.f32 %v2871, %v2871
    %v2880 = vmul.f32 %v2872, %v2872
    %v2881 = vmul.f32 %v2873, %v2873
    %v2882 = vmul.f32 %v2874, %v2874
    %v2883 = vmul.f32 %v2875, %v2875
    %v2884 = vmul.f32 %v2876, %v2876
    %v2885 = vmul.f32 %v2877, %v2877
    %2886 = vadd.xlane.f32.xlu0 %v2878
    %v2887 = vpop.xlane.xlu0 %2886
    %2888 = vadd.xlane.f32.xlu0 %v2879
    %v2889 = vpop.xlane.xlu0 %2888
    %2890 = vadd.xlane.f32.xlu0 %v2880
    %v2891 = vpop.xlane.xlu0 %2890
    %2892 = vadd.xlane.f32.xlu0 %v2881
    %v2893 = vpop.xlane.xlu0 %2892
    %2894 = vadd.xlane.f32.xlu0 %v2882
    %v2895 = vpop.xlane.xlu0 %2894
    %2896 = vadd.xlane.f32.xlu0 %v2883
    %v2897 = vpop.xlane.xlu0 %2896
    %2898 = vadd.xlane.f32.xlu0 %v2884
    %v2899 = vpop.xlane.xlu0 %2898
    %2900 = vadd.xlane.f32.xlu0 %v2885
    %v2901 = vpop.xlane.xlu0 %2900
    %v2902 = vmax.f32 %v2887, 1e-24
    %v2903 = vmax.f32 %v2889, 1e-24
    %v2904 = vmax.f32 %v2891, 1e-24
    %v2905 = vmax.f32 %v2893, 1e-24
    %v2906 = vmax.f32 %v2895, 1e-24
    %v2907 = vmax.f32 %v2897, 1e-24
    %v2908 = vmax.f32 %v2899, 1e-24
    %v2909 = vmax.f32 %v2901, 1e-24
    %v2910 = vrsqrt.pop %v2902
    %v2911 = vrsqrt.pop %v2903
    %v2912 = vrsqrt.pop %v2904
    %v2913 = vrsqrt.pop %v2905
    %v2914 = vrsqrt.pop %v2906
    %v2915 = vrsqrt.pop %v2907
    %v2916 = vrsqrt.pop %v2908
    %v2917 = vrsqrt.pop %v2909
    %v2918 = vmul.f32 %v2870, %v2910
    %v2919 = vmul.f32 %v2871, %v2911
    %v2920 = vmul.f32 %v2872, %v2912
    %v2921 = vmul.f32 %v2873, %v2913
    %v2922 = vmul.f32 %v2874, %v2914
    %v2923 = vmul.f32 %v2875, %v2915
    %v2924 = vmul.f32 %v2876, %v2916
    %v2925 = vmul.f32 %v2877, %v2917
    %v2926 = vpack.c.bf16 %v2919, %v2918
    %v2927 = vpack.c.bf16 %v2921, %v2920
    %v2928 = vpack.c.bf16 %v2923, %v2922
    %v2929 = vpack.c.bf16 %v2925, %v2924
    %v2930 = vld [vmem:[#allocation10] sm:$0xf]
    %v2931 = vld [vmem:[#allocation10 + $0x4] sm:$0xf]
    %v2932 = vld [vmem:[#allocation10 + $0x8] sm:$0xf]
    %v2933 = vld [vmem:[#allocation10 + $0xc] sm:$0xf]
    %v2934 = vld [vmem:[#allocation10 + $0x10] sm:$0xf]
    %v2935 = vld [vmem:[#allocation10 + $0x14] sm:$0xf]
    %v2936 = vld [vmem:[#allocation10 + $0x18] sm:$0xf]
    %v2937 = vld [vmem:[#allocation10 + $0x1c] sm:$0xf]
    %v2938 = vld [vmem:[#allocation10 + $0x20] sm:$0xf]
    %v2939 = vld [vmem:[#allocation10 + $0x24] sm:$0xf]
    %v2940 = vld [vmem:[#allocation10 + $0x28] sm:$0xf]
    %v2941 = vld [vmem:[#allocation10 + $0x2c] sm:$0xf]
    %v2942 = vld [vmem:[#allocation10 + $0x30] sm:$0xf]
    %v2943 = vld [vmem:[#allocation10 + $0x34] sm:$0xf]
    %v2944 = vld [vmem:[#allocation10 + $0x38] sm:$0xf]
    %v2945 = vld [vmem:[#allocation10 + $0x3c] sm:$0xf]
    %v2946 = vld [vmem:[%s11] sm:$0x1]
    %v2948 = vlaneseq
    %v2949 = vshrl.u32 %v2948, 7
    %v2950 = vsub.s32 0, %v2949
    %v2951 = vrot.slane %v2946, %v2950
    %v2969 = vunpack.c.l.b16 %v2930
    %v2970 = vunpack.c.l.b16 %v2931
    %v2971 = vunpack.c.l.b16 %v2932
    %v2972 = vunpack.c.l.b16 %v2933
    %v2973 = vunpack.c.l.b16 %v2934
    %v2974 = vunpack.c.l.b16 %v2935
    %v2975 = vunpack.c.l.b16 %v2936
    %v2976 = vunpack.c.l.b16 %v2937
    %v2977 = vunpack.c.l.b16 %v2938
    %v2978 = vunpack.c.l.b16 %v2939
    %v2979 = vunpack.c.l.b16 %v2940
    %v2980 = vunpack.c.l.b16 %v2941
    %v2981 = vunpack.c.l.b16 %v2942
    %v2982 = vunpack.c.l.b16 %v2943
    %v2983 = vunpack.c.l.b16 %v2944
    %v2984 = vunpack.c.l.b16 %v2945
    %v2985 = vpack.c.b16 %v2970, %v2969
    %v2986 = vpack.c.b16 %v2972, %v2971
    %v2987 = vpack.c.b16 %v2974, %v2973
    %v2988 = vpack.c.b16 %v2976, %v2975
    %v2989 = vpack.c.b16 %v2978, %v2977
    %v2990 = vpack.c.b16 %v2980, %v2979
    %v2991 = vpack.c.b16 %v2982, %v2981
    %v2992 = vpack.c.b16 %v2984, %v2983
    %3001 = vmatprep.subr.bf16.mxu0 0
    %3002 = vmatpush1.bf16.msra.mxu0 %v2985
    %3003 = vmatprep.subr.bf16.mxu0 0
    %3004 = vmatpush1.bf16.msra.mxu0 %v2986
    %3005 = vmatprep.subr.bf16.mxu0 0
    %3006 = vmatpush1.bf16.msra.mxu0 %v2987
    %3007 = vmatprep.subr.bf16.mxu0 0
    %3008 = vmatpush1.bf16.msra.mxu0 %v2988
    %3009 = vmatprep.subr.bf16.mxu0 0
    %3010 = vmatpush1.bf16.msra.mxu0 %v2989
    %3011 = vmatprep.subr.bf16.mxu0 0
    %3012 = vmatpush1.bf16.msra.mxu0 %v2990
    %3013 = vmatprep.subr.bf16.mxu0 0
    %3014 = vmatpush1.bf16.msra.mxu0 %v2991
    %3015 = vmatprep.subr.bf16.mxu0 0
    %3016 = vmatpush1.bf16.msra.mxu0 %v2992
    %3017 = vmatprep.subr.bf16.mxu0 0
    %3018 = vmatpush1.bf16.msra.mxu0 0
    %3019 = vmatprep.subr.bf16.mxu0 0
    %3020 = vmatpush1.bf16.msra.mxu0 0
    %3021 = vmatprep.subr.bf16.mxu0 0
    %3022 = vmatpush1.bf16.msra.mxu0 0
    %3023 = vmatprep.subr.bf16.mxu0 0
    %3024 = vmatpush1.bf16.msra.mxu0 0
    %3025 = vmatprep.subr.bf16.mxu0 0
    %3026 = vmatpush1.bf16.msra.mxu0 0
    %3027 = vmatprep.subr.bf16.mxu0 0
    %3028 = vmatpush1.bf16.msra.mxu0 0
    %3029 = vmatprep.subr.bf16.mxu0 0
    %3030 = vmatpush1.bf16.msra.mxu0 0
    %3031 = vmatprep.subr.bf16.mxu0 0
    %3032 = vmatpush1.bf16.msra.mxu0 0
    %3033 = vmatprep.mubr.bf16.mxu0 0
    %3034 = vmatmul.mubr.bf16.gmra.mrb[0].mxu0 %v2926
    %v3035 = vpop.f32.mrb[0].mxu0
    %v3036 = vadd.f32 %v2951, %v3035
    %v3037 = vpop.f32.mrb[0].mxu0
    %v3038 = vpop.f32.mrb[0].mxu0
    %v3039 = vadd.f32 %v2951, %v3038
    %v3040 = vpop.f32.mrb[0].mxu0
    %3041 = vmatprep.mubr.bf16.mxu0 0
    %3042 = vmatmul.mubr.bf16.gmra.mrb[0].mxu0 %v2927
    %v3043 = vpop.f32.mrb[0].mxu0
    %v3044 = vadd.f32 %v2951, %v3043
    %v3045 = vpop.f32.mrb[0].mxu0
    %v3046 = vpop.f32.mrb[0].mxu0
    %v3047 = vadd.f32 %v2951, %v3046
    %v3048 = vpop.f32.mrb[0].mxu0
    %3049 = vmatprep.mubr.bf16.mxu0 0
    %3050 = vmatmul.mubr.bf16.gmra.mrb[0].mxu0 %v2928
    %v3051 = vpop.f32.mrb[0].mxu0
    %v3052 = vadd.f32 %v2951, %v3051
    %v3053 = vpop.f32.mrb[0].mxu0
    %v3054 = vpop.f32.mrb[0].mxu0
    %v3055 = vadd.f32 %v2951, %v3054
    %v3056 = vpop.f32.mrb[0].mxu0
    %3057 = vmatprep.mubr.bf16.mxu0 0
    %3058 = vmatmul.mubr.bf16.gmra.mrb[0].mxu0 %v2929
    %v3059 = vpop.f32.mrb[0].mxu0
    %v3060 = vadd.f32 %v2951, %v3059
    %v3061 = vpop.f32.mrb[0].mxu0
    %v3062 = vpop.f32.mrb[0].mxu0
    %v3063 = vadd.f32 %v2951, %v3062
    %v3064 = vpop.f32.mrb[0].mxu0
    %3065 = vdwg.mxu0
    %v3066 = vmax.f32 %v3036, 0.0
    %v3067 = vmax.f32 %v3039, 0.0
    %v3068 = vmax.f32 %v3044, 0.0
    %v3069 = vmax.f32 %v3047, 0.0
    %v3070 = vmax.f32 %v3052, 0.0
    %v3071 = vmax.f32 %v3055, 0.0
    %v3072 = vmax.f32 %v3060, 0.0
    %v3073 = vmax.f32 %v3063, 0.0
    %v3074 = vpack.c.bf16 %v3067, %v3066
    %v3075 = vpack.c.bf16 %v3069, %v3068
    %v3076 = vpack.c.bf16 %v3071, %v3070
    %v3077 = vpack.c.bf16 %v3073, %v3072
    %v3078 = vld [vmem:[#allocation12] sm:$0xf]
    %v3079 = vld [vmem:[#allocation12 + $0x4] sm:$0xf]
    %v3080 = vld [vmem:[#allocation12 + $0x8] sm:$0xf]
    %v3081 = vld [vmem:[#allocation12 + $0xc] sm:$0xf]
    %v3082 = vld [vmem:[#allocation12 + $0x10] sm:$0xf]
    %v3083 = vld [vmem:[#allocation12 + $0x14] sm:$0xf]
    %v3084 = vld [vmem:[#allocation12 + $0x18] sm:$0xf]
    %v3085 = vld [vmem:[#allocation12 + $0x1c] sm:$0xf]
    %v3086 = vld [vmem:[#allocation12 + $0x20] sm:$0xf]
    %v3087 = vld [vmem:[#allocation12 + $0x24] sm:$0xf]
    %v3088 = vld [vmem:[#allocation12 + $0x28] sm:$0xf]
    %v3089 = vld [vmem:[#allocation12 + $0x2c] sm:$0xf]
    %v3090 = vld [vmem:[#allocation12 + $0x30] sm:$0xf]
    %v3091 = vld [vmem:[#allocation12 + $0x34] sm:$0xf]
    %v3092 = vld [vmem:[#allocation12 + $0x38] sm:$0xf]
    %v3093 = vld [vmem:[#allocation12 + $0x3c] sm:$0xf]
    %v3094 = vld [vmem:[%s13] sm:$0x1]
    %v3096 = vlaneseq
    %v3097 = vshrl.u32 %v3096, 7
    %v3098 = vsub.s32 0, %v3097
    %v3099 = vrot.slane %v3094, %v3098
    %v3117 = vunpack.c.l.b16 %v3078
    %v3118 = vunpack.c.l.b16 %v3079
    %v3119 = vunpack.c.l.b16 %v3080
    %v3120 = vunpack.c.l.b16 %v3081
    %v3121 = vunpack.c.l.b16 %v3082
    %v3122 = vunpack.c.l.b16 %v3083
    %v3123 = vunpack.c.l.b16 %v3084
    %v3124 = vunpack.c.l.b16 %v3085
    %v3125 = vunpack.c.l.b16 %v3086
    %v3126 = vunpack.c.l.b16 %v3087
    %v3127 = vunpack.c.l.b16 %v3088
    %v3128 = vunpack.c.l.b16 %v3089
    %v3129 = vunpack.c.l.b16 %v3090
    %v3130 = vunpack.c.l.b16 %v3091
    %v3131 = vunpack.c.l.b16 %v3092
    %v3132 = vunpack.c.l.b16 %v3093
    %v3133 = vpack.c.b16 %v3118, %v3117
    %v3134 = vpack.c.b16 %v3120, %v3119
    %v3135 = vpack.c.b16 %v3122, %v3121
    %v3136 = vpack.c.b16 %v3124, %v3123
    %v3137 = vpack.c.b16 %v3126, %v3125
    %v3138 = vpack.c.b16 %v3128, %v3127
    %v3139 = vpack.c.b16 %v3130, %v3129
    %v3140 = vpack.c.b16 %v3132, %v3131
    %3149 = vmatprep.subr.bf16.mxu0 0
    %3150 = vmatpush1.bf16.msra.mxu0 %v3133
    %3151 = vmatprep.subr.bf16.mxu0 0
    %3152 = vmatpush1.bf16.msra.mxu0 %v3134
    %3153 = vmatprep.subr.bf16.mxu0 0
    %3154 = vmatpush1.bf16.msra.mxu0 %v3135
    %3155 = vmatprep.subr.bf16.mxu0 0
    %3156 = vmatpush1.bf16.msra.mxu0 %v3136
    %3157 = vmatprep.subr.bf16.mxu0 0
    %3158 = vmatpush1.bf16.msra.mxu0 %v3137
    %3159 = vmatprep.subr.bf16.mxu0 0
    %3160 = vmatpush1.bf16.msra.mxu0 %v3138
    %3161 = vmatprep.subr.bf16.mxu0 0
    %3162 = vmatpush1.bf16.msra.mxu0 %v3139
    %3163 = vmatprep.subr.bf16.mxu0 0
    %3164 = vmatpush1.bf16.msra.mxu0 %v3140
    %3165 = vmatprep.subr.bf16.mxu0 0
    %3166 = vmatpush1.bf16.msra.mxu0 0
    %3167 = vmatprep.subr.bf16.mxu0 0
    %3168 = vmatpush1.bf16.msra.mxu0 0
    %3169 = vmatprep.subr.bf16.mxu0 0
    %3170 = vmatpush1.bf16.msra.mxu0 0
    %3171 = vmatprep.subr.bf16.mxu0 0
    %3172 = vmatpush1.bf16.msra.mxu0 0
    %3173 = vmatprep.subr.bf16.mxu0 0
    %3174 = vmatpush1.bf16.msra.mxu0 0
    %3175 = vmatprep.subr.bf16.mxu0 0
    %3176 = vmatpush1.bf16.msra.mxu0 0
    %3177 = vmatprep.subr.bf16.mxu0 0
    %3178 = vmatpush1.bf16.msra.mxu0 0
    %3179 = vmatprep.subr.bf16.mxu0 0
    %3180 = vmatpush1.bf16.msra.mxu0 0
    %3181 = vmatprep.mubr.bf16.mxu0 0
    %3182 = vmatmul.mubr.bf16.gmra.mrb[0].mxu0 %v3074
    %v3183 = vpop.f32.mrb[0].mxu0
    %v3184 = vadd.f32 %v3099, %v3183
    %v3185 = vpop.f32.mrb[0].mxu0
    %v3186 = vpop.f32.mrb[0].mxu0
    %v3187 = vadd.f32 %v3099, %v3186
    %v3188 = vpop.f32.mrb[0].mxu0
    %3189 = vmatprep.mubr.bf16.mxu0 0
    %3190 = vmatmul.mubr.bf16.gmra.mrb[0].mxu0 %v3075
    %v3191 = vpop.f32.mrb[0].mxu0
    %v3192 = vadd.f32 %v3099, %v3191
    %v3193 = vpop.f32.mrb[0].mxu0
    %v3194 = vpop.f32.mrb[0].mxu0
    %v3195 = vadd.f32 %v3099, %v3194
    %v3196 = vpop.f32.mrb[0].mxu0
    %3197 = vmatprep.mubr.bf16.mxu0 0
    %3198 = vmatmul.mubr.bf16.gmra.mrb[0].mxu0 %v3076
    %v3199 = vpop.f32.mrb[0].mxu0
    %v3200 = vadd.f32 %v3099, %v3199
    %v3201 = vpop.f32.mrb[0].mxu0
    %v3202 = vpop.f32.mrb[0].mxu0
    %v3203 = vadd.f32 %v3099, %v3202
    %v3204 = vpop.f32.mrb[0].mxu0
    %3205 = vmatprep.mubr.bf16.mxu0 0
    %3206 = vmatmul.mubr.bf16.gmra.mrb[0].mxu0 %v3077
    %v3207 = vpop.f32.mrb[0].mxu0
    %v3208 = vadd.f32 %v3099, %v3207
    %v3209 = vpop.f32.mrb[0].mxu0
    %v3210 = vpop.f32.mrb[0].mxu0
    %v3211 = vadd.f32 %v3099, %v3210
    %v3212 = vpop.f32.mrb[0].mxu0
    %3213 = vdwg.mxu0
    %v3214 = vld [vmem:[%s2] sm:$0x3]
    %v3215 = vpack.c.bf16 %v3187, %v3184
    %v3216 = vpack.c.bf16 %v3195, %v3192
    %v3217 = vpack.c.bf16 %v3203, %v3200
    %v3218 = vpack.c.bf16 %v3211, %v3208
    %v3220 = vsel %vm1390, %v3214, 0
    %3222 = vmatprep.subr.bf16.mxu0 0
    %3223 = vmatpush1.bf16.msra.mxu0 %v3215
    %3224 = vmatprep.subr.bf16.mxu0 0
    %3225 = vmatpush1.bf16.msra.mxu0 %v3216
    %3226 = vmatprep.subr.bf16.mxu0 0
    %3227 = vmatpush1.bf16.msra.mxu0 %v3217
    %3228 = vmatprep.subr.bf16.mxu0 0
    %3229 = vmatpush1.bf16.msra.mxu0 %v3218
    %3230 = vmatprep.subr.bf16.mxu0 0
    %3231 = vmatpush1.bf16.msra.mxu0 0
    %3232 = vmatprep.subr.bf16.mxu0 0
    %3233 = vmatpush1.bf16.msra.mxu0 0
    %3234 = vmatprep.subr.bf16.mxu0 0
    %3235 = vmatpush1.bf16.msra.mxu0 0
    %3236 = vmatprep.subr.bf16.mxu0 0
    %3237 = vmatpush1.bf16.msra.mxu0 0
    %3238 = vmatprep.subr.bf16.mxu0 0
    %3239 = vmatpush1.bf16.msra.mxu0 0
    %3240 = vmatprep.subr.bf16.mxu0 0
    %3241 = vmatpush1.bf16.msra.mxu0 0
    %3242 = vmatprep.subr.bf16.mxu0 0
    %3243 = vmatpush1.bf16.msra.mxu0 0
    %3244 = vmatprep.subr.bf16.mxu0 0
    %3245 = vmatpush1.bf16.msra.mxu0 0
    %3246 = vmatprep.subr.bf16.mxu0 0
    %3247 = vmatpush1.bf16.msra.mxu0 0
    %3248 = vmatprep.subr.bf16.mxu0 0
    %3249 = vmatpush1.bf16.msra.mxu0 0
    %3250 = vmatprep.subr.bf16.mxu0 0
    %3251 = vmatpush1.bf16.msra.mxu0 0
    %3252 = vmatprep.subr.bf16.mxu0 0
    %3253 = vmatpush1.bf16.msra.mxu0 0
    %3254 = vmatprep.mubr.bf16.mxu0 0
    %3255 = vmatmul.mubr.bf16.gmra.mrb[0].mxu0 %v3220
    %v3256 = vpop.f32.mrb[0].mxu0
    %v3257 = vadd.f32 0.0, %v3256
    %v3258 = vpop.f32.mrb[0].mxu0
    %v3259 = vpop.f32.mrb[0].mxu0
    %v3260 = vpop.f32.mrb[0].mxu0
    %3261 = vdwg.mxu0
    %v3262 = vpack.c.bf16 %v3257, %v3257
    %v3263 = vld [vmem:[%s14] sm:$0xf]
    %v3264 = vld [vmem:[%s14 + $0x4] sm:$0xf]
    %v3265 = vld [vmem:[%s14 + $0x8] sm:$0xf]
    %v3266 = vld [vmem:[%s14 + $0xc] sm:$0xf]
    %v3267 = vld [vmem:[%s14 + $0x10] sm:$0xf]
    %v3268 = vld [vmem:[%s14 + $0x14] sm:$0xf]
    %v3269 = vld [vmem:[%s14 + $0x18] sm:$0xf]
    %v3270 = vld [vmem:[%s14 + $0x1c] sm:$0xf]
    %v3271 = vld [vmem:[%s14 + $0x20] sm:$0xf]
    %v3272 = vld [vmem:[%s14 + $0x24] sm:$0xf]
    %v3273 = vld [vmem:[%s14 + $0x28] sm:$0xf]
    %v3274 = vld [vmem:[%s14 + $0x2c] sm:$0xf]
    %v3275 = vld [vmem:[%s14 + $0x30] sm:$0xf]
    %v3276 = vld [vmem:[%s14 + $0x34] sm:$0xf]
    %v3277 = vld [vmem:[%s14 + $0x38] sm:$0xf]
    %v3278 = vld [vmem:[%s14 + $0x3c] sm:$0xf]
    %v3279 = vld [vmem:[%s15] sm:$0x1]
    %v3281 = vlaneseq
    %v3282 = vshrl.u32 %v3281, 7
    %v3283 = vsub.s32 0, %v3282
    %v3284 = vrot.slane %v3279, %v3283
    %v3302 = vunpack.c.l.b16 %v3263
    %v3303 = vunpack.c.l.b16 %v3264
    %v3304 = vunpack.c.l.b16 %v3265
    %v3305 = vunpack.c.l.b16 %v3266
    %v3306 = vunpack.c.l.b16 %v3267
    %v3307 = vunpack.c.l.b16 %v3268
    %v3308 = vunpack.c.l.b16 %v3269
    %v3309 = vunpack.c.l.b16 %v3270
    %v3310 = vunpack.c.l.b16 %v3271
    %v3311 = vunpack.c.l.b16 %v3272
    %v3312 = vunpack.c.l.b16 %v3273
    %v3313 = vunpack.c.l.b16 %v3274
    %v3314 = vunpack.c.l.b16 %v3275
    %v3315 = vunpack.c.l.b16 %v3276
    %v3316 = vunpack.c.l.b16 %v3277
    %v3317 = vunpack.c.l.b16 %v3278
    %v3318 = vpack.c.b16 %v3303, %v3302
    %v3319 = vpack.c.b16 %v3305, %v3304
    %v3320 = vpack.c.b16 %v3307, %v3306
    %v3321 = vpack.c.b16 %v3309, %v3308
    %v3322 = vpack.c.b16 %v3311, %v3310
    %v3323 = vpack.c.b16 %v3313, %v3312
    %v3324 = vpack.c.b16 %v3315, %v3314
    %v3325 = vpack.c.b16 %v3317, %v3316
    %3334 = vmatprep.subr.bf16.mxu0 0
    %3335 = vmatpush1.bf16.msra.mxu0 %v3318
    %3336 = vmatprep.subr.bf16.mxu0 0
    %3337 = vmatpush1.bf16.msra.mxu0 %v3319
    %3338 = vmatprep.subr.bf16.mxu0 0
    %3339 = vmatpush1.bf16.msra.mxu0 %v3320
    %3340 = vmatprep.subr.bf16.mxu0 0
    %3341 = vmatpush1.bf16.msra.mxu0 %v3321
    %3342 = vmatprep.subr.bf16.mxu0 0
    %3343 = vmatpush1.bf16.msra.mxu0 %v3322
    %3344 = vmatprep.subr.bf16.mxu0 0
    %3345 = vmatpush1.bf16.msra.mxu0 %v3323
    %3346 = vmatprep.subr.bf16.mxu0 0
    %3347 = vmatpush1.bf16.msra.mxu0 %v3324
    %3348 = vmatprep.subr.bf16.mxu0 0
    %3349 = vmatpush1.bf16.msra.mxu0 %v3325
    %3350 = vmatprep.subr.bf16.mxu0 0
    %3351 = vmatpush1.bf16.msra.mxu0 0
    %3352 = vmatprep.subr.bf16.mxu0 0
    %3353 = vmatpush1.bf16.msra.mxu0 0
    %3354 = vmatprep.subr.bf16.mxu0 0
    %3355 = vmatpush1.bf16.msra.mxu0 0
    %3356 = vmatprep.subr.bf16.mxu0 0
    %3357 = vmatpush1.bf16.msra.mxu0 0
    %3358 = vmatprep.subr.bf16.mxu0 0
    %3359 = vmatpush1.bf16.msra.mxu0 0
    %3360 = vmatprep.subr.bf16.mxu0 0
    %3361 = vmatpush1.bf16.msra.mxu0 0
    %3362 = vmatprep.subr.bf16.mxu0 0
    %3363 = vmatpush1.bf16.msra.mxu0 0
    %3364 = vmatprep.subr.bf16.mxu0 0
    %3365 = vmatpush1.bf16.msra.mxu0 0
    %3366 = vmatprep.mubr.bf16.mxu0 0
    %3367 = vmatmul.mubr.bf16.gmra.mrb[0].mxu0 %v3262
    %v3368 = vpop.f32.mrb[0].mxu0
    %v3369 = vadd.f32 %v3284, %v3368
    %v3370 = vpop.f32.mrb[0].mxu0
    %v3371 = vpop.f32.mrb[0].mxu0
    %v3372 = vpop.f32.mrb[0].mxu0
    %3373 = vdwg.mxu0
    %v3374 = vmax.f32 %v3369, 0.0
    %v3375 = vpack.c.bf16 %v3374, %v3374
    %v3376 = vld [vmem:[%s16] sm:$0xf]
    %v3377 = vld [vmem:[%s16 + $0x4] sm:$0xf]
    %v3378 = vld [vmem:[%s16 + $0x8] sm:$0xf]
    %v3379 = vld [vmem:[%s16 + $0xc] sm:$0xf]
    %v3380 = vld [vmem:[%s16 + $0x10] sm:$0xf]
    %v3381 = vld [vmem:[%s16 + $0x14] sm:$0xf]
    %v3382 = vld [vmem:[%s16 + $0x18] sm:$0xf]
    %v3383 = vld [vmem:[%s16 + $0x1c] sm:$0xf]
    %v3384 = vld [vmem:[#allocation4] sm:$0x1]
    %v3386 = vlaneseq
    %v3387 = vshrl.u32 %v3386, 7
    %v3388 = vsub.s32 0, %v3387
    %v3389 = vrot.slane %v3384, %v3388
    %v3399 = vunpack.c.l.b16 %v3376
    %v3400 = vunpack.c.l.b16 %v3377
    %v3401 = vunpack.c.l.b16 %v3378
    %v3402 = vunpack.c.l.b16 %v3379
    %v3403 = vunpack.c.l.b16 %v3380
    %v3404 = vunpack.c.l.b16 %v3381
    %v3405 = vunpack.c.l.b16 %v3382
    %v3406 = vunpack.c.l.b16 %v3383
    %v3407 = vpack.c.b16 %v3400, %v3399
    %v3408 = vpack.c.b16 %v3402, %v3401
    %v3409 = vpack.c.b16 %v3404, %v3403
    %v3410 = vpack.c.b16 %v3406, %v3405
    %v3416 = vsel %vm1390, %v3375, 0
    %3418 = vmatprep.subr.bf16.mxu0 0
    %3419 = vmatpush1.bf16.msra.mxu0 %v3407
    %3420 = vmatprep.subr.bf16.mxu0 0
    %3421 = vmatpush1.bf16.msra.mxu0 %v3408
    %3422 = vmatprep.subr.bf16.mxu0 0
    %3423 = vmatpush1.bf16.msra.mxu0 %v3409
    %3424 = vmatprep.subr.bf16.mxu0 0
    %3425 = vmatpush1.bf16.msra.mxu0 %v3410
    %3426 = vmatprep.subr.bf16.mxu0 0
    %3427 = vmatpush1.bf16.msra.mxu0 0
    %3428 = vmatprep.subr.bf16.mxu0 0
    %3429 = vmatpush1.bf16.msra.mxu0 0
    %3430 = vmatprep.subr.bf16.mxu0 0
    %3431 = vmatpush1.bf16.msra.mxu0 0
    %3432 = vmatprep.subr.bf16.mxu0 0
    %3433 = vmatpush1.bf16.msra.mxu0 0
    %3434 = vmatprep.subr.bf16.mxu0 0
    %3435 = vmatpush1.bf16.msra.mxu0 0
    %3436 = vmatprep.subr.bf16.mxu0 0
    %3437 = vmatpush1.bf16.msra.mxu0 0
    %3438 = vmatprep.subr.bf16.mxu0 0
    %3439 = vmatpush1.bf16.msra.mxu0 0
    %3440 = vmatprep.subr.bf16.mxu0 0
    %3441 = vmatpush1.bf16.msra.mxu0 0
    %3442 = vmatprep.subr.bf16.mxu0 0
    %3443 = vmatpush1.bf16.msra.mxu0 0
    %3444 = vmatprep.subr.bf16.mxu0 0
    %3445 = vmatpush1.bf16.msra.mxu0 0
    %3446 = vmatprep.subr.bf16.mxu0 0
    %3447 = vmatpush1.bf16.msra.mxu0 0
    %3448 = vmatprep.subr.bf16.mxu0 0
    %3449 = vmatpush1.bf16.msra.mxu0 0
    %3450 = vmatprep.mubr.bf16.mxu0 0
    %3451 = vmatmul.mubr.bf16.gmra.mrb[0].mxu0 %v3416
    %v3452 = vpop.f32.mrb[0].mxu0
    %v3453 = vadd.f32 %v3389, %v3452
    %v3454 = vpop.f32.mrb[0].mxu0
    %v3455 = vpop.f32.mrb[0].mxu0
    %v3456 = vpop.f32.mrb[0].mxu0
    %3457 = vdwg.mxu0
    %v3458 = vmax.f32 %v3453, 0.0
    %vm3459 = vcmask 3072
    %3460 = vst.msk [vmem:[%s18] sm:$0xf] %vm3459, %v3458
    // Predicated region
    $region94: #{rgcn_skip_forward.1} parent=1 // pred_check
      _
    $region95: #{rgcn_skip_forward.1} parent=1 // pred_check_branch
      %3462 = sbr.rel (0) target = $region97
    $region96: #{rgcn_skip_forward.1} parent=1 // pred_region
      _
    $region97: #{rgcn_skip_forward.1} parent=1 // pred_fallthru
      _
    // Predicated region
    $region98: #{rgcn_skip_forward.1} parent=1 // pred_check
      _
    $region99: #{rgcn_skip_forward.1} parent=1 // pred_check_branch
      %3464 = sbr.rel (0) target = $region101
    $region100: #{rgcn_skip_forward.1} parent=1 // pred_region
      _
    $region101: #{rgcn_skip_forward.1} parent=1 // pred_fallthru
      _
    %3465 = vsyncpa [#allocation6], 1
    %3466 = vsyncpa [#allocation8], 1
    %3467 = vsyncpa [#allocation11], 1

</llo_original>
